<compile_context>
chip_gen: v5e
topology: v5e:2x2
jax: 0.10.0
libtpu: 0.0.40
codegen_flags: <defaults>
</compile_context>

<pallas_src>
import jax
import jax.numpy as jnp
from jax import lax
from jax.experimental import pallas as pl
from jax.experimental.pallas import tpu as pltpu

_LN_EPS = 1e-5
_NEG_INF = -1e9


# ----------------------------------------------------------------------------
# Fused kernel
# ----------------------------------------------------------------------------

def _make_low_decoder_kernel(B, T, D, H, d_k, d_v, k1, n_layers, has_mask):
    BT = B * T
    pad = (k1 - 1) // 2
    inv_temp = 1.0 / float(d_k) ** 0.5
    k_off = H * d_k
    v_off = 2 * H * d_k
    NT_DIMS = (((1,), (1,)), ((), ()))  # contract the d_k axes -> no transpose op

    def kernel(*refs):
        it = iter(refs)
        x_ref = next(it)                 # (BT, D)  f32
        style_ref = next(it)             # (B, S)   f32
        if has_mask:
            mask_keys_ref = next(it)     # (B, T)   f32, 1.0 = padded position
            mask_rows_ref = next(it)     # (BT, 1)  f32, 1.0 = padded position
        pre1_w = next(it); pre1_b = next(it)
        pre2_w = next(it); pre2_b = next(it)
        saln_w = next(it); saln_b = next(it)
        wqkv = next(it); bqkv = next(it)
        wo = next(it); bo = next(it)
        w1 = next(it); b1 = next(it)
        w2 = next(it); b2 = next(it)
        fc_w = next(it); fc_b = next(it)
        o_ref = next(it)                 # (BT, 40) f32
        ctx_scr = next(it)               # (BT, H*d_v) f32 scratch
        slab_scr = next(it)              # (BT, k1*D)  f32 scratch

        f32, bf16 = jnp.float32, jnp.bfloat16

        def mm(a, w):
            # bf16 MXU operands, f32 accumulation.
            return jnp.dot(a.astype(bf16), w, preferred_element_type=f32)

        def layernorm(y):
            mu = jnp.mean(y, axis=-1, keepdims=True)
            var = jnp.mean((y - mu) ** 2, axis=-1, keepdims=True)
            return (y - mu) * lax.rsqrt(var + _LN_EPS)

        # ---------- prenet: Linear -> ReLU -> Linear (dropout = identity) ------
        x = x_ref[...]
        h0 = jnp.maximum(mm(x, pre1_w[...]) + pre1_b[...], 0.0)
        x = mm(h0, pre2_w[...]) + pre2_b[...]                        # (BT, D)

        # ---------- style-adaptive LN gamma/beta for all layers & SALNs --------
        # (B, S)@(S, L*4D) once, then broadcast each batch row to its T rows
        # via a constant one-hot (BT, B) matmul (exact in f32, no reshapes).
        sgb = mm(style_ref[...], saln_w[...]) + saln_b[...]          # (B, L*4D)
        row_io = lax.broadcasted_iota(jnp.int32, (BT, B), 0)
        col_io = lax.broadcasted_iota(jnp.int32, (BT, B), 1)
        onehot = jnp.where((row_io >= col_io * T) & (row_io < col_io * T + T),
                           1.0, 0.0)                                 # (BT, B) f32
        sgb_bt = jnp.dot(onehot, sgb, preferred_element_type=f32)    # (BT, L*4D)

        def saln(y, sidx):
            off = sidx * 2 * D
            gamma = sgb_bt[:, off:off + D]
            beta = sgb_bt[:, off + D:off + 2 * D]
            return gamma * layernorm(y) + beta

        if has_mask:
            keep_rows = 1.0 - mask_rows_ref[...]                     # (BT, 1)
            mask_keys = mask_keys_ref[...]                           # (B, T)

        # Constant 0/1 shift matrices for the k1-tap temporal conv: im2col is
        # built on the MXU (hoisted out of the layer loop).
        row_t = lax.broadcasted_iota(jnp.int32, (T, T), 0)
        col_t = lax.broadcasted_iota(jnp.int32, (T, T), 1)
        shift_mats = [jnp.where(col_t == row_t + (kk - pad), 1.0, 0.0).astype(bf16)
                      for kk in range(k1)]

        # ------------------------------ FFT blocks ------------------------------
        for l in range(n_layers):
            # ===== multi-head self-attention + residual + SALN =====
            qkv = mm(x, wqkv[l]) + bqkv[l]                           # (BT, H*(2dk+dv))
            for b_i in range(B):                                     # static unroll
                r0 = b_i * T
                qkv_b = qkv[r0:r0 + T, :]
                for h_i in range(H):                                 # static unroll
                    q = qkv_b[:, h_i * d_k:(h_i + 1) * d_k].astype(bf16)
                    k = qkv_b[:, k_off + h_i * d_k:k_off + (h_i + 1) * d_k].astype(bf16)
                    v = qkv_b[:, v_off + h_i * d_v:v_off + (h_i + 1) * d_v].astype(bf16)
                    s = lax.dot_general(q, k, NT_DIMS,
                                        preferred_element_type=f32) * inv_temp
                    if has_mask:
                        s = s + _NEG_INF * mask_keys[b_i:b_i + 1, :]
                    m = jnp.max(s, axis=-1, keepdims=True)
                    p = jnp.exp(s - m)
                    p = p * pl.reciprocal(jnp.sum(p, axis=-1, keepdims=True),
                                          approx=True)
                    ctx_scr[r0:r0 + T, h_i * d_v:(h_i + 1) * d_v] = jnp.dot(
                        p.astype(bf16), v, preferred_element_type=f32)
            a = mm(ctx_scr[...], wo[l]) + bo[l] + x                  # out proj + residual
            a = saln(a, 2 * l)
            if has_mask:
                a = a * keep_rows

            # ===== position-wise FFN: conv(k1) -> Mish -> conv(1) -> res -> SALN
            for b_i in range(B):
                r0 = b_i * T
                a_b = a[r0:r0 + T, :].astype(bf16)                   # (T, D)
                for kk in range(k1):
                    slab_scr[r0:r0 + T, kk * D:(kk + 1) * D] = jnp.dot(
                        shift_mats[kk], a_b, preferred_element_type=f32)
            hc = mm(slab_scr[...], w1[l]) + b1[l]                    # (BT, d_inner)
            # Mish with stable softplus.
            sp = jnp.maximum(hc, 0.0) + jnp.log(1.0 + jnp.exp(-jnp.abs(hc)))
            hc = hc * jnp.tanh(sp)
            y = mm(hc, w2[l]) + b2[l] + a                            # 1x1 conv + residual
            x = saln(y, 2 * l + 1)
            if has_mask:
                x = x * keep_rows

        # -------------------------------- fc_lo ---------------------------------
        out = mm(x, fc_w[...]) + fc_b[...]                           # (BT, 40)
        if has_mask:
            out = out * keep_rows
        o_ref[...] = out

    return kernel


# ----------------------------------------------------------------------------
# Forward wrapper (one pallas_call; only casts / reshapes outside)
# ----------------------------------------------------------------------------

def low_decoder_forward(params, cfg, enc_seq, style_vector, mask=None):
    B, T, D = enc_seq.shape
    H, d_k, d_v = cfg["n_head"], cfg["d_k"], cfg["d_v"]
    k1, k2 = cfg["fft_kernel"]
    n_layers = cfg["n_layers"]
    assert k2 == 1, "second FFT conv kernel assumed size 1"
    n_out = params["fc_w"].shape[1]
    has_mask = mask is not None

    kernel = _make_low_decoder_kernel(B, T, D, H, d_k, d_v, k1, n_layers, has_mask)

    args = [enc_seq.reshape(B * T, D).astype(jnp.float32),
            style_vector.astype(jnp.float32)]
    if has_mask:
        m = mask.astype(jnp.float32)
        args += [m, m.reshape(B * T, 1)]
    args += [params["pre1_w"], params["pre1_b"], params["pre2_w"], params["pre2_b"],
             params["saln_w"], params["saln_b"],
             params["wqkv"], params["bqkv"], params["wo"], params["bo"],
             params["ffn_w1"], params["ffn_b1"], params["ffn_w2"], params["ffn_b2"],
             params["fc_w"], params["fc_b"]]

    out = pl.pallas_call(
        kernel,
        out_shape=jax.ShapeDtypeStruct((B * T, n_out), jnp.float32),
        scratch_shapes=[
            pltpu.VMEM((B * T, H * d_v), jnp.float32),   # per-head context assembly
            pltpu.VMEM((B * T, k1 * D), jnp.float32),    # im2col slab for the conv
        ],
    )(*args)
    return out.reshape(B, T, n_out), None


# ----------------------------------------------------------------------------
# Deterministic, pre-packed parameter construction (matmul weights in bf16)
# ----------------------------------------------------------------------------

def init_params(key, cfg):
    D = cfg["d_model"]
    Dh = D // 2
    H, d_k, d_v = cfg["n_head"], cfg["d_k"], cfg["d_v"]
    d_inner = cfg["d_inner"]
    k1, k2 = cfg["fft_kernel"]
    assert k2 == 1
    S = cfg["style_dim"]
    L = cfg["n_layers"]
    f32, bf16 = jnp.float32, jnp.bfloat16

    keys = iter(jax.random.split(key, 32))

    def rnd(shape, scale=0.05):
        return (scale * jax.random.normal(next(keys), shape, f32)).astype(bf16)

    # Style -> [gamma|beta] affine for every (layer, SALN) pair, packed along N.
    saln_w = rnd((S, L * 4 * D))
    unit = jnp.concatenate([jnp.ones((D,), f32), jnp.zeros((D,), f32)])
    saln_b = jnp.tile(unit, 2 * L).reshape(1, L * 4 * D)

    wqkv, bqkv, wo, bo, w1, b1, w2, b2 = ([] for _ in range(8))
    for _ in range(L):
        wq, wk, wv = rnd((D, H * d_k)), rnd((D, H * d_k)), rnd((D, H * d_v))
        wqkv.append(jnp.concatenate([wq, wk, wv], axis=1))           # (D, H*(2dk+dv))
        bqkv.append(jnp.zeros((1, H * (2 * d_k + d_v)), f32))
        wo.append(rnd((H * d_v, D)))                                 # fc, pre-transposed
        bo.append(jnp.zeros((1, D), f32))
        # Conv1d weight (d_inner, D, k1) -> im2col layout (k1*D, d_inner)
        w1_pt = rnd((d_inner, D, k1))
        w1.append(jnp.transpose(w1_pt, (2, 1, 0)).reshape(k1 * D, d_inner))
        b1.append(jnp.zeros((1, d_inner), f32))
        # Conv1d weight (D, d_inner, 1) -> (d_inner, D)
        w2_pt = rnd((D, d_inner, k2))
        w2.append(w2_pt[:, :, 0].T)
        b2.append(jnp.zeros((1, D), f32))

    return {
        "pre1_w": rnd((D, Dh)), "pre1_b": jnp.zeros((1, Dh), f32),
        "pre2_w": rnd((Dh, D)), "pre2_b": jnp.zeros((1, D), f32),
        "saln_w": saln_w, "saln_b": saln_b,
        "wqkv": jnp.stack(wqkv), "bqkv": jnp.stack(bqkv),
        "wo": jnp.stack(wo), "bo": jnp.stack(bo),
        "ffn_w1": jnp.stack(w1), "ffn_b1": jnp.stack(b1),
        "ffn_w2": jnp.stack(w2), "ffn_b2": jnp.stack(b2),
        "fc_w": rnd((D, 40)), "fc_b": jnp.zeros((1, 40), f32),
    }


# ----------------------------------------------------------------------------
# Main
# ----------------------------------------------------------------------------

if __name__ == "__main__":
    cfg = {
        "n_layers": 2,
        "d_model": 32,
        "n_head": 2,
        "d_k": 16,
        "d_v": 16,
        "d_inner": 64,
        "fft_kernel": (9, 1),
        "style_dim": 16,
    }

    key = jax.random.PRNGKey(0)
    k_param, k_x, k_s = jax.random.split(key, 3)
    params = init_params(k_param, cfg)

    B, T = 2, 16
    enc_seq = jax.random.normal(k_x, (B, T, cfg["d_model"]), jnp.float32)
    style_vector = jax.random.normal(k_s, (B, cfg["style_dim"]), jnp.float32)

    # jit the whole forward (mask=None path; cfg closed over as static config).
    fwd = jax.jit(lambda p, x, s: low_decoder_forward(p, cfg, x, s, mask=None)[0])

    mel_low = jax.block_until_ready(fwd(params, enc_seq, style_vector))
    assert mel_low.shape == (B, T, 40)
    assert bool(jnp.all(jnp.isfinite(mel_low)))
    print("KERNEL_OK")
</pallas_src>

<mosaic_0001>
module attributes {stable_mosaic.version = 11 : i64} {
  func.func @kernel(%arg0: memref<32x32xf32, #tpu.memory_space<vmem>>, %arg1: memref<2x16xf32, #tpu.memory_space<vmem>>, %arg2: memref<32x16xbf16, #tpu.memory_space<vmem>>, %arg3: memref<1x16xf32, #tpu.memory_space<vmem>>, %arg4: memref<16x32xbf16, #tpu.memory_space<vmem>>, %arg5: memref<1x32xf32, #tpu.memory_space<vmem>>, %arg6: memref<16x256xbf16, #tpu.memory_space<vmem>>, %arg7: memref<1x256xf32, #tpu.memory_space<vmem>>, %arg8: memref<2x32x96xbf16, #tpu.memory_space<vmem>>, %arg9: memref<2x1x96xf32, #tpu.memory_space<vmem>>, %arg10: memref<2x32x32xbf16, #tpu.memory_space<vmem>>, %arg11: memref<2x1x32xf32, #tpu.memory_space<vmem>>, %arg12: memref<2x288x64xbf16, #tpu.memory_space<vmem>>, %arg13: memref<2x1x64xf32, #tpu.memory_space<vmem>>, %arg14: memref<2x64x32xbf16, #tpu.memory_space<vmem>>, %arg15: memref<2x1x32xf32, #tpu.memory_space<vmem>>, %arg16: memref<32x40xbf16, #tpu.memory_space<vmem>>, %arg17: memref<1x40xf32, #tpu.memory_space<vmem>>, %arg18: memref<32x40xf32, #tpu.memory_space<vmem>>, %arg19: memref<32x32xf32, #tpu.memory_space<vmem>>, %arg20: memref<32x288xf32, #tpu.memory_space<vmem>>) attributes {dimension_semantics = [], scalar_prefetch = 0 : i64, scratch_operands = 2 : i64, tpu.core_type = #tpu.core_type<tc>} {
    %c0 = arith.constant 0 : index
    %c0_0 = arith.constant 0 : index
    %0 = vector.load %arg0[%c0, %c0_0] : memref<32x32xf32, #tpu.memory_space<vmem>>, vector<32x32xf32>
    %c0_1 = arith.constant 0 : index
    %c0_2 = arith.constant 0 : index
    %1 = vector.load %arg2[%c0_1, %c0_2] : memref<32x16xbf16, #tpu.memory_space<vmem>>, vector<32x16xbf16>
    %2 = arith.truncf %0 : vector<32x32xf32> to vector<32x32xbf16>
    %cst = arith.constant dense<0.000000e+00> : vector<32x16xf32>
    %3 = tpu.matmul %2, %1, %cst {dimension_numbers = #tpu.dot_dimension_numbers<[1], [0], [0], [1], [0, 0, 1, 1], [], []>} : vector<32x32xbf16>, vector<32x16xbf16>, vector<32x16xf32> -> vector<32x16xf32>
    %c0_3 = arith.constant 0 : index
    %c0_4 = arith.constant 0 : index
    %4 = vector.load %arg3[%c0_3, %c0_4] : memref<1x16xf32, #tpu.memory_space<vmem>>, vector<1x16xf32>
    %5 = vector.broadcast %4 : vector<1x16xf32> to vector<32x16xf32>
    %6 = arith.addf %3, %5 : vector<32x16xf32>
    %cst_5 = arith.constant 0.000000e+00 : f32
    %7 = vector.broadcast %cst_5 : f32 to vector<32x16xf32>
    %8 = arith.maximumf %6, %7 : vector<32x16xf32>
    %c0_6 = arith.constant 0 : index
    %c0_7 = arith.constant 0 : index
    %9 = vector.load %arg4[%c0_6, %c0_7] : memref<16x32xbf16, #tpu.memory_space<vmem>>, vector<16x32xbf16>
    %10 = arith.truncf %8 : vector<32x16xf32> to vector<32x16xbf16>
    %cst_8 = arith.constant dense<0.000000e+00> : vector<32x32xf32>
    %11 = tpu.matmul %10, %9, %cst_8 {dimension_numbers = #tpu.dot_dimension_numbers<[1], [0], [0], [1], [0, 0, 1, 1], [], []>} : vector<32x16xbf16>, vector<16x32xbf16>, vector<32x32xf32> -> vector<32x32xf32>
    %c0_9 = arith.constant 0 : index
    %c0_10 = arith.constant 0 : index
    %12 = vector.load %arg5[%c0_9, %c0_10] : memref<1x32xf32, #tpu.memory_space<vmem>>, vector<1x32xf32>
    %13 = vector.broadcast %12 : vector<1x32xf32> to vector<32x32xf32>
    %14 = arith.addf %11, %13 : vector<32x32xf32>
    %c0_11 = arith.constant 0 : index
    %c0_12 = arith.constant 0 : index
    %15 = vector.load %arg1[%c0_11, %c0_12] : memref<2x16xf32, #tpu.memory_space<vmem>>, vector<2x16xf32>
    %c0_13 = arith.constant 0 : index
    %c0_14 = arith.constant 0 : index
    %16 = vector.load %arg6[%c0_13, %c0_14] : memref<16x256xbf16, #tpu.memory_space<vmem>>, vector<16x256xbf16>
    %17 = arith.truncf %15 : vector<2x16xf32> to vector<2x16xbf16>
    %cst_15 = arith.constant dense<0.000000e+00> : vector<2x256xf32>
    %18 = tpu.matmul %17, %16, %cst_15 {dimension_numbers = #tpu.dot_dimension_numbers<[1], [0], [0], [1], [0, 0, 1, 1], [], []>} : vector<2x16xbf16>, vector<16x256xbf16>, vector<2x256xf32> -> vector<2x256xf32>
    %c0_16 = arith.constant 0 : index
    %c0_17 = arith.constant 0 : index
    %19 = vector.load %arg7[%c0_16, %c0_17] : memref<1x256xf32, #tpu.memory_space<vmem>>, vector<1x256xf32>
    %20 = vector.broadcast %19 : vector<1x256xf32> to vector<2x256xf32>
    %21 = arith.addf %18, %20 : vector<2x256xf32>
    %22 = tpu.iota {dimensions = array<i32: 0>} : vector<32x2xi32>
    %23 = tpu.iota {dimensions = array<i32: 1>} : vector<32x2xi32>
    %c16_i32 = arith.constant 16 : i32
    %24 = vector.broadcast %c16_i32 : i32 to vector<32x2xi32>
    %25 = arith.muli %23, %24 : vector<32x2xi32>
    %26 = arith.cmpi sge, %22, %25 : vector<32x2xi32>
    %c16_i32_18 = arith.constant 16 : i32
    %27 = vector.broadcast %c16_i32_18 : i32 to vector<32x2xi32>
    %28 = arith.muli %23, %27 : vector<32x2xi32>
    %c16_i32_19 = arith.constant 16 : i32
    %29 = vector.broadcast %c16_i32_19 : i32 to vector<32x2xi32>
    %30 = arith.addi %28, %29 : vector<32x2xi32>
    %31 = arith.cmpi slt, %22, %30 : vector<32x2xi32>
    %32 = arith.andi %26, %31 : vector<32x2xi1>
    %cst_20 = arith.constant 1.000000e+00 : f32
    %cst_21 = arith.constant 0.000000e+00 : f32
    %33 = vector.broadcast %cst_20 : f32 to vector<32x2xf32>
    %34 = vector.broadcast %cst_21 : f32 to vector<32x2xf32>
    %35 = arith.select %32, %33, %34 : vector<32x2xi1>, vector<32x2xf32>
    %cst_22 = arith.constant dense<0.000000e+00> : vector<32x256xf32>
    %36 = tpu.matmul %35, %21, %cst_22 {dimension_numbers = #tpu.dot_dimension_numbers<[1], [0], [0], [1], [0, 0, 1, 1], [], []>} : vector<32x2xf32>, vector<2x256xf32>, vector<32x256xf32> -> vector<32x256xf32>
    %37 = tpu.iota {dimensions = array<i32: 0>} : vector<16x16xi32>
    %38 = tpu.iota {dimensions = array<i32: 1>} : vector<16x16xi32>
    %c-4_i32 = arith.constant -4 : i32
    %39 = vector.broadcast %c-4_i32 : i32 to vector<16x16xi32>
    %40 = arith.addi %37, %39 : vector<16x16xi32>
    %41 = arith.cmpi eq, %38, %40 : vector<16x16xi32>
    %cst_23 = arith.constant 1.000000e+00 : f32
    %cst_24 = arith.constant 0.000000e+00 : f32
    %42 = vector.broadcast %cst_23 : f32 to vector<16x16xf32>
    %43 = vector.broadcast %cst_24 : f32 to vector<16x16xf32>
    %44 = arith.select %41, %42, %43 : vector<16x16xi1>, vector<16x16xf32>
    %45 = arith.truncf %44 : vector<16x16xf32> to vector<16x16xbf16>
    %c-3_i32 = arith.constant -3 : i32
    %46 = vector.broadcast %c-3_i32 : i32 to vector<16x16xi32>
    %47 = arith.addi %37, %46 : vector<16x16xi32>
    %48 = arith.cmpi eq, %38, %47 : vector<16x16xi32>
    %cst_25 = arith.constant 1.000000e+00 : f32
    %cst_26 = arith.constant 0.000000e+00 : f32
    %49 = vector.broadcast %cst_25 : f32 to vector<16x16xf32>
    %50 = vector.broadcast %cst_26 : f32 to vector<16x16xf32>
    %51 = arith.select %48, %49, %50 : vector<16x16xi1>, vector<16x16xf32>
    %52 = arith.truncf %51 : vector<16x16xf32> to vector<16x16xbf16>
    %c-2_i32 = arith.constant -2 : i32
    %53 = vector.broadcast %c-2_i32 : i32 to vector<16x16xi32>
    %54 = arith.addi %37, %53 : vector<16x16xi32>
    %55 = arith.cmpi eq, %38, %54 : vector<16x16xi32>
    %cst_27 = arith.constant 1.000000e+00 : f32
    %cst_28 = arith.constant 0.000000e+00 : f32
    %56 = vector.broadcast %cst_27 : f32 to vector<16x16xf32>
    %57 = vector.broadcast %cst_28 : f32 to vector<16x16xf32>
    %58 = arith.select %55, %56, %57 : vector<16x16xi1>, vector<16x16xf32>
    %59 = arith.truncf %58 : vector<16x16xf32> to vector<16x16xbf16>
    %c-1_i32 = arith.constant -1 : i32
    %60 = vector.broadcast %c-1_i32 : i32 to vector<16x16xi32>
    %61 = arith.addi %37, %60 : vector<16x16xi32>
    %62 = arith.cmpi eq, %38, %61 : vector<16x16xi32>
    %cst_29 = arith.constant 1.000000e+00 : f32
    %cst_30 = arith.constant 0.000000e+00 : f32
    %63 = vector.broadcast %cst_29 : f32 to vector<16x16xf32>
    %64 = vector.broadcast %cst_30 : f32 to vector<16x16xf32>
    %65 = arith.select %62, %63, %64 : vector<16x16xi1>, vector<16x16xf32>
    %66 = arith.truncf %65 : vector<16x16xf32> to vector<16x16xbf16>
    %c0_i32 = arith.constant 0 : i32
    %67 = vector.broadcast %c0_i32 : i32 to vector<16x16xi32>
    %68 = arith.addi %37, %67 : vector<16x16xi32>
    %69 = arith.cmpi eq, %38, %68 : vector<16x16xi32>
    %cst_31 = arith.constant 1.000000e+00 : f32
    %cst_32 = arith.constant 0.000000e+00 : f32
    %70 = vector.broadcast %cst_31 : f32 to vector<16x16xf32>
    %71 = vector.broadcast %cst_32 : f32 to vector<16x16xf32>
    %72 = arith.select %69, %70, %71 : vector<16x16xi1>, vector<16x16xf32>
    %73 = arith.truncf %72 : vector<16x16xf32> to vector<16x16xbf16>
    %c1_i32 = arith.constant 1 : i32
    %74 = vector.broadcast %c1_i32 : i32 to vector<16x16xi32>
    %75 = arith.addi %37, %74 : vector<16x16xi32>
    %76 = arith.cmpi eq, %38, %75 : vector<16x16xi32>
    %cst_33 = arith.constant 1.000000e+00 : f32
    %cst_34 = arith.constant 0.000000e+00 : f32
    %77 = vector.broadcast %cst_33 : f32 to vector<16x16xf32>
    %78 = vector.broadcast %cst_34 : f32 to vector<16x16xf32>
    %79 = arith.select %76, %77, %78 : vector<16x16xi1>, vector<16x16xf32>
    %80 = arith.truncf %79 : vector<16x16xf32> to vector<16x16xbf16>
    %c2_i32 = arith.constant 2 : i32
    %81 = vector.broadcast %c2_i32 : i32 to vector<16x16xi32>
    %82 = arith.addi %37, %81 : vector<16x16xi32>
    %83 = arith.cmpi eq, %38, %82 : vector<16x16xi32>
    %cst_35 = arith.constant 1.000000e+00 : f32
    %cst_36 = arith.constant 0.000000e+00 : f32
    %84 = vector.broadcast %cst_35 : f32 to vector<16x16xf32>
    %85 = vector.broadcast %cst_36 : f32 to vector<16x16xf32>
    %86 = arith.select %83, %84, %85 : vector<16x16xi1>, vector<16x16xf32>
    %87 = arith.truncf %86 : vector<16x16xf32> to vector<16x16xbf16>
    %c3_i32 = arith.constant 3 : i32
    %88 = vector.broadcast %c3_i32 : i32 to vector<16x16xi32>
    %89 = arith.addi %37, %88 : vector<16x16xi32>
    %90 = arith.cmpi eq, %38, %89 : vector<16x16xi32>
    %cst_37 = arith.constant 1.000000e+00 : f32
    %cst_38 = arith.constant 0.000000e+00 : f32
    %91 = vector.broadcast %cst_37 : f32 to vector<16x16xf32>
    %92 = vector.broadcast %cst_38 : f32 to vector<16x16xf32>
    %93 = arith.select %90, %91, %92 : vector<16x16xi1>, vector<16x16xf32>
    %94 = arith.truncf %93 : vector<16x16xf32> to vector<16x16xbf16>
    %c4_i32 = arith.constant 4 : i32
    %95 = vector.broadcast %c4_i32 : i32 to vector<16x16xi32>
    %96 = arith.addi %37, %95 : vector<16x16xi32>
    %97 = arith.cmpi eq, %38, %96 : vector<16x16xi32>
    %cst_39 = arith.constant 1.000000e+00 : f32
    %cst_40 = arith.constant 0.000000e+00 : f32
    %98 = vector.broadcast %cst_39 : f32 to vector<16x16xf32>
    %99 = vector.broadcast %cst_40 : f32 to vector<16x16xf32>
    %100 = arith.select %97, %98, %99 : vector<16x16xi1>, vector<16x16xf32>
    %101 = arith.truncf %100 : vector<16x16xf32> to vector<16x16xbf16>
    %c0_41 = arith.constant 0 : index
    %c0_42 = arith.constant 0 : index
    %c0_43 = arith.constant 0 : index
    %102 = vector.load %arg8[%c0_41, %c0_42, %c0_43] : memref<2x32x96xbf16, #tpu.memory_space<vmem>>, vector<1x32x96xbf16>
    %103 = vector.shape_cast %102 : vector<1x32x96xbf16> to vector<32x96xbf16>
    %104 = arith.truncf %14 : vector<32x32xf32> to vector<32x32xbf16>
    %cst_44 = arith.constant dense<0.000000e+00> : vector<32x96xf32>
    %105 = tpu.matmul %104, %103, %cst_44 {dimension_numbers = #tpu.dot_dimension_numbers<[1], [0], [0], [1], [0, 0, 1, 1], [], []>} : vector<32x32xbf16>, vector<32x96xbf16>, vector<32x96xf32> -> vector<32x96xf32>
    %c0_45 = arith.constant 0 : index
    %c0_46 = arith.constant 0 : index
    %c0_47 = arith.constant 0 : index
    %106 = vector.load %arg9[%c0_45, %c0_46, %c0_47] : memref<2x1x96xf32, #tpu.memory_space<vmem>>, vector<1x1x96xf32>
    %107 = vector.shape_cast %106 : vector<1x1x96xf32> to vector<1x96xf32>
    %108 = vector.broadcast %107 : vector<1x96xf32> to vector<32x96xf32>
    %109 = arith.addf %105, %108 : vector<32x96xf32>
    %110 = vector.extract_strided_slice %109 {offsets = [0, 0], sizes = [16, 96], strides = [1, 1]} : vector<32x96xf32> to vector<16x96xf32>
    %111 = vector.extract_strided_slice %110 {offsets = [0, 0], sizes = [16, 16], strides = [1, 1]} : vector<16x96xf32> to vector<16x16xf32>
    %112 = arith.truncf %111 : vector<16x16xf32> to vector<16x16xbf16>
    %113 = vector.extract_strided_slice %110 {offsets = [0, 32], sizes = [16, 16], strides = [1, 1]} : vector<16x96xf32> to vector<16x16xf32>
    %114 = arith.truncf %113 : vector<16x16xf32> to vector<16x16xbf16>
    %115 = vector.extract_strided_slice %110 {offsets = [0, 64], sizes = [16, 16], strides = [1, 1]} : vector<16x96xf32> to vector<16x16xf32>
    %116 = arith.truncf %115 : vector<16x16xf32> to vector<16x16xbf16>
    %cst_48 = arith.constant dense<0.000000e+00> : vector<16x16xf32>
    %117 = tpu.matmul %112, %114, %cst_48 {dimension_numbers = #tpu.dot_dimension_numbers<[1], [1], [0], [0], [0, 0, 1, 0], [], []>} : vector<16x16xbf16>, vector<16x16xbf16>, vector<16x16xf32> -> vector<16x16xf32>
    %cst_49 = arith.constant 2.500000e-01 : f32
    %118 = vector.broadcast %cst_49 : f32 to vector<16x16xf32>
    %119 = arith.mulf %117, %118 : vector<16x16xf32>
    %cst_50 = arith.constant dense<0xFF800000> : vector<16xf32>
    %120 = vector.multi_reduction <maximumf>, %119, %cst_50 [1] : vector<16x16xf32> to vector<16xf32>
    %121 = vector.shape_cast %120 : vector<16xf32> to vector<16x1xf32>
    %122 = vector.broadcast %121 : vector<16x1xf32> to vector<16x16xf32>
    %123 = arith.subf %119, %122 : vector<16x16xf32>
    %124 = math.exp %123 : vector<16x16xf32>
    %cst_51 = arith.constant dense<0.000000e+00> : vector<16xf32>
    %125 = vector.multi_reduction <add>, %124, %cst_51 [1] : vector<16x16xf32> to vector<16xf32>
    %126 = vector.shape_cast %125 : vector<16xf32> to vector<16x1xf32>
    %127 = tpu.reciprocal %126 {approx = true} : vector<16x1xf32> -> vector<16x1xf32>
    %128 = vector.broadcast %127 : vector<16x1xf32> to vector<16x16xf32>
    %129 = arith.mulf %124, %128 : vector<16x16xf32>
    %130 = arith.truncf %129 : vector<16x16xf32> to vector<16x16xbf16>
    %cst_52 = arith.constant dense<0.000000e+00> : vector<16x16xf32>
    %131 = tpu.matmul %130, %116, %cst_52 {dimension_numbers = #tpu.dot_dimension_numbers<[1], [0], [0], [1], [0, 0, 1, 1], [], []>} : vector<16x16xbf16>, vector<16x16xbf16>, vector<16x16xf32> -> vector<16x16xf32>
    %c0_53 = arith.constant 0 : index
    %c0_54 = arith.constant 0 : index
    %132 = vector.load %arg19[%c0_53, %c0_54] : memref<32x32xf32, #tpu.memory_space<vmem>>, vector<16x16xf32>
    tpu.vector_store %arg19[%c0_53, %c0_54], %131 {strides = array<i32>} : memref<32x32xf32, #tpu.memory_space<vmem>>, vector<16x16xf32>,
    %133 = vector.extract_strided_slice %110 {offsets = [0, 16], sizes = [16, 16], strides = [1, 1]} : vector<16x96xf32> to vector<16x16xf32>
    %134 = arith.truncf %133 : vector<16x16xf32> to vector<16x16xbf16>
    %135 = vector.extract_strided_slice %110 {offsets = [0, 48], sizes = [16, 16], strides = [1, 1]} : vector<16x96xf32> to vector<16x16xf32>
    %136 = arith.truncf %135 : vector<16x16xf32> to vector<16x16xbf16>
    %137 = vector.extract_strided_slice %110 {offsets = [0, 80], sizes = [16, 16], strides = [1, 1]} : vector<16x96xf32> to vector<16x16xf32>
    %138 = arith.truncf %137 : vector<16x16xf32> to vector<16x16xbf16>
    %cst_55 = arith.constant dense<0.000000e+00> : vector<16x16xf32>
    %139 = tpu.matmul %134, %136, %cst_55 {dimension_numbers = #tpu.dot_dimension_numbers<[1], [1], [0], [0], [0, 0, 1, 0], [], []>} : vector<16x16xbf16>, vector<16x16xbf16>, vector<16x16xf32> -> vector<16x16xf32>
    %cst_56 = arith.constant 2.500000e-01 : f32
    %140 = vector.broadcast %cst_56 : f32 to vector<16x16xf32>
    %141 = arith.mulf %139, %140 : vector<16x16xf32>
    %cst_57 = arith.constant dense<0xFF800000> : vector<16xf32>
    %142 = vector.multi_reduction <maximumf>, %141, %cst_57 [1] : vector<16x16xf32> to vector<16xf32>
    %143 = vector.shape_cast %142 : vector<16xf32> to vector<16x1xf32>
    %144 = vector.broadcast %143 : vector<16x1xf32> to vector<16x16xf32>
    %145 = arith.subf %141, %144 : vector<16x16xf32>
    %146 = math.exp %145 : vector<16x16xf32>
    %cst_58 = arith.constant dense<0.000000e+00> : vector<16xf32>
    %147 = vector.multi_reduction <add>, %146, %cst_58 [1] : vector<16x16xf32> to vector<16xf32>
    %148 = vector.shape_cast %147 : vector<16xf32> to vector<16x1xf32>
    %149 = tpu.reciprocal %148 {approx = true} : vector<16x1xf32> -> vector<16x1xf32>
    %150 = vector.broadcast %149 : vector<16x1xf32> to vector<16x16xf32>
    %151 = arith.mulf %146, %150 : vector<16x16xf32>
    %152 = arith.truncf %151 : vector<16x16xf32> to vector<16x16xbf16>
    %cst_59 = arith.constant dense<0.000000e+00> : vector<16x16xf32>
    %153 = tpu.matmul %152, %138, %cst_59 {dimension_numbers = #tpu.dot_dimension_numbers<[1], [0], [0], [1], [0, 0, 1, 1], [], []>} : vector<16x16xbf16>, vector<16x16xbf16>, vector<16x16xf32> -> vector<16x16xf32>
    %c0_60 = arith.constant 0 : index
    %c16 = arith.constant 16 : index
    %154 = vector.load %arg19[%c0_60, %c16] : memref<32x32xf32, #tpu.memory_space<vmem>>, vector<16x16xf32>
    tpu.vector_store %arg19[%c0_60, %c16], %153 {strides = array<i32>} : memref<32x32xf32, #tpu.memory_space<vmem>>, vector<16x16xf32>,
    %155 = vector.extract_strided_slice %109 {offsets = [16, 0], sizes = [16, 96], strides = [1, 1]} : vector<32x96xf32> to vector<16x96xf32>
    %156 = vector.extract_strided_slice %155 {offsets = [0, 0], sizes = [16, 16], strides = [1, 1]} : vector<16x96xf32> to vector<16x16xf32>
    %157 = arith.truncf %156 : vector<16x16xf32> to vector<16x16xbf16>
    %158 = vector.extract_strided_slice %155 {offsets = [0, 32], sizes = [16, 16], strides = [1, 1]} : vector<16x96xf32> to vector<16x16xf32>
    %159 = arith.truncf %158 : vector<16x16xf32> to vector<16x16xbf16>
    %160 = vector.extract_strided_slice %155 {offsets = [0, 64], sizes = [16, 16], strides = [1, 1]} : vector<16x96xf32> to vector<16x16xf32>
    %161 = arith.truncf %160 : vector<16x16xf32> to vector<16x16xbf16>
    %cst_61 = arith.constant dense<0.000000e+00> : vector<16x16xf32>
    %162 = tpu.matmul %157, %159, %cst_61 {dimension_numbers = #tpu.dot_dimension_numbers<[1], [1], [0], [0], [0, 0, 1, 0], [], []>} : vector<16x16xbf16>, vector<16x16xbf16>, vector<16x16xf32> -> vector<16x16xf32>
    %cst_62 = arith.constant 2.500000e-01 : f32
    %163 = vector.broadcast %cst_62 : f32 to vector<16x16xf32>
    %164 = arith.mulf %162, %163 : vector<16x16xf32>
    %cst_63 = arith.constant dense<0xFF800000> : vector<16xf32>
    %165 = vector.multi_reduction <maximumf>, %164, %cst_63 [1] : vector<16x16xf32> to vector<16xf32>
    %166 = vector.shape_cast %165 : vector<16xf32> to vector<16x1xf32>
    %167 = vector.broadcast %166 : vector<16x1xf32> to vector<16x16xf32>
    %168 = arith.subf %164, %167 : vector<16x16xf32>
    %169 = math.exp %168 : vector<16x16xf32>
    %cst_64 = arith.constant dense<0.000000e+00> : vector<16xf32>
    %170 = vector.multi_reduction <add>, %169, %cst_64 [1] : vector<16x16xf32> to vector<16xf32>
    %171 = vector.shape_cast %170 : vector<16xf32> to vector<16x1xf32>
    %172 = tpu.reciprocal %171 {approx = true} : vector<16x1xf32> -> vector<16x1xf32>
    %173 = vector.broadcast %172 : vector<16x1xf32> to vector<16x16xf32>
    %174 = arith.mulf %169, %173 : vector<16x16xf32>
    %175 = arith.truncf %174 : vector<16x16xf32> to vector<16x16xbf16>
    %cst_65 = arith.constant dense<0.000000e+00> : vector<16x16xf32>
    %176 = tpu.matmul %175, %161, %cst_65 {dimension_numbers = #tpu.dot_dimension_numbers<[1], [0], [0], [1], [0, 0, 1, 1], [], []>} : vector<16x16xbf16>, vector<16x16xbf16>, vector<16x16xf32> -> vector<16x16xf32>
    %c16_66 = arith.constant 16 : index
    %c0_67 = arith.constant 0 : index
    %177 = vector.load %arg19[%c16_66, %c0_67] : memref<32x32xf32, #tpu.memory_space<vmem>>, vector<16x16xf32>
    tpu.vector_store %arg19[%c16_66, %c0_67], %176 {strides = array<i32>} : memref<32x32xf32, #tpu.memory_space<vmem>>, vector<16x16xf32>,
    %178 = vector.extract_strided_slice %155 {offsets = [0, 16], sizes = [16, 16], strides = [1, 1]} : vector<16x96xf32> to vector<16x16xf32>
    %179 = arith.truncf %178 : vector<16x16xf32> to vector<16x16xbf16>
    %180 = vector.extract_strided_slice %155 {offsets = [0, 48], sizes = [16, 16], strides = [1, 1]} : vector<16x96xf32> to vector<16x16xf32>
    %181 = arith.truncf %180 : vector<16x16xf32> to vector<16x16xbf16>
    %182 = vector.extract_strided_slice %155 {offsets = [0, 80], sizes = [16, 16], strides = [1, 1]} : vector<16x96xf32> to vector<16x16xf32>
    %183 = arith.truncf %182 : vector<16x16xf32> to vector<16x16xbf16>
    %cst_68 = arith.constant dense<0.000000e+00> : vector<16x16xf32>
    %184 = tpu.matmul %179, %181, %cst_68 {dimension_numbers = #tpu.dot_dimension_numbers<[1], [1], [0], [0], [0, 0, 1, 0], [], []>} : vector<16x16xbf16>, vector<16x16xbf16>, vector<16x16xf32> -> vector<16x16xf32>
    %cst_69 = arith.constant 2.500000e-01 : f32
    %185 = vector.broadcast %cst_69 : f32 to vector<16x16xf32>
    %186 = arith.mulf %184, %185 : vector<16x16xf32>
    %cst_70 = arith.constant dense<0xFF800000> : vector<16xf32>
    %187 = vector.multi_reduction <maximumf>, %186, %cst_70 [1] : vector<16x16xf32> to vector<16xf32>
    %188 = vector.shape_cast %187 : vector<16xf32> to vector<16x1xf32>
    %189 = vector.broadcast %188 : vector<16x1xf32> to vector<16x16xf32>
    %190 = arith.subf %186, %189 : vector<16x16xf32>
    %191 = math.exp %190 : vector<16x16xf32>
    %cst_71 = arith.constant dense<0.000000e+00> : vector<16xf32>
    %192 = vector.multi_reduction <add>, %191, %cst_71 [1] : vector<16x16xf32> to vector<16xf32>
    %193 = vector.shape_cast %192 : vector<16xf32> to vector<16x1xf32>
    %194 = tpu.reciprocal %193 {approx = true} : vector<16x1xf32> -> vector<16x1xf32>
    %195 = vector.broadcast %194 : vector<16x1xf32> to vector<16x16xf32>
    %196 = arith.mulf %191, %195 : vector<16x16xf32>
    %197 = arith.truncf %196 : vector<16x16xf32> to vector<16x16xbf16>
    %cst_72 = arith.constant dense<0.000000e+00> : vector<16x16xf32>
    %198 = tpu.matmul %197, %183, %cst_72 {dimension_numbers = #tpu.dot_dimension_numbers<[1], [0], [0], [1], [0, 0, 1, 1], [], []>} : vector<16x16xbf16>, vector<16x16xbf16>, vector<16x16xf32> -> vector<16x16xf32>
    %c16_73 = arith.constant 16 : index
    %c16_74 = arith.constant 16 : index
    %199 = vector.load %arg19[%c16_73, %c16_74] : memref<32x32xf32, #tpu.memory_space<vmem>>, vector<16x16xf32>
    tpu.vector_store %arg19[%c16_73, %c16_74], %198 {strides = array<i32>} : memref<32x32xf32, #tpu.memory_space<vmem>>, vector<16x16xf32>,
    %c0_75 = arith.constant 0 : index
    %c0_76 = arith.constant 0 : index
    %200 = vector.load %arg19[%c0_75, %c0_76] : memref<32x32xf32, #tpu.memory_space<vmem>>, vector<32x32xf32>
    %c0_77 = arith.constant 0 : index
    %c0_78 = arith.constant 0 : index
    %c0_79 = arith.constant 0 : index
    %201 = vector.load %arg10[%c0_77, %c0_78, %c0_79] : memref<2x32x32xbf16, #tpu.memory_space<vmem>>, vector<1x32x32xbf16>
    %202 = vector.shape_cast %201 : vector<1x32x32xbf16> to vector<32x32xbf16>
    %203 = arith.truncf %200 : vector<32x32xf32> to vector<32x32xbf16>
    %cst_80 = arith.constant dense<0.000000e+00> : vector<32x32xf32>
    %204 = tpu.matmul %203, %202, %cst_80 {dimension_numbers = #tpu.dot_dimension_numbers<[1], [0], [0], [1], [0, 0, 1, 1], [], []>} : vector<32x32xbf16>, vector<32x32xbf16>, vector<32x32xf32> -> vector<32x32xf32>
    %c0_81 = arith.constant 0 : index
    %c0_82 = arith.constant 0 : index
    %c0_83 = arith.constant 0 : index
    %205 = vector.load %arg11[%c0_81, %c0_82, %c0_83] : memref<2x1x32xf32, #tpu.memory_space<vmem>>, vector<1x1x32xf32>
    %206 = vector.shape_cast %205 : vector<1x1x32xf32> to vector<1x32xf32>
    %207 = vector.broadcast %206 : vector<1x32xf32> to vector<32x32xf32>
    %208 = arith.addf %204, %207 : vector<32x32xf32>
    %209 = arith.addf %208, %14 : vector<32x32xf32>
    %210 = vector.extract_strided_slice %36 {offsets = [0, 0], sizes = [32, 32], strides = [1, 1]} : vector<32x256xf32> to vector<32x32xf32>
    %211 = vector.extract_strided_slice %36 {offsets = [0, 32], sizes = [32, 32], strides = [1, 1]} : vector<32x256xf32> to vector<32x32xf32>
    %cst_84 = arith.constant dense<0.000000e+00> : vector<32xf32>
    %212 = vector.multi_reduction <add>, %209, %cst_84 [1] : vector<32x32xf32> to vector<32xf32>
    %213 = vector.shape_cast %212 : vector<32xf32> to vector<32x1xf32>
    %cst_85 = arith.constant 3.200000e+01 : f32
    %214 = vector.broadcast %cst_85 : f32 to vector<32x1xf32>
    %215 = arith.divf %213, %214 : vector<32x1xf32>
    %216 = vector.broadcast %215 : vector<32x1xf32> to vector<32x32xf32>
    %217 = arith.subf %209, %216 : vector<32x32xf32>
    %218 = arith.mulf %217, %217 : vector<32x32xf32>
    %cst_86 = arith.constant dense<0.000000e+00> : vector<32xf32>
    %219 = vector.multi_reduction <add>, %218, %cst_86 [1] : vector<32x32xf32> to vector<32xf32>
    %220 = vector.shape_cast %219 : vector<32xf32> to vector<32x1xf32>
    %cst_87 = arith.constant 3.200000e+01 : f32
    %221 = vector.broadcast %cst_87 : f32 to vector<32x1xf32>
    %222 = arith.divf %220, %221 : vector<32x1xf32>
    %223 = vector.broadcast %215 : vector<32x1xf32> to vector<32x32xf32>
    %224 = arith.subf %209, %223 : vector<32x32xf32>
    %cst_88 = arith.constant 9.99999974E-6 : f32
    %225 = vector.broadcast %cst_88 : f32 to vector<32x1xf32>
    %226 = arith.addf %222, %225 : vector<32x1xf32>
    %227 = math.rsqrt %226 : vector<32x1xf32>
    %228 = vector.broadcast %227 : vector<32x1xf32> to vector<32x32xf32>
    %229 = arith.mulf %224, %228 : vector<32x32xf32>
    %230 = arith.mulf %210, %229 : vector<32x32xf32>
    %231 = arith.addf %230, %211 : vector<32x32xf32>
    %232 = vector.extract_strided_slice %231 {offsets = [0, 0], sizes = [16, 32], strides = [1, 1]} : vector<32x32xf32> to vector<16x32xf32>
    %233 = arith.truncf %232 : vector<16x32xf32> to vector<16x32xbf16>
    %cst_89 = arith.constant dense<0.000000e+00> : vector<16x32xf32>
    %234 = tpu.matmul %45, %233, %cst_89 {dimension_numbers = #tpu.dot_dimension_numbers<[1], [0], [0], [1], [0, 0, 1, 1], [], []>} : vector<16x16xbf16>, vector<16x32xbf16>, vector<16x32xf32> -> vector<16x32xf32>
    %c0_90 = arith.constant 0 : index
    %c0_91 = arith.constant 0 : index
    %235 = vector.load %arg20[%c0_90, %c0_91] : memref<32x288xf32, #tpu.memory_space<vmem>>, vector<16x32xf32>
    tpu.vector_store %arg20[%c0_90, %c0_91], %234 {strides = array<i32>} : memref<32x288xf32, #tpu.memory_space<vmem>>, vector<16x32xf32>,
    %cst_92 = arith.constant dense<0.000000e+00> : vector<16x32xf32>
    %236 = tpu.matmul %52, %233, %cst_92 {dimension_numbers = #tpu.dot_dimension_numbers<[1], [0], [0], [1], [0, 0, 1, 1], [], []>} : vector<16x16xbf16>, vector<16x32xbf16>, vector<16x32xf32> -> vector<16x32xf32>
    %c0_93 = arith.constant 0 : index
    %c32 = arith.constant 32 : index
    %237 = vector.load %arg20[%c0_93, %c32] : memref<32x288xf32, #tpu.memory_space<vmem>>, vector<16x32xf32>
    tpu.vector_store %arg20[%c0_93, %c32], %236 {strides = array<i32>} : memref<32x288xf32, #tpu.memory_space<vmem>>, vector<16x32xf32>,
    %cst_94 = arith.constant dense<0.000000e+00> : vector<16x32xf32>
    %238 = tpu.matmul %59, %233, %cst_94 {dimension_numbers = #tpu.dot_dimension_numbers<[1], [0], [0], [1], [0, 0, 1, 1], [], []>} : vector<16x16xbf16>, vector<16x32xbf16>, vector<16x32xf32> -> vector<16x32xf32>
    %c0_95 = arith.constant 0 : index
    %c64 = arith.constant 64 : index
    %239 = vector.load %arg20[%c0_95, %c64] : memref<32x288xf32, #tpu.memory_space<vmem>>, vector<16x32xf32>
    tpu.vector_store %arg20[%c0_95, %c64], %238 {strides = array<i32>} : memref<32x288xf32, #tpu.memory_space<vmem>>, vector<16x32xf32>,
    %cst_96 = arith.constant dense<0.000000e+00> : vector<16x32xf32>
    %240 = tpu.matmul %66, %233, %cst_96 {dimension_numbers = #tpu.dot_dimension_numbers<[1], [0], [0], [1], [0, 0, 1, 1], [], []>} : vector<16x16xbf16>, vector<16x32xbf16>, vector<16x32xf32> -> vector<16x32xf32>
    %c0_97 = arith.constant 0 : index
    %c96 = arith.constant 96 : index
    %241 = vector.load %arg20[%c0_97, %c96] : memref<32x288xf32, #tpu.memory_space<vmem>>, vector<16x32xf32>
    tpu.vector_store %arg20[%c0_97, %c96], %240 {strides = array<i32>} : memref<32x288xf32, #tpu.memory_space<vmem>>, vector<16x32xf32>,
    %cst_98 = arith.constant dense<0.000000e+00> : vector<16x32xf32>
    %242 = tpu.matmul %73, %233, %cst_98 {dimension_numbers = #tpu.dot_dimension_numbers<[1], [0], [0], [1], [0, 0, 1, 1], [], []>} : vector<16x16xbf16>, vector<16x32xbf16>, vector<16x32xf32> -> vector<16x32xf32>
    %c0_99 = arith.constant 0 : index
    %c128 = arith.constant 128 : index
    %243 = vector.load %arg20[%c0_99, %c128] : memref<32x288xf32, #tpu.memory_space<vmem>>, vector<16x32xf32>
    tpu.vector_store %arg20[%c0_99, %c128], %242 {strides = array<i32>} : memref<32x288xf32, #tpu.memory_space<vmem>>, vector<16x32xf32>,
    %cst_100 = arith.constant dense<0.000000e+00> : vector<16x32xf32>
    %244 = tpu.matmul %80, %233, %cst_100 {dimension_numbers = #tpu.dot_dimension_numbers<[1], [0], [0], [1], [0, 0, 1, 1], [], []>} : vector<16x16xbf16>, vector<16x32xbf16>, vector<16x32xf32> -> vector<16x32xf32>
    %c0_101 = arith.constant 0 : index
    %c160 = arith.constant 160 : index
    %245 = vector.load %arg20[%c0_101, %c160] : memref<32x288xf32, #tpu.memory_space<vmem>>, vector<16x32xf32>
    tpu.vector_store %arg20[%c0_101, %c160], %244 {strides = array<i32>} : memref<32x288xf32, #tpu.memory_space<vmem>>, vector<16x32xf32>,
    %cst_102 = arith.constant dense<0.000000e+00> : vector<16x32xf32>
    %246 = tpu.matmul %87, %233, %cst_102 {dimension_numbers = #tpu.dot_dimension_numbers<[1], [0], [0], [1], [0, 0, 1, 1], [], []>} : vector<16x16xbf16>, vector<16x32xbf16>, vector<16x32xf32> -> vector<16x32xf32>
    %c0_103 = arith.constant 0 : index
    %c192 = arith.constant 192 : index
    %247 = vector.load %arg20[%c0_103, %c192] : memref<32x288xf32, #tpu.memory_space<vmem>>, vector<16x32xf32>
    tpu.vector_store %arg20[%c0_103, %c192], %246 {strides = array<i32>} : memref<32x288xf32, #tpu.memory_space<vmem>>, vector<16x32xf32>,
    %cst_104 = arith.constant dense<0.000000e+00> : vector<16x32xf32>
    %248 = tpu.matmul %94, %233, %cst_104 {dimension_numbers = #tpu.dot_dimension_numbers<[1], [0], [0], [1], [0, 0, 1, 1], [], []>} : vector<16x16xbf16>, vector<16x32xbf16>, vector<16x32xf32> -> vector<16x32xf32>
    %c0_105 = arith.constant 0 : index
    %c224 = arith.constant 224 : index
    %249 = vector.load %arg20[%c0_105, %c224] : memref<32x288xf32, #tpu.memory_space<vmem>>, vector<16x32xf32>
    tpu.vector_store %arg20[%c0_105, %c224], %248 {strides = array<i32>} : memref<32x288xf32, #tpu.memory_space<vmem>>, vector<16x32xf32>,
    %cst_106 = arith.constant dense<0.000000e+00> : vector<16x32xf32>
    %250 = tpu.matmul %101, %233, %cst_106 {dimension_numbers = #tpu.dot_dimension_numbers<[1], [0], [0], [1], [0, 0, 1, 1], [], []>} : vector<16x16xbf16>, vector<16x32xbf16>, vector<16x32xf32> -> vector<16x32xf32>
    %c0_107 = arith.constant 0 : index
    %c256 = arith.constant 256 : index
    %251 = vector.load %arg20[%c0_107, %c256] : memref<32x288xf32, #tpu.memory_space<vmem>>, vector<16x32xf32>
    tpu.vector_store %arg20[%c0_107, %c256], %250 {strides = array<i32>} : memref<32x288xf32, #tpu.memory_space<vmem>>, vector<16x32xf32>,
    %252 = vector.extract_strided_slice %231 {offsets = [16, 0], sizes = [16, 32], strides = [1, 1]} : vector<32x32xf32> to vector<16x32xf32>
    %253 = arith.truncf %252 : vector<16x32xf32> to vector<16x32xbf16>
    %cst_108 = arith.constant dense<0.000000e+00> : vector<16x32xf32>
    %254 = tpu.matmul %45, %253, %cst_108 {dimension_numbers = #tpu.dot_dimension_numbers<[1], [0], [0], [1], [0, 0, 1, 1], [], []>} : vector<16x16xbf16>, vector<16x32xbf16>, vector<16x32xf32> -> vector<16x32xf32>
    %c16_109 = arith.constant 16 : index
    %c0_110 = arith.constant 0 : index
    %255 = vector.load %arg20[%c16_109, %c0_110] : memref<32x288xf32, #tpu.memory_space<vmem>>, vector<16x32xf32>
    tpu.vector_store %arg20[%c16_109, %c0_110], %254 {strides = array<i32>} : memref<32x288xf32, #tpu.memory_space<vmem>>, vector<16x32xf32>,
    %cst_111 = arith.constant dense<0.000000e+00> : vector<16x32xf32>
    %256 = tpu.matmul %52, %253, %cst_111 {dimension_numbers = #tpu.dot_dimension_numbers<[1], [0], [0], [1], [0, 0, 1, 1], [], []>} : vector<16x16xbf16>, vector<16x32xbf16>, vector<16x32xf32> -> vector<16x32xf32>
    %c16_112 = arith.constant 16 : index
    %c32_113 = arith.constant 32 : index
    %257 = vector.load %arg20[%c16_112, %c32_113] : memref<32x288xf32, #tpu.memory_space<vmem>>, vector<16x32xf32>
    tpu.vector_store %arg20[%c16_112, %c32_113], %256 {strides = array<i32>} : memref<32x288xf32, #tpu.memory_space<vmem>>, vector<16x32xf32>,
    %cst_114 = arith.constant dense<0.000000e+00> : vector<16x32xf32>
    %258 = tpu.matmul %59, %253, %cst_114 {dimension_numbers = #tpu.dot_dimension_numbers<[1], [0], [0], [1], [0, 0, 1, 1], [], []>} : vector<16x16xbf16>, vector<16x32xbf16>, vector<16x32xf32> -> vector<16x32xf32>
    %c16_115 = arith.constant 16 : index
    %c64_116 = arith.constant 64 : index
    %259 = vector.load %arg20[%c16_115, %c64_116] : memref<32x288xf32, #tpu.memory_space<vmem>>, vector<16x32xf32>
    tpu.vector_store %arg20[%c16_115, %c64_116], %258 {strides = array<i32>} : memref<32x288xf32, #tpu.memory_space<vmem>>, vector<16x32xf32>,
    %cst_117 = arith.constant dense<0.000000e+00> : vector<16x32xf32>
    %260 = tpu.matmul %66, %253, %cst_117 {dimension_numbers = #tpu.dot_dimension_numbers<[1], [0], [0], [1], [0, 0, 1, 1], [], []>} : vector<16x16xbf16>, vector<16x32xbf16>, vector<16x32xf32> -> vector<16x32xf32>
    %c16_118 = arith.constant 16 : index
    %c96_119 = arith.constant 96 : index
    %261 = vector.load %arg20[%c16_118, %c96_119] : memref<32x288xf32, #tpu.memory_space<vmem>>, vector<16x32xf32>
    tpu.vector_store %arg20[%c16_118, %c96_119], %260 {strides = array<i32>} : memref<32x288xf32, #tpu.memory_space<vmem>>, vector<16x32xf32>,
    %cst_120 = arith.constant dense<0.000000e+00> : vector<16x32xf32>
    %262 = tpu.matmul %73, %253, %cst_120 {dimension_numbers = #tpu.dot_dimension_numbers<[1], [0], [0], [1], [0, 0, 1, 1], [], []>} : vector<16x16xbf16>, vector<16x32xbf16>, vector<16x32xf32> -> vector<16x32xf32>
    %c16_121 = arith.constant 16 : index
    %c128_122 = arith.constant 128 : index
    %263 = vector.load %arg20[%c16_121, %c128_122] : memref<32x288xf32, #tpu.memory_space<vmem>>, vector<16x32xf32>
    tpu.vector_store %arg20[%c16_121, %c128_122], %262 {strides = array<i32>} : memref<32x288xf32, #tpu.memory_space<vmem>>, vector<16x32xf32>,
    %cst_123 = arith.constant dense<0.000000e+00> : vector<16x32xf32>
    %264 = tpu.matmul %80, %253, %cst_123 {dimension_numbers = #tpu.dot_dimension_numbers<[1], [0], [0], [1], [0, 0, 1, 1], [], []>} : vector<16x16xbf16>, vector<16x32xbf16>, vector<16x32xf32> -> vector<16x32xf32>
    %c16_124 = arith.constant 16 : index
    %c160_125 = arith.constant 160 : index
    %265 = vector.load %arg20[%c16_124, %c160_125] : memref<32x288xf32, #tpu.memory_space<vmem>>, vector<16x32xf32>
    tpu.vector_store %arg20[%c16_124, %c160_125], %264 {strides = array<i32>} : memref<32x288xf32, #tpu.memory_space<vmem>>, vector<16x32xf32>,
    %cst_126 = arith.constant dense<0.000000e+00> : vector<16x32xf32>
    %266 = tpu.matmul %87, %253, %cst_126 {dimension_numbers = #tpu.dot_dimension_numbers<[1], [0], [0], [1], [0, 0, 1, 1], [], []>} : vector<16x16xbf16>, vector<16x32xbf16>, vector<16x32xf32> -> vector<16x32xf32>
    %c16_127 = arith.constant 16 : index
    %c192_128 = arith.constant 192 : index
    %267 = vector.load %arg20[%c16_127, %c192_128] : memref<32x288xf32, #tpu.memory_space<vmem>>, vector<16x32xf32>
    tpu.vector_store %arg20[%c16_127, %c192_128], %266 {strides = array<i32>} : memref<32x288xf32, #tpu.memory_space<vmem>>, vector<16x32xf32>,
    %cst_129 = arith.constant dense<0.000000e+00> : vector<16x32xf32>
    %268 = tpu.matmul %94, %253, %cst_129 {dimension_numbers = #tpu.dot_dimension_numbers<[1], [0], [0], [1], [0, 0, 1, 1], [], []>} : vector<16x16xbf16>, vector<16x32xbf16>, vector<16x32xf32> -> vector<16x32xf32>
    %c16_130 = arith.constant 16 : index
    %c224_131 = arith.constant 224 : index
    %269 = vector.load %arg20[%c16_130, %c224_131] : memref<32x288xf32, #tpu.memory_space<vmem>>, vector<16x32xf32>
    tpu.vector_store %arg20[%c16_130, %c224_131], %268 {strides = array<i32>} : memref<32x288xf32, #tpu.memory_space<vmem>>, vector<16x32xf32>,
    %cst_132 = arith.constant dense<0.000000e+00> : vector<16x32xf32>
    %270 = tpu.matmul %101, %253, %cst_132 {dimension_numbers = #tpu.dot_dimension_numbers<[1], [0], [0], [1], [0, 0, 1, 1], [], []>} : vector<16x16xbf16>, vector<16x32xbf16>, vector<16x32xf32> -> vector<16x32xf32>
    %c16_133 = arith.constant 16 : index
    %c256_134 = arith.constant 256 : index
    %271 = vector.load %arg20[%c16_133, %c256_134] : memref<32x288xf32, #tpu.memory_space<vmem>>, vector<16x32xf32>
    tpu.vector_store %arg20[%c16_133, %c256_134], %270 {strides = array<i32>} : memref<32x288xf32, #tpu.memory_space<vmem>>, vector<16x32xf32>,
    %c0_135 = arith.constant 0 : index
    %c0_136 = arith.constant 0 : index
    %272 = vector.load %arg20[%c0_135, %c0_136] : memref<32x288xf32, #tpu.memory_space<vmem>>, vector<32x288xf32>
    %c0_137 = arith.constant 0 : index
    %c0_138 = arith.constant 0 : index
    %c0_139 = arith.constant 0 : index
    %273 = vector.load %arg12[%c0_137, %c0_138, %c0_139] : memref<2x288x64xbf16, #tpu.memory_space<vmem>>, vector<1x288x64xbf16>
    %274 = vector.shape_cast %273 : vector<1x288x64xbf16> to vector<288x64xbf16>
    %275 = arith.truncf %272 : vector<32x288xf32> to vector<32x288xbf16>
    %cst_140 = arith.constant dense<0.000000e+00> : vector<32x64xf32>
    %276 = tpu.matmul %275, %274, %cst_140 {dimension_numbers = #tpu.dot_dimension_numbers<[1], [0], [0], [1], [0, 0, 1, 1], [], []>} : vector<32x288xbf16>, vector<288x64xbf16>, vector<32x64xf32> -> vector<32x64xf32>
    %c0_141 = arith.constant 0 : index
    %c0_142 = arith.constant 0 : index
    %c0_143 = arith.constant 0 : index
    %277 = vector.load %arg13[%c0_141, %c0_142, %c0_143] : memref<2x1x64xf32, #tpu.memory_space<vmem>>, vector<1x1x64xf32>
    %278 = vector.shape_cast %277 : vector<1x1x64xf32> to vector<1x64xf32>
    %279 = vector.broadcast %278 : vector<1x64xf32> to vector<32x64xf32>
    %280 = arith.addf %276, %279 : vector<32x64xf32>
    %cst_144 = arith.constant 0.000000e+00 : f32
    %281 = vector.broadcast %cst_144 : f32 to vector<32x64xf32>
    %282 = arith.maximumf %280, %281 : vector<32x64xf32>
    %283 = math.absf %280 : vector<32x64xf32>
    %cst_145 = arith.constant 0.000000e+00 : f32
    %284 = vector.broadcast %cst_145 : f32 to vector<32x64xf32>
    %285 = arith.subf %284, %283 : vector<32x64xf32>
    %286 = math.exp %285 : vector<32x64xf32>
    %cst_146 = arith.constant 1.000000e+00 : f32
    %287 = vector.broadcast %cst_146 : f32 to vector<32x64xf32>
    %288 = arith.addf %287, %286 : vector<32x64xf32>
    %289 = math.log %288 : vector<32x64xf32>
    %290 = arith.addf %282, %289 : vector<32x64xf32>
    %291 = math.tanh %290 : vector<32x64xf32>
    %292 = arith.mulf %280, %291 : vector<32x64xf32>
    %c0_147 = arith.constant 0 : index
    %c0_148 = arith.constant 0 : index
    %c0_149 = arith.constant 0 : index
    %293 = vector.load %arg14[%c0_147, %c0_148, %c0_149] : memref<2x64x32xbf16, #tpu.memory_space<vmem>>, vector<1x64x32xbf16>
    %294 = vector.shape_cast %293 : vector<1x64x32xbf16> to vector<64x32xbf16>
    %295 = arith.truncf %292 : vector<32x64xf32> to vector<32x64xbf16>
    %cst_150 = arith.constant dense<0.000000e+00> : vector<32x32xf32>
    %296 = tpu.matmul %295, %294, %cst_150 {dimension_numbers = #tpu.dot_dimension_numbers<[1], [0], [0], [1], [0, 0, 1, 1], [], []>} : vector<32x64xbf16>, vector<64x32xbf16>, vector<32x32xf32> -> vector<32x32xf32>
    %c0_151 = arith.constant 0 : index
    %c0_152 = arith.constant 0 : index
    %c0_153 = arith.constant 0 : index
    %297 = vector.load %arg15[%c0_151, %c0_152, %c0_153] : memref<2x1x32xf32, #tpu.memory_space<vmem>>, vector<1x1x32xf32>
    %298 = vector.shape_cast %297 : vector<1x1x32xf32> to vector<1x32xf32>
    %299 = vector.broadcast %298 : vector<1x32xf32> to vector<32x32xf32>
    %300 = arith.addf %296, %299 : vector<32x32xf32>
    %301 = arith.addf %300, %231 : vector<32x32xf32>
    %302 = vector.extract_strided_slice %36 {offsets = [0, 64], sizes = [32, 32], strides = [1, 1]} : vector<32x256xf32> to vector<32x32xf32>
    %303 = vector.extract_strided_slice %36 {offsets = [0, 96], sizes = [32, 32], strides = [1, 1]} : vector<32x256xf32> to vector<32x32xf32>
    %cst_154 = arith.constant dense<0.000000e+00> : vector<32xf32>
    %304 = vector.multi_reduction <add>, %301, %cst_154 [1] : vector<32x32xf32> to vector<32xf32>
    %305 = vector.shape_cast %304 : vector<32xf32> to vector<32x1xf32>
    %cst_155 = arith.constant 3.200000e+01 : f32
    %306 = vector.broadcast %cst_155 : f32 to vector<32x1xf32>
    %307 = arith.divf %305, %306 : vector<32x1xf32>
    %308 = vector.broadcast %307 : vector<32x1xf32> to vector<32x32xf32>
    %309 = arith.subf %301, %308 : vector<32x32xf32>
    %310 = arith.mulf %309, %309 : vector<32x32xf32>
    %cst_156 = arith.constant dense<0.000000e+00> : vector<32xf32>
    %311 = vector.multi_reduction <add>, %310, %cst_156 [1] : vector<32x32xf32> to vector<32xf32>
    %312 = vector.shape_cast %311 : vector<32xf32> to vector<32x1xf32>
    %cst_157 = arith.constant 3.200000e+01 : f32
    %313 = vector.broadcast %cst_157 : f32 to vector<32x1xf32>
    %314 = arith.divf %312, %313 : vector<32x1xf32>
    %315 = vector.broadcast %307 : vector<32x1xf32> to vector<32x32xf32>
    %316 = arith.subf %301, %315 : vector<32x32xf32>
    %cst_158 = arith.constant 9.99999974E-6 : f32
    %317 = vector.broadcast %cst_158 : f32 to vector<32x1xf32>
    %318 = arith.addf %314, %317 : vector<32x1xf32>
    %319 = math.rsqrt %318 : vector<32x1xf32>
    %320 = vector.broadcast %319 : vector<32x1xf32> to vector<32x32xf32>
    %321 = arith.mulf %316, %320 : vector<32x32xf32>
    %322 = arith.mulf %302, %321 : vector<32x32xf32>
    %323 = arith.addf %322, %303 : vector<32x32xf32>
    %c1 = arith.constant 1 : index
    %c0_159 = arith.constant 0 : index
    %c0_160 = arith.constant 0 : index
    %324 = vector.load %arg8[%c1, %c0_159, %c0_160] : memref<2x32x96xbf16, #tpu.memory_space<vmem>>, vector<1x32x96xbf16>
    %325 = vector.shape_cast %324 : vector<1x32x96xbf16> to vector<32x96xbf16>
    %326 = arith.truncf %323 : vector<32x32xf32> to vector<32x32xbf16>
    %cst_161 = arith.constant dense<0.000000e+00> : vector<32x96xf32>
    %327 = tpu.matmul %326, %325, %cst_161 {dimension_numbers = #tpu.dot_dimension_numbers<[1], [0], [0], [1], [0, 0, 1, 1], [], []>} : vector<32x32xbf16>, vector<32x96xbf16>, vector<32x96xf32> -> vector<32x96xf32>
    %c1_162 = arith.constant 1 : index
    %c0_163 = arith.constant 0 : index
    %c0_164 = arith.constant 0 : index
    %328 = vector.load %arg9[%c1_162, %c0_163, %c0_164] : memref<2x1x96xf32, #tpu.memory_space<vmem>>, vector<1x1x96xf32>
    %329 = vector.shape_cast %328 : vector<1x1x96xf32> to vector<1x96xf32>
    %330 = vector.broadcast %329 : vector<1x96xf32> to vector<32x96xf32>
    %331 = arith.addf %327, %330 : vector<32x96xf32>
    %332 = vector.extract_strided_slice %331 {offsets = [0, 0], sizes = [16, 96], strides = [1, 1]} : vector<32x96xf32> to vector<16x96xf32>
    %333 = vector.extract_strided_slice %332 {offsets = [0, 0], sizes = [16, 16], strides = [1, 1]} : vector<16x96xf32> to vector<16x16xf32>
    %334 = arith.truncf %333 : vector<16x16xf32> to vector<16x16xbf16>
    %335 = vector.extract_strided_slice %332 {offsets = [0, 32], sizes = [16, 16], strides = [1, 1]} : vector<16x96xf32> to vector<16x16xf32>
    %336 = arith.truncf %335 : vector<16x16xf32> to vector<16x16xbf16>
    %337 = vector.extract_strided_slice %332 {offsets = [0, 64], sizes = [16, 16], strides = [1, 1]} : vector<16x96xf32> to vector<16x16xf32>
    %338 = arith.truncf %337 : vector<16x16xf32> to vector<16x16xbf16>
    %cst_165 = arith.constant dense<0.000000e+00> : vector<16x16xf32>
    %339 = tpu.matmul %334, %336, %cst_165 {dimension_numbers = #tpu.dot_dimension_numbers<[1], [1], [0], [0], [0, 0, 1, 0], [], []>} : vector<16x16xbf16>, vector<16x16xbf16>, vector<16x16xf32> -> vector<16x16xf32>
    %cst_166 = arith.constant 2.500000e-01 : f32
    %340 = vector.broadcast %cst_166 : f32 to vector<16x16xf32>
    %341 = arith.mulf %339, %340 : vector<16x16xf32>
    %cst_167 = arith.constant dense<0xFF800000> : vector<16xf32>
    %342 = vector.multi_reduction <maximumf>, %341, %cst_167 [1] : vector<16x16xf32> to vector<16xf32>
    %343 = vector.shape_cast %342 : vector<16xf32> to vector<16x1xf32>
    %344 = vector.broadcast %343 : vector<16x1xf32> to vector<16x16xf32>
    %345 = arith.subf %341, %344 : vector<16x16xf32>
    %346 = math.exp %345 : vector<16x16xf32>
    %cst_168 = arith.constant dense<0.000000e+00> : vector<16xf32>
    %347 = vector.multi_reduction <add>, %346, %cst_168 [1] : vector<16x16xf32> to vector<16xf32>
    %348 = vector.shape_cast %347 : vector<16xf32> to vector<16x1xf32>
    %349 = tpu.reciprocal %348 {approx = true} : vector<16x1xf32> -> vector<16x1xf32>
    %350 = vector.broadcast %349 : vector<16x1xf32> to vector<16x16xf32>
    %351 = arith.mulf %346, %350 : vector<16x16xf32>
    %352 = arith.truncf %351 : vector<16x16xf32> to vector<16x16xbf16>
    %cst_169 = arith.constant dense<0.000000e+00> : vector<16x16xf32>
    %353 = tpu.matmul %352, %338, %cst_169 {dimension_numbers = #tpu.dot_dimension_numbers<[1], [0], [0], [1], [0, 0, 1, 1], [], []>} : vector<16x16xbf16>, vector<16x16xbf16>, vector<16x16xf32> -> vector<16x16xf32>
    %c0_170 = arith.constant 0 : index
    %c0_171 = arith.constant 0 : index
    %354 = vector.load %arg19[%c0_170, %c0_171] : memref<32x32xf32, #tpu.memory_space<vmem>>, vector<16x16xf32>
    tpu.vector_store %arg19[%c0_170, %c0_171], %353 {strides = array<i32>} : memref<32x32xf32, #tpu.memory_space<vmem>>, vector<16x16xf32>,
    %355 = vector.extract_strided_slice %332 {offsets = [0, 16], sizes = [16, 16], strides = [1, 1]} : vector<16x96xf32> to vector<16x16xf32>
    %356 = arith.truncf %355 : vector<16x16xf32> to vector<16x16xbf16>
    %357 = vector.extract_strided_slice %332 {offsets = [0, 48], sizes = [16, 16], strides = [1, 1]} : vector<16x96xf32> to vector<16x16xf32>
    %358 = arith.truncf %357 : vector<16x16xf32> to vector<16x16xbf16>
    %359 = vector.extract_strided_slice %332 {offsets = [0, 80], sizes = [16, 16], strides = [1, 1]} : vector<16x96xf32> to vector<16x16xf32>
    %360 = arith.truncf %359 : vector<16x16xf32> to vector<16x16xbf16>
    %cst_172 = arith.constant dense<0.000000e+00> : vector<16x16xf32>
    %361 = tpu.matmul %356, %358, %cst_172 {dimension_numbers = #tpu.dot_dimension_numbers<[1], [1], [0], [0], [0, 0, 1, 0], [], []>} : vector<16x16xbf16>, vector<16x16xbf16>, vector<16x16xf32> -> vector<16x16xf32>
    %cst_173 = arith.constant 2.500000e-01 : f32
    %362 = vector.broadcast %cst_173 : f32 to vector<16x16xf32>
    %363 = arith.mulf %361, %362 : vector<16x16xf32>
    %cst_174 = arith.constant dense<0xFF800000> : vector<16xf32>
    %364 = vector.multi_reduction <maximumf>, %363, %cst_174 [1] : vector<16x16xf32> to vector<16xf32>
    %365 = vector.shape_cast %364 : vector<16xf32> to vector<16x1xf32>
    %366 = vector.broadcast %365 : vector<16x1xf32> to vector<16x16xf32>
    %367 = arith.subf %363, %366 : vector<16x16xf32>
    %368 = math.exp %367 : vector<16x16xf32>
    %cst_175 = arith.constant dense<0.000000e+00> : vector<16xf32>
    %369 = vector.multi_reduction <add>, %368, %cst_175 [1] : vector<16x16xf32> to vector<16xf32>
    %370 = vector.shape_cast %369 : vector<16xf32> to vector<16x1xf32>
    %371 = tpu.reciprocal %370 {approx = true} : vector<16x1xf32> -> vector<16x1xf32>
    %372 = vector.broadcast %371 : vector<16x1xf32> to vector<16x16xf32>
    %373 = arith.mulf %368, %372 : vector<16x16xf32>
    %374 = arith.truncf %373 : vector<16x16xf32> to vector<16x16xbf16>
    %cst_176 = arith.constant dense<0.000000e+00> : vector<16x16xf32>
    %375 = tpu.matmul %374, %360, %cst_176 {dimension_numbers = #tpu.dot_dimension_numbers<[1], [0], [0], [1], [0, 0, 1, 1], [], []>} : vector<16x16xbf16>, vector<16x16xbf16>, vector<16x16xf32> -> vector<16x16xf32>
    %c0_177 = arith.constant 0 : index
    %c16_178 = arith.constant 16 : index
    %376 = vector.load %arg19[%c0_177, %c16_178] : memref<32x32xf32, #tpu.memory_space<vmem>>, vector<16x16xf32>
    tpu.vector_store %arg19[%c0_177, %c16_178], %375 {strides = array<i32>} : memref<32x32xf32, #tpu.memory_space<vmem>>, vector<16x16xf32>,
    %377 = vector.extract_strided_slice %331 {offsets = [16, 0], sizes = [16, 96], strides = [1, 1]} : vector<32x96xf32> to vector<16x96xf32>
    %378 = vector.extract_strided_slice %377 {offsets = [0, 0], sizes = [16, 16], strides = [1, 1]} : vector<16x96xf32> to vector<16x16xf32>
    %379 = arith.truncf %378 : vector<16x16xf32> to vector<16x16xbf16>
    %380 = vector.extract_strided_slice %377 {offsets = [0, 32], sizes = [16, 16], strides = [1, 1]} : vector<16x96xf32> to vector<16x16xf32>
    %381 = arith.truncf %380 : vector<16x16xf32> to vector<16x16xbf16>
    %382 = vector.extract_strided_slice %377 {offsets = [0, 64], sizes = [16, 16], strides = [1, 1]} : vector<16x96xf32> to vector<16x16xf32>
    %383 = arith.truncf %382 : vector<16x16xf32> to vector<16x16xbf16>
    %cst_179 = arith.constant dense<0.000000e+00> : vector<16x16xf32>
    %384 = tpu.matmul %379, %381, %cst_179 {dimension_numbers = #tpu.dot_dimension_numbers<[1], [1], [0], [0], [0, 0, 1, 0], [], []>} : vector<16x16xbf16>, vector<16x16xbf16>, vector<16x16xf32> -> vector<16x16xf32>
    %cst_180 = arith.constant 2.500000e-01 : f32
    %385 = vector.broadcast %cst_180 : f32 to vector<16x16xf32>
    %386 = arith.mulf %384, %385 : vector<16x16xf32>
    %cst_181 = arith.constant dense<0xFF800000> : vector<16xf32>
    %387 = vector.multi_reduction <maximumf>, %386, %cst_181 [1] : vector<16x16xf32> to vector<16xf32>
    %388 = vector.shape_cast %387 : vector<16xf32> to vector<16x1xf32>
    %389 = vector.broadcast %388 : vector<16x1xf32> to vector<16x16xf32>
    %390 = arith.subf %386, %389 : vector<16x16xf32>
    %391 = math.exp %390 : vector<16x16xf32>
    %cst_182 = arith.constant dense<0.000000e+00> : vector<16xf32>
    %392 = vector.multi_reduction <add>, %391, %cst_182 [1] : vector<16x16xf32> to vector<16xf32>
    %393 = vector.shape_cast %392 : vector<16xf32> to vector<16x1xf32>
    %394 = tpu.reciprocal %393 {approx = true} : vector<16x1xf32> -> vector<16x1xf32>
    %395 = vector.broadcast %394 : vector<16x1xf32> to vector<16x16xf32>
    %396 = arith.mulf %391, %395 : vector<16x16xf32>
    %397 = arith.truncf %396 : vector<16x16xf32> to vector<16x16xbf16>
    %cst_183 = arith.constant dense<0.000000e+00> : vector<16x16xf32>
    %398 = tpu.matmul %397, %383, %cst_183 {dimension_numbers = #tpu.dot_dimension_numbers<[1], [0], [0], [1], [0, 0, 1, 1], [], []>} : vector<16x16xbf16>, vector<16x16xbf16>, vector<16x16xf32> -> vector<16x16xf32>
    %c16_184 = arith.constant 16 : index
    %c0_185 = arith.constant 0 : index
    %399 = vector.load %arg19[%c16_184, %c0_185] : memref<32x32xf32, #tpu.memory_space<vmem>>, vector<16x16xf32>
    tpu.vector_store %arg19[%c16_184, %c0_185], %398 {strides = array<i32>} : memref<32x32xf32, #tpu.memory_space<vmem>>, vector<16x16xf32>,
    %400 = vector.extract_strided_slice %377 {offsets = [0, 16], sizes = [16, 16], strides = [1, 1]} : vector<16x96xf32> to vector<16x16xf32>
    %401 = arith.truncf %400 : vector<16x16xf32> to vector<16x16xbf16>
    %402 = vector.extract_strided_slice %377 {offsets = [0, 48], sizes = [16, 16], strides = [1, 1]} : vector<16x96xf32> to vector<16x16xf32>
    %403 = arith.truncf %402 : vector<16x16xf32> to vector<16x16xbf16>
    %404 = vector.extract_strided_slice %377 {offsets = [0, 80], sizes = [16, 16], strides = [1, 1]} : vector<16x96xf32> to vector<16x16xf32>
    %405 = arith.truncf %404 : vector<16x16xf32> to vector<16x16xbf16>
    %cst_186 = arith.constant dense<0.000000e+00> : vector<16x16xf32>
    %406 = tpu.matmul %401, %403, %cst_186 {dimension_numbers = #tpu.dot_dimension_numbers<[1], [1], [0], [0], [0, 0, 1, 0], [], []>} : vector<16x16xbf16>, vector<16x16xbf16>, vector<16x16xf32> -> vector<16x16xf32>
    %cst_187 = arith.constant 2.500000e-01 : f32
    %407 = vector.broadcast %cst_187 : f32 to vector<16x16xf32>
    %408 = arith.mulf %406, %407 : vector<16x16xf32>
    %cst_188 = arith.constant dense<0xFF800000> : vector<16xf32>
    %409 = vector.multi_reduction <maximumf>, %408, %cst_188 [1] : vector<16x16xf32> to vector<16xf32>
    %410 = vector.shape_cast %409 : vector<16xf32> to vector<16x1xf32>
    %411 = vector.broadcast %410 : vector<16x1xf32> to vector<16x16xf32>
    %412 = arith.subf %408, %411 : vector<16x16xf32>
    %413 = math.exp %412 : vector<16x16xf32>
    %cst_189 = arith.constant dense<0.000000e+00> : vector<16xf32>
    %414 = vector.multi_reduction <add>, %413, %cst_189 [1] : vector<16x16xf32> to vector<16xf32>
    %415 = vector.shape_cast %414 : vector<16xf32> to vector<16x1xf32>
    %416 = tpu.reciprocal %415 {approx = true} : vector<16x1xf32> -> vector<16x1xf32>
    %417 = vector.broadcast %416 : vector<16x1xf32> to vector<16x16xf32>
    %418 = arith.mulf %413, %417 : vector<16x16xf32>
    %419 = arith.truncf %418 : vector<16x16xf32> to vector<16x16xbf16>
    %cst_190 = arith.constant dense<0.000000e+00> : vector<16x16xf32>
    %420 = tpu.matmul %419, %405, %cst_190 {dimension_numbers = #tpu.dot_dimension_numbers<[1], [0], [0], [1], [0, 0, 1, 1], [], []>} : vector<16x16xbf16>, vector<16x16xbf16>, vector<16x16xf32> -> vector<16x16xf32>
    %c16_191 = arith.constant 16 : index
    %c16_192 = arith.constant 16 : index
    %421 = vector.load %arg19[%c16_191, %c16_192] : memref<32x32xf32, #tpu.memory_space<vmem>>, vector<16x16xf32>
    tpu.vector_store %arg19[%c16_191, %c16_192], %420 {strides = array<i32>} : memref<32x32xf32, #tpu.memory_space<vmem>>, vector<16x16xf32>,
    %c0_193 = arith.constant 0 : index
    %c0_194 = arith.constant 0 : index
    %422 = vector.load %arg19[%c0_193, %c0_194] : memref<32x32xf32, #tpu.memory_space<vmem>>, vector<32x32xf32>
    %c1_195 = arith.constant 1 : index
    %c0_196 = arith.constant 0 : index
    %c0_197 = arith.constant 0 : index
    %423 = vector.load %arg10[%c1_195, %c0_196, %c0_197] : memref<2x32x32xbf16, #tpu.memory_space<vmem>>, vector<1x32x32xbf16>
    %424 = vector.shape_cast %423 : vector<1x32x32xbf16> to vector<32x32xbf16>
    %425 = arith.truncf %422 : vector<32x32xf32> to vector<32x32xbf16>
    %cst_198 = arith.constant dense<0.000000e+00> : vector<32x32xf32>
    %426 = tpu.matmul %425, %424, %cst_198 {dimension_numbers = #tpu.dot_dimension_numbers<[1], [0], [0], [1], [0, 0, 1, 1], [], []>} : vector<32x32xbf16>, vector<32x32xbf16>, vector<32x32xf32> -> vector<32x32xf32>
    %c1_199 = arith.constant 1 : index
    %c0_200 = arith.constant 0 : index
    %c0_201 = arith.constant 0 : index
    %427 = vector.load %arg11[%c1_199, %c0_200, %c0_201] : memref<2x1x32xf32, #tpu.memory_space<vmem>>, vector<1x1x32xf32>
    %428 = vector.shape_cast %427 : vector<1x1x32xf32> to vector<1x32xf32>
    %429 = vector.broadcast %428 : vector<1x32xf32> to vector<32x32xf32>
    %430 = arith.addf %426, %429 : vector<32x32xf32>
    %431 = arith.addf %430, %323 : vector<32x32xf32>
    %432 = vector.extract_strided_slice %36 {offsets = [0, 128], sizes = [32, 32], strides = [1, 1]} : vector<32x256xf32> to vector<32x32xf32>
    %433 = vector.extract_strided_slice %36 {offsets = [0, 160], sizes = [32, 32], strides = [1, 1]} : vector<32x256xf32> to vector<32x32xf32>
    %cst_202 = arith.constant dense<0.000000e+00> : vector<32xf32>
    %434 = vector.multi_reduction <add>, %431, %cst_202 [1] : vector<32x32xf32> to vector<32xf32>
    %435 = vector.shape_cast %434 : vector<32xf32> to vector<32x1xf32>
    %cst_203 = arith.constant 3.200000e+01 : f32
    %436 = vector.broadcast %cst_203 : f32 to vector<32x1xf32>
    %437 = arith.divf %435, %436 : vector<32x1xf32>
    %438 = vector.broadcast %437 : vector<32x1xf32> to vector<32x32xf32>
    %439 = arith.subf %431, %438 : vector<32x32xf32>
    %440 = arith.mulf %439, %439 : vector<32x32xf32>
    %cst_204 = arith.constant dense<0.000000e+00> : vector<32xf32>
    %441 = vector.multi_reduction <add>, %440, %cst_204 [1] : vector<32x32xf32> to vector<32xf32>
    %442 = vector.shape_cast %441 : vector<32xf32> to vector<32x1xf32>
    %cst_205 = arith.constant 3.200000e+01 : f32
    %443 = vector.broadcast %cst_205 : f32 to vector<32x1xf32>
    %444 = arith.divf %442, %443 : vector<32x1xf32>
    %445 = vector.broadcast %437 : vector<32x1xf32> to vector<32x32xf32>
    %446 = arith.subf %431, %445 : vector<32x32xf32>
    %cst_206 = arith.constant 9.99999974E-6 : f32
    %447 = vector.broadcast %cst_206 : f32 to vector<32x1xf32>
    %448 = arith.addf %444, %447 : vector<32x1xf32>
    %449 = math.rsqrt %448 : vector<32x1xf32>
    %450 = vector.broadcast %449 : vector<32x1xf32> to vector<32x32xf32>
    %451 = arith.mulf %446, %450 : vector<32x32xf32>
    %452 = arith.mulf %432, %451 : vector<32x32xf32>
    %453 = arith.addf %452, %433 : vector<32x32xf32>
    %454 = vector.extract_strided_slice %453 {offsets = [0, 0], sizes = [16, 32], strides = [1, 1]} : vector<32x32xf32> to vector<16x32xf32>
    %455 = arith.truncf %454 : vector<16x32xf32> to vector<16x32xbf16>
    %cst_207 = arith.constant dense<0.000000e+00> : vector<16x32xf32>
    %456 = tpu.matmul %45, %455, %cst_207 {dimension_numbers = #tpu.dot_dimension_numbers<[1], [0], [0], [1], [0, 0, 1, 1], [], []>} : vector<16x16xbf16>, vector<16x32xbf16>, vector<16x32xf32> -> vector<16x32xf32>
    %c0_208 = arith.constant 0 : index
    %c0_209 = arith.constant 0 : index
    %457 = vector.load %arg20[%c0_208, %c0_209] : memref<32x288xf32, #tpu.memory_space<vmem>>, vector<16x32xf32>
    tpu.vector_store %arg20[%c0_208, %c0_209], %456 {strides = array<i32>} : memref<32x288xf32, #tpu.memory_space<vmem>>, vector<16x32xf32>,
    %cst_210 = arith.constant dense<0.000000e+00> : vector<16x32xf32>
    %458 = tpu.matmul %52, %455, %cst_210 {dimension_numbers = #tpu.dot_dimension_numbers<[1], [0], [0], [1], [0, 0, 1, 1], [], []>} : vector<16x16xbf16>, vector<16x32xbf16>, vector<16x32xf32> -> vector<16x32xf32>
    %c0_211 = arith.constant 0 : index
    %c32_212 = arith.constant 32 : index
    %459 = vector.load %arg20[%c0_211, %c32_212] : memref<32x288xf32, #tpu.memory_space<vmem>>, vector<16x32xf32>
    tpu.vector_store %arg20[%c0_211, %c32_212], %458 {strides = array<i32>} : memref<32x288xf32, #tpu.memory_space<vmem>>, vector<16x32xf32>,
    %cst_213 = arith.constant dense<0.000000e+00> : vector<16x32xf32>
    %460 = tpu.matmul %59, %455, %cst_213 {dimension_numbers = #tpu.dot_dimension_numbers<[1], [0], [0], [1], [0, 0, 1, 1], [], []>} : vector<16x16xbf16>, vector<16x32xbf16>, vector<16x32xf32> -> vector<16x32xf32>
    %c0_214 = arith.constant 0 : index
    %c64_215 = arith.constant 64 : index
    %461 = vector.load %arg20[%c0_214, %c64_215] : memref<32x288xf32, #tpu.memory_space<vmem>>, vector<16x32xf32>
    tpu.vector_store %arg20[%c0_214, %c64_215], %460 {strides = array<i32>} : memref<32x288xf32, #tpu.memory_space<vmem>>, vector<16x32xf32>,
    %cst_216 = arith.constant dense<0.000000e+00> : vector<16x32xf32>
    %462 = tpu.matmul %66, %455, %cst_216 {dimension_numbers = #tpu.dot_dimension_numbers<[1], [0], [0], [1], [0, 0, 1, 1], [], []>} : vector<16x16xbf16>, vector<16x32xbf16>, vector<16x32xf32> -> vector<16x32xf32>
    %c0_217 = arith.constant 0 : index
    %c96_218 = arith.constant 96 : index
    %463 = vector.load %arg20[%c0_217, %c96_218] : memref<32x288xf32, #tpu.memory_space<vmem>>, vector<16x32xf32>
    tpu.vector_store %arg20[%c0_217, %c96_218], %462 {strides = array<i32>} : memref<32x288xf32, #tpu.memory_space<vmem>>, vector<16x32xf32>,
    %cst_219 = arith.constant dense<0.000000e+00> : vector<16x32xf32>
    %464 = tpu.matmul %73, %455, %cst_219 {dimension_numbers = #tpu.dot_dimension_numbers<[1], [0], [0], [1], [0, 0, 1, 1], [], []>} : vector<16x16xbf16>, vector<16x32xbf16>, vector<16x32xf32> -> vector<16x32xf32>
    %c0_220 = arith.constant 0 : index
    %c128_221 = arith.constant 128 : index
    %465 = vector.load %arg20[%c0_220, %c128_221] : memref<32x288xf32, #tpu.memory_space<vmem>>, vector<16x32xf32>
    tpu.vector_store %arg20[%c0_220, %c128_221], %464 {strides = array<i32>} : memref<32x288xf32, #tpu.memory_space<vmem>>, vector<16x32xf32>,
    %cst_222 = arith.constant dense<0.000000e+00> : vector<16x32xf32>
    %466 = tpu.matmul %80, %455, %cst_222 {dimension_numbers = #tpu.dot_dimension_numbers<[1], [0], [0], [1], [0, 0, 1, 1], [], []>} : vector<16x16xbf16>, vector<16x32xbf16>, vector<16x32xf32> -> vector<16x32xf32>
    %c0_223 = arith.constant 0 : index
    %c160_224 = arith.constant 160 : index
    %467 = vector.load %arg20[%c0_223, %c160_224] : memref<32x288xf32, #tpu.memory_space<vmem>>, vector<16x32xf32>
    tpu.vector_store %arg20[%c0_223, %c160_224], %466 {strides = array<i32>} : memref<32x288xf32, #tpu.memory_space<vmem>>, vector<16x32xf32>,
    %cst_225 = arith.constant dense<0.000000e+00> : vector<16x32xf32>
    %468 = tpu.matmul %87, %455, %cst_225 {dimension_numbers = #tpu.dot_dimension_numbers<[1], [0], [0], [1], [0, 0, 1, 1], [], []>} : vector<16x16xbf16>, vector<16x32xbf16>, vector<16x32xf32> -> vector<16x32xf32>
    %c0_226 = arith.constant 0 : index
    %c192_227 = arith.constant 192 : index
    %469 = vector.load %arg20[%c0_226, %c192_227] : memref<32x288xf32, #tpu.memory_space<vmem>>, vector<16x32xf32>
    tpu.vector_store %arg20[%c0_226, %c192_227], %468 {strides = array<i32>} : memref<32x288xf32, #tpu.memory_space<vmem>>, vector<16x32xf32>,
    %cst_228 = arith.constant dense<0.000000e+00> : vector<16x32xf32>
    %470 = tpu.matmul %94, %455, %cst_228 {dimension_numbers = #tpu.dot_dimension_numbers<[1], [0], [0], [1], [0, 0, 1, 1], [], []>} : vector<16x16xbf16>, vector<16x32xbf16>, vector<16x32xf32> -> vector<16x32xf32>
    %c0_229 = arith.constant 0 : index
    %c224_230 = arith.constant 224 : index
    %471 = vector.load %arg20[%c0_229, %c224_230] : memref<32x288xf32, #tpu.memory_space<vmem>>, vector<16x32xf32>
    tpu.vector_store %arg20[%c0_229, %c224_230], %470 {strides = array<i32>} : memref<32x288xf32, #tpu.memory_space<vmem>>, vector<16x32xf32>,
    %cst_231 = arith.constant dense<0.000000e+00> : vector<16x32xf32>
    %472 = tpu.matmul %101, %455, %cst_231 {dimension_numbers = #tpu.dot_dimension_numbers<[1], [0], [0], [1], [0, 0, 1, 1], [], []>} : vector<16x16xbf16>, vector<16x32xbf16>, vector<16x32xf32> -> vector<16x32xf32>
    %c0_232 = arith.constant 0 : index
    %c256_233 = arith.constant 256 : index
    %473 = vector.load %arg20[%c0_232, %c256_233] : memref<32x288xf32, #tpu.memory_space<vmem>>, vector<16x32xf32>
    tpu.vector_store %arg20[%c0_232, %c256_233], %472 {strides = array<i32>} : memref<32x288xf32, #tpu.memory_space<vmem>>, vector<16x32xf32>,
    %474 = vector.extract_strided_slice %453 {offsets = [16, 0], sizes = [16, 32], strides = [1, 1]} : vector<32x32xf32> to vector<16x32xf32>
    %475 = arith.truncf %474 : vector<16x32xf32> to vector<16x32xbf16>
    %cst_234 = arith.constant dense<0.000000e+00> : vector<16x32xf32>
    %476 = tpu.matmul %45, %475, %cst_234 {dimension_numbers = #tpu.dot_dimension_numbers<[1], [0], [0], [1], [0, 0, 1, 1], [], []>} : vector<16x16xbf16>, vector<16x32xbf16>, vector<16x32xf32> -> vector<16x32xf32>
    %c16_235 = arith.constant 16 : index
    %c0_236 = arith.constant 0 : index
    %477 = vector.load %arg20[%c16_235, %c0_236] : memref<32x288xf32, #tpu.memory_space<vmem>>, vector<16x32xf32>
    tpu.vector_store %arg20[%c16_235, %c0_236], %476 {strides = array<i32>} : memref<32x288xf32, #tpu.memory_space<vmem>>, vector<16x32xf32>,
    %cst_237 = arith.constant dense<0.000000e+00> : vector<16x32xf32>
    %478 = tpu.matmul %52, %475, %cst_237 {dimension_numbers = #tpu.dot_dimension_numbers<[1], [0], [0], [1], [0, 0, 1, 1], [], []>} : vector<16x16xbf16>, vector<16x32xbf16>, vector<16x32xf32> -> vector<16x32xf32>
    %c16_238 = arith.constant 16 : index
    %c32_239 = arith.constant 32 : index
    %479 = vector.load %arg20[%c16_238, %c32_239] : memref<32x288xf32, #tpu.memory_space<vmem>>, vector<16x32xf32>
    tpu.vector_store %arg20[%c16_238, %c32_239], %478 {strides = array<i32>} : memref<32x288xf32, #tpu.memory_space<vmem>>, vector<16x32xf32>,
    %cst_240 = arith.constant dense<0.000000e+00> : vector<16x32xf32>
    %480 = tpu.matmul %59, %475, %cst_240 {dimension_numbers = #tpu.dot_dimension_numbers<[1], [0], [0], [1], [0, 0, 1, 1], [], []>} : vector<16x16xbf16>, vector<16x32xbf16>, vector<16x32xf32> -> vector<16x32xf32>
    %c16_241 = arith.constant 16 : index
    %c64_242 = arith.constant 64 : index
    %481 = vector.load %arg20[%c16_241, %c64_242] : memref<32x288xf32, #tpu.memory_space<vmem>>, vector<16x32xf32>
    tpu.vector_store %arg20[%c16_241, %c64_242], %480 {strides = array<i32>} : memref<32x288xf32, #tpu.memory_space<vmem>>, vector<16x32xf32>,
    %cst_243 = arith.constant dense<0.000000e+00> : vector<16x32xf32>
    %482 = tpu.matmul %66, %475, %cst_243 {dimension_numbers = #tpu.dot_dimension_numbers<[1], [0], [0], [1], [0, 0, 1, 1], [], []>} : vector<16x16xbf16>, vector<16x32xbf16>, vector<16x32xf32> -> vector<16x32xf32>
    %c16_244 = arith.constant 16 : index
    %c96_245 = arith.constant 96 : index
    %483 = vector.load %arg20[%c16_244, %c96_245] : memref<32x288xf32, #tpu.memory_space<vmem>>, vector<16x32xf32>
    tpu.vector_store %arg20[%c16_244, %c96_245], %482 {strides = array<i32>} : memref<32x288xf32, #tpu.memory_space<vmem>>, vector<16x32xf32>,
    %cst_246 = arith.constant dense<0.000000e+00> : vector<16x32xf32>
    %484 = tpu.matmul %73, %475, %cst_246 {dimension_numbers = #tpu.dot_dimension_numbers<[1], [0], [0], [1], [0, 0, 1, 1], [], []>} : vector<16x16xbf16>, vector<16x32xbf16>, vector<16x32xf32> -> vector<16x32xf32>
    %c16_247 = arith.constant 16 : index
    %c128_248 = arith.constant 128 : index
    %485 = vector.load %arg20[%c16_247, %c128_248] : memref<32x288xf32, #tpu.memory_space<vmem>>, vector<16x32xf32>
    tpu.vector_store %arg20[%c16_247, %c128_248], %484 {strides = array<i32>} : memref<32x288xf32, #tpu.memory_space<vmem>>, vector<16x32xf32>,
    %cst_249 = arith.constant dense<0.000000e+00> : vector<16x32xf32>
    %486 = tpu.matmul %80, %475, %cst_249 {dimension_numbers = #tpu.dot_dimension_numbers<[1], [0], [0], [1], [0, 0, 1, 1], [], []>} : vector<16x16xbf16>, vector<16x32xbf16>, vector<16x32xf32> -> vector<16x32xf32>
    %c16_250 = arith.constant 16 : index
    %c160_251 = arith.constant 160 : index
    %487 = vector.load %arg20[%c16_250, %c160_251] : memref<32x288xf32, #tpu.memory_space<vmem>>, vector<16x32xf32>
    tpu.vector_store %arg20[%c16_250, %c160_251], %486 {strides = array<i32>} : memref<32x288xf32, #tpu.memory_space<vmem>>, vector<16x32xf32>,
    %cst_252 = arith.constant dense<0.000000e+00> : vector<16x32xf32>
    %488 = tpu.matmul %87, %475, %cst_252 {dimension_numbers = #tpu.dot_dimension_numbers<[1], [0], [0], [1], [0, 0, 1, 1], [], []>} : vector<16x16xbf16>, vector<16x32xbf16>, vector<16x32xf32> -> vector<16x32xf32>
    %c16_253 = arith.constant 16 : index
    %c192_254 = arith.constant 192 : index
    %489 = vector.load %arg20[%c16_253, %c192_254] : memref<32x288xf32, #tpu.memory_space<vmem>>, vector<16x32xf32>
    tpu.vector_store %arg20[%c16_253, %c192_254], %488 {strides = array<i32>} : memref<32x288xf32, #tpu.memory_space<vmem>>, vector<16x32xf32>,
    %cst_255 = arith.constant dense<0.000000e+00> : vector<16x32xf32>
    %490 = tpu.matmul %94, %475, %cst_255 {dimension_numbers = #tpu.dot_dimension_numbers<[1], [0], [0], [1], [0, 0, 1, 1], [], []>} : vector<16x16xbf16>, vector<16x32xbf16>, vector<16x32xf32> -> vector<16x32xf32>
    %c16_256 = arith.constant 16 : index
    %c224_257 = arith.constant 224 : index
    %491 = vector.load %arg20[%c16_256, %c224_257] : memref<32x288xf32, #tpu.memory_space<vmem>>, vector<16x32xf32>
    tpu.vector_store %arg20[%c16_256, %c224_257], %490 {strides = array<i32>} : memref<32x288xf32, #tpu.memory_space<vmem>>, vector<16x32xf32>,
    %cst_258 = arith.constant dense<0.000000e+00> : vector<16x32xf32>
    %492 = tpu.matmul %101, %475, %cst_258 {dimension_numbers = #tpu.dot_dimension_numbers<[1], [0], [0], [1], [0, 0, 1, 1], [], []>} : vector<16x16xbf16>, vector<16x32xbf16>, vector<16x32xf32> -> vector<16x32xf32>
    %c16_259 = arith.constant 16 : index
    %c256_260 = arith.constant 256 : index
    %493 = vector.load %arg20[%c16_259, %c256_260] : memref<32x288xf32, #tpu.memory_space<vmem>>, vector<16x32xf32>
    tpu.vector_store %arg20[%c16_259, %c256_260], %492 {strides = array<i32>} : memref<32x288xf32, #tpu.memory_space<vmem>>, vector<16x32xf32>,
    %c0_261 = arith.constant 0 : index
    %c0_262 = arith.constant 0 : index
    %494 = vector.load %arg20[%c0_261, %c0_262] : memref<32x288xf32, #tpu.memory_space<vmem>>, vector<32x288xf32>
    %c1_263 = arith.constant 1 : index
    %c0_264 = arith.constant 0 : index
    %c0_265 = arith.constant 0 : index
    %495 = vector.load %arg12[%c1_263, %c0_264, %c0_265] : memref<2x288x64xbf16, #tpu.memory_space<vmem>>, vector<1x288x64xbf16>
    %496 = vector.shape_cast %495 : vector<1x288x64xbf16> to vector<288x64xbf16>
    %497 = arith.truncf %494 : vector<32x288xf32> to vector<32x288xbf16>
    %cst_266 = arith.constant dense<0.000000e+00> : vector<32x64xf32>
    %498 = tpu.matmul %497, %496, %cst_266 {dimension_numbers = #tpu.dot_dimension_numbers<[1], [0], [0], [1], [0, 0, 1, 1], [], []>} : vector<32x288xbf16>, vector<288x64xbf16>, vector<32x64xf32> -> vector<32x64xf32>
    %c1_267 = arith.constant 1 : index
    %c0_268 = arith.constant 0 : index
    %c0_269 = arith.constant 0 : index
    %499 = vector.load %arg13[%c1_267, %c0_268, %c0_269] : memref<2x1x64xf32, #tpu.memory_space<vmem>>, vector<1x1x64xf32>
    %500 = vector.shape_cast %499 : vector<1x1x64xf32> to vector<1x64xf32>
    %501 = vector.broadcast %500 : vector<1x64xf32> to vector<32x64xf32>
    %502 = arith.addf %498, %501 : vector<32x64xf32>
    %cst_270 = arith.constant 0.000000e+00 : f32
    %503 = vector.broadcast %cst_270 : f32 to vector<32x64xf32>
    %504 = arith.maximumf %502, %503 : vector<32x64xf32>
    %505 = math.absf %502 : vector<32x64xf32>
    %cst_271 = arith.constant 0.000000e+00 : f32
    %506 = vector.broadcast %cst_271 : f32 to vector<32x64xf32>
    %507 = arith.subf %506, %505 : vector<32x64xf32>
    %508 = math.exp %507 : vector<32x64xf32>
    %cst_272 = arith.constant 1.000000e+00 : f32
    %509 = vector.broadcast %cst_272 : f32 to vector<32x64xf32>
    %510 = arith.addf %509, %508 : vector<32x64xf32>
    %511 = math.log %510 : vector<32x64xf32>
    %512 = arith.addf %504, %511 : vector<32x64xf32>
    %513 = math.tanh %512 : vector<32x64xf32>
    %514 = arith.mulf %502, %513 : vector<32x64xf32>
    %c1_273 = arith.constant 1 : index
    %c0_274 = arith.constant 0 : index
    %c0_275 = arith.constant 0 : index
    %515 = vector.load %arg14[%c1_273, %c0_274, %c0_275] : memref<2x64x32xbf16, #tpu.memory_space<vmem>>, vector<1x64x32xbf16>
    %516 = vector.shape_cast %515 : vector<1x64x32xbf16> to vector<64x32xbf16>
    %517 = arith.truncf %514 : vector<32x64xf32> to vector<32x64xbf16>
    %cst_276 = arith.constant dense<0.000000e+00> : vector<32x32xf32>
    %518 = tpu.matmul %517, %516, %cst_276 {dimension_numbers = #tpu.dot_dimension_numbers<[1], [0], [0], [1], [0, 0, 1, 1], [], []>} : vector<32x64xbf16>, vector<64x32xbf16>, vector<32x32xf32> -> vector<32x32xf32>
    %c1_277 = arith.constant 1 : index
    %c0_278 = arith.constant 0 : index
    %c0_279 = arith.constant 0 : index
    %519 = vector.load %arg15[%c1_277, %c0_278, %c0_279] : memref<2x1x32xf32, #tpu.memory_space<vmem>>, vector<1x1x32xf32>
    %520 = vector.shape_cast %519 : vector<1x1x32xf32> to vector<1x32xf32>
    %521 = vector.broadcast %520 : vector<1x32xf32> to vector<32x32xf32>
    %522 = arith.addf %518, %521 : vector<32x32xf32>
    %523 = arith.addf %522, %453 : vector<32x32xf32>
    %524 = vector.extract_strided_slice %36 {offsets = [0, 192], sizes = [32, 32], strides = [1, 1]} : vector<32x256xf32> to vector<32x32xf32>
    %525 = vector.extract_strided_slice %36 {offsets = [0, 224], sizes = [32, 32], strides = [1, 1]} : vector<32x256xf32> to vector<32x32xf32>
    %cst_280 = arith.constant dense<0.000000e+00> : vector<32xf32>
    %526 = vector.multi_reduction <add>, %523, %cst_280 [1] : vector<32x32xf32> to vector<32xf32>
    %527 = vector.shape_cast %526 : vector<32xf32> to vector<32x1xf32>
    %cst_281 = arith.constant 3.200000e+01 : f32
    %528 = vector.broadcast %cst_281 : f32 to vector<32x1xf32>
    %529 = arith.divf %527, %528 : vector<32x1xf32>
    %530 = vector.broadcast %529 : vector<32x1xf32> to vector<32x32xf32>
    %531 = arith.subf %523, %530 : vector<32x32xf32>
    %532 = arith.mulf %531, %531 : vector<32x32xf32>
    %cst_282 = arith.constant dense<0.000000e+00> : vector<32xf32>
    %533 = vector.multi_reduction <add>, %532, %cst_282 [1] : vector<32x32xf32> to vector<32xf32>
    %534 = vector.shape_cast %533 : vector<32xf32> to vector<32x1xf32>
    %cst_283 = arith.constant 3.200000e+01 : f32
    %535 = vector.broadcast %cst_283 : f32 to vector<32x1xf32>
    %536 = arith.divf %534, %535 : vector<32x1xf32>
    %537 = vector.broadcast %529 : vector<32x1xf32> to vector<32x32xf32>
    %538 = arith.subf %523, %537 : vector<32x32xf32>
    %cst_284 = arith.constant 9.99999974E-6 : f32
    %539 = vector.broadcast %cst_284 : f32 to vector<32x1xf32>
    %540 = arith.addf %536, %539 : vector<32x1xf32>
    %541 = math.rsqrt %540 : vector<32x1xf32>
    %542 = vector.broadcast %541 : vector<32x1xf32> to vector<32x32xf32>
    %543 = arith.mulf %538, %542 : vector<32x32xf32>
    %544 = arith.mulf %524, %543 : vector<32x32xf32>
    %545 = arith.addf %544, %525 : vector<32x32xf32>
    %c0_285 = arith.constant 0 : index
    %c0_286 = arith.constant 0 : index
    %546 = vector.load %arg16[%c0_285, %c0_286] : memref<32x40xbf16, #tpu.memory_space<vmem>>, vector<32x40xbf16>
    %547 = arith.truncf %545 : vector<32x32xf32> to vector<32x32xbf16>
    %cst_287 = arith.constant dense<0.000000e+00> : vector<32x40xf32>
    %548 = tpu.matmul %547, %546, %cst_287 {dimension_numbers = #tpu.dot_dimension_numbers<[1], [0], [0], [1], [0, 0, 1, 1], [], []>} : vector<32x32xbf16>, vector<32x40xbf16>, vector<32x40xf32> -> vector<32x40xf32>
    %c0_288 = arith.constant 0 : index
    %c0_289 = arith.constant 0 : index
    %549 = vector.load %arg17[%c0_288, %c0_289] : memref<1x40xf32, #tpu.memory_space<vmem>>, vector<1x40xf32>
    %550 = vector.broadcast %549 : vector<1x40xf32> to vector<32x40xf32>
    %551 = arith.addf %548, %550 : vector<32x40xf32>
    %c0_290 = arith.constant 0 : index
    %c0_291 = arith.constant 0 : index
    %552 = vector.load %arg18[%c0_290, %c0_291] : memref<32x40xf32, #tpu.memory_space<vmem>>, vector<32x40xf32>
    tpu.vector_store %arg18[%c0_290, %c0_291], %551 {strides = array<i32>} : memref<32x40xf32, #tpu.memory_space<vmem>>, vector<32x40xf32>,
    return
  }
}

</mosaic_0001>

<llo_original>
// kernel: _lambda_.1
$region0: #{_lambda_.1}
  #allocation0 [shape = 'u32[]', space=smem, size = 0x4, offset = 0x4, fixed_abs, tag = 'smem constant byte address 0x4 - core index']
  #allocation1 [shape = 'u32[72,128]{1,0:T(1,128)}', space=vmem, size = 0x9000, scoped, tag = 'internal scratch']
  #allocation2 [shape = 'f32[32,32]{1,0:T(8,128)}', space=vmem, size = 0x4000, scoped, tag = 'scratch operand']
  #allocation3 [shape = 'f32[32,288]{1,0:T(8,128)}', space=vmem, size = 0xc000, scoped, tag = 'scratch operand']
  %s0 = inlined_call_operand.vmem [shape: f32[32,32], index: 0, kind: input, shape index: {}]
  %s1 = inlined_call_operand.vmem [shape: f32[2,16], index: 1, kind: input, shape index: {}]
  %s2 = inlined_call_operand.vmem [shape: bf16[32,16], index: 2, kind: input, shape index: {}]
  %s3 = inlined_call_operand.vmem [shape: f32[1,16], index: 3, kind: input, shape index: {}]
  %s4 = inlined_call_operand.vmem [shape: bf16[16,32], index: 4, kind: input, shape index: {}]
  %s5 = inlined_call_operand.vmem [shape: f32[1,32], index: 5, kind: input, shape index: {}]
  %s6 = inlined_call_operand.vmem [shape: bf16[16,256], index: 6, kind: input, shape index: {}]
  %s7 = inlined_call_operand.vmem [shape: f32[1,256], index: 7, kind: input, shape index: {}]
  %s8 = inlined_call_operand.vmem [shape: bf16[2,32,96], index: 8, kind: input, shape index: {}]
  %s9 = inlined_call_operand.vmem [shape: f32[2,1,96], index: 9, kind: input, shape index: {}]
  %s10 = inlined_call_operand.vmem [shape: bf16[2,32,32], index: 10, kind: input, shape index: {}]
  %s11 = inlined_call_operand.vmem [shape: f32[2,1,32], index: 11, kind: input, shape index: {}]
  %s12 = inlined_call_operand.vmem [shape: bf16[2,288,64], index: 12, kind: input, shape index: {}]
  %s13 = inlined_call_operand.vmem [shape: f32[2,1,64], index: 13, kind: input, shape index: {}]
  %s14 = inlined_call_operand.vmem [shape: bf16[2,64,32], index: 14, kind: input, shape index: {}]
  %s15 = inlined_call_operand.vmem [shape: f32[2,1,32], index: 15, kind: input, shape index: {}]
  %s16 = inlined_call_operand.vmem [shape: bf16[32,40], index: 16, kind: input, shape index: {}]
  %s17 = inlined_call_operand.vmem [shape: f32[1,40], index: 17, kind: input, shape index: {}]
  %s18 = inlined_call_operand.hbm [shape: f32[32,40], index: 18, kind: output, shape index: {}]
  %s19 = sld [smem:[#allocation0]]
  $region82: #{_lambda_.1} parent=0
    _
  %s21 = ssub.s32 1, %s19
  %s22 = scalar_select 0, %s21, %s19
  $region1: #{_lambda_.1} parent=0
    #allocation4 [shape = 'u8[16384]{0}', space=vmem, size = 0x4000, scoped, tag = 'output window, operand 0, single buffered']
    #allocation5 [shape = 's32[1]{0}', space=sflag, size = 0x4, scoped, tag = 'scoped memory for _lambda_.1']
    %23 = vsyncpa [#allocation5], 0
    // Predicated region
    $region2: #{_lambda_.1} parent=1 // pred_check
      _
    $region3: #{_lambda_.1} parent=1 // pred_check_branch
      %25 = sbr.rel (0) target = $region5
    $region4: #{_lambda_.1} parent=1 // pred_region
      _
    $region5: #{_lambda_.1} parent=1 // pred_fallthru
      _
    // Predicated region
    $region6: #{_lambda_.1} parent=1 // pred_check
      _
    $region7: #{_lambda_.1} parent=1 // pred_check_branch
      %27 = sbr.rel (0) target = $region9
    $region8: #{_lambda_.1} parent=1 // pred_region
      _
    $region9: #{_lambda_.1} parent=1 // pred_fallthru
      _
    // Predicated region
    $region10: #{_lambda_.1} parent=1 // pred_check
      _
    $region11: #{_lambda_.1} parent=1 // pred_check_branch
      %29 = sbr.rel (0) target = $region13
    $region12: #{_lambda_.1} parent=1 // pred_region
      _
    $region13: #{_lambda_.1} parent=1 // pred_fallthru
      _
    // Predicated region
    $region14: #{_lambda_.1} parent=1 // pred_check
      _
    $region15: #{_lambda_.1} parent=1 // pred_check_branch
      %31 = sbr.rel (0) target = $region17
    $region16: #{_lambda_.1} parent=1 // pred_region
      _
    $region17: #{_lambda_.1} parent=1 // pred_fallthru
      _
    // Predicated region
    $region18: #{_lambda_.1} parent=1 // pred_check
      _
    $region19: #{_lambda_.1} parent=1 // pred_check_branch
      %33 = sbr.rel (0) target = $region21
    $region20: #{_lambda_.1} parent=1 // pred_region
      _
    $region21: #{_lambda_.1} parent=1 // pred_fallthru
      _
    // Predicated region
    $region22: #{_lambda_.1} parent=1 // pred_check
      _
    $region23: #{_lambda_.1} parent=1 // pred_check_branch
      %35 = sbr.rel (0) target = $region25
    $region24: #{_lambda_.1} parent=1 // pred_region
      _
    $region25: #{_lambda_.1} parent=1 // pred_fallthru
      _
    // Predicated region
    $region26: #{_lambda_.1} parent=1 // pred_check
      _
    $region27: #{_lambda_.1} parent=1 // pred_check_branch
      %37 = sbr.rel (0) target = $region29
    $region28: #{_lambda_.1} parent=1 // pred_region
      _
    $region29: #{_lambda_.1} parent=1 // pred_fallthru
      _
    // Predicated region
    $region30: #{_lambda_.1} parent=1 // pred_check
      _
    $region31: #{_lambda_.1} parent=1 // pred_check_branch
      %39 = sbr.rel (0) target = $region33
    $region32: #{_lambda_.1} parent=1 // pred_region
      _
    $region33: #{_lambda_.1} parent=1 // pred_fallthru
      _
    // Predicated region
    $region34: #{_lambda_.1} parent=1 // pred_check
      _
    $region35: #{_lambda_.1} parent=1 // pred_check_branch
      %41 = sbr.rel (0) target = $region37
    $region36: #{_lambda_.1} parent=1 // pred_region
      _
    $region37: #{_lambda_.1} parent=1 // pred_fallthru
      _
    // Predicated region
    $region38: #{_lambda_.1} parent=1 // pred_check
      _
    $region39: #{_lambda_.1} parent=1 // pred_check_branch
      %43 = sbr.rel (0) target = $region41
    $region40: #{_lambda_.1} parent=1 // pred_region
      _
    $region41: #{_lambda_.1} parent=1 // pred_fallthru
      _
    // Predicated region
    $region42: #{_lambda_.1} parent=1 // pred_check
      _
    $region43: #{_lambda_.1} parent=1 // pred_check_branch
      %45 = sbr.rel (0) target = $region45
    $region44: #{_lambda_.1} parent=1 // pred_region
      _
    $region45: #{_lambda_.1} parent=1 // pred_fallthru
      _
    // Predicated region
    $region46: #{_lambda_.1} parent=1 // pred_check
      _
    $region47: #{_lambda_.1} parent=1 // pred_check_branch
      %47 = sbr.rel (0) target = $region49
    $region48: #{_lambda_.1} parent=1 // pred_region
      _
    $region49: #{_lambda_.1} parent=1 // pred_fallthru
      _
    // Predicated region
    $region50: #{_lambda_.1} parent=1 // pred_check
      _
    $region51: #{_lambda_.1} parent=1 // pred_check_branch
      %49 = sbr.rel (0) target = $region53
    $region52: #{_lambda_.1} parent=1 // pred_region
      _
    $region53: #{_lambda_.1} parent=1 // pred_fallthru
      _
    // Predicated region
    $region54: #{_lambda_.1} parent=1 // pred_check
      _
    $region55: #{_lambda_.1} parent=1 // pred_check_branch
      %51 = sbr.rel (0) target = $region57
    $region56: #{_lambda_.1} parent=1 // pred_region
      _
    $region57: #{_lambda_.1} parent=1 // pred_fallthru
      _
    // Predicated region
    $region58: #{_lambda_.1} parent=1 // pred_check
      _
    $region59: #{_lambda_.1} parent=1 // pred_check_branch
      %53 = sbr.rel (0) target = $region61
    $region60: #{_lambda_.1} parent=1 // pred_region
      _
    $region61: #{_lambda_.1} parent=1 // pred_fallthru
      _
    // Predicated region
    $region62: #{_lambda_.1} parent=1 // pred_check
      _
    $region63: #{_lambda_.1} parent=1 // pred_check_branch
      %55 = sbr.rel (0) target = $region65
    $region64: #{_lambda_.1} parent=1 // pred_region
      _
    $region65: #{_lambda_.1} parent=1 // pred_fallthru
      _
    // Predicated region
    $region66: #{_lambda_.1} parent=1 // pred_check
      _
    $region67: #{_lambda_.1} parent=1 // pred_check_branch
      %57 = sbr.rel (0) target = $region69
    $region68: #{_lambda_.1} parent=1 // pred_region
      _
    $region69: #{_lambda_.1} parent=1 // pred_fallthru
      _
    // Predicated region
    $region70: #{_lambda_.1} parent=1 // pred_check
      _
    $region71: #{_lambda_.1} parent=1 // pred_check_branch
      %59 = sbr.rel (0) target = $region73
    $region72: #{_lambda_.1} parent=1 // pred_region
      _
    $region73: #{_lambda_.1} parent=1 // pred_fallthru
      _
    %v61 = vld [vmem:[%s0] sm:$0xff]
    %v62 = vld [vmem:[%s0 + $0x8] sm:$0xff]
    %v63 = vld [vmem:[%s0 + $0x10] sm:$0xff]
    %v64 = vld [vmem:[%s0 + $0x18] sm:$0xff]
    %v65 = vld [vmem:[%s2] sm:$0xf]
    %v66 = vld [vmem:[%s2 + $0x4] sm:$0xf]
    %v67 = vld [vmem:[%s2 + $0x8] sm:$0xf]
    %v68 = vld [vmem:[%s2 + $0xc] sm:$0xf]
    %v69 = vpack.c.bf16 %v62, %v61
    %v70 = vpack.c.bf16 %v64, %v63
    %v71 = vld [vmem:[%s3] sm:$0x1]
    %v73 = vperm.slane %v71, 0
    %v79 = vunpack.c.l.b16 %v65
    %v80 = vunpack.c.l.b16 %v66
    %v81 = vunpack.c.l.b16 %v67
    %v82 = vunpack.c.l.b16 %v68
    %v83 = vpack.c.b16 %v80, %v79
    %v84 = vpack.c.b16 %v82, %v81
    %vm87 = vcmask 261120
    %v89 = vsel %vm87, %v69, 0
    %v92 = vsel %vm87, %v70, 0
    %94 = vmatpush.bf16.msra.mxu0 0
    %95 = vmatpush.bf16.msra.mxu0 0
    %96 = vmatpush.bf16.msra.mxu0 0
    %97 = vmatpush.bf16.msra.mxu0 0
    %98 = vmatpush.bf16.msra.mxu0 0
    %99 = vmatpush.bf16.msra.mxu0 0
    %100 = vmatpush.bf16.msra.mxu0 %v84
    %101 = vmatpush.bf16.msra.mxu0 %v83
    %102 = vmatmul.bf16.gmra.mxu0 %v89
    %v103 = vpop.f32.mrf.mxu0
    %v104 = vadd.f32 %v73, %v103
    %v105 = vpop.f32.mrf.mxu0
    %v106 = vadd.f32 %v73, %v105
    %107 = vmatmul.bf16.gmra.mxu0 %v92
    %v108 = vpop.f32.mrf.mxu0
    %v109 = vadd.f32 %v73, %v108
    %v110 = vpop.f32.mrf.mxu0
    %v111 = vadd.f32 %v73, %v110
    %112 = vdwg.mxu0
    %v113 = vmax.f32 %v104, 0.0
    %v114 = vmax.f32 %v106, 0.0
    %v115 = vmax.f32 %v109, 0.0
    %v116 = vmax.f32 %v111, 0.0
    %v117 = vld [vmem:[%s4] sm:$0xf]
    %v118 = vld [vmem:[%s4 + $0x4] sm:$0xf]
    %v119 = vpack.c.bf16 %v114, %v113
    %v120 = vpack.c.bf16 %v116, %v115
    %v121 = vld [vmem:[%s5] sm:$0x1]
    %v123 = vperm.slane %v121, 0
    %v127 = vunpack.c.l.b16 %v117
    %v128 = vunpack.c.l.b16 %v118
    %v129 = vpack.c.b16 %v128, %v127
    %vm131 = vcmask 130048
    %v133 = vsel %vm131, %v119, 0
    %v136 = vsel %vm131, %v120, 0
    %138 = vmatpush.bf16.msra.mxu0 0
    %139 = vmatpush.bf16.msra.mxu0 0
    %140 = vmatpush.bf16.msra.mxu0 0
    %141 = vmatpush.bf16.msra.mxu0 0
    %142 = vmatpush.bf16.msra.mxu0 0
    %143 = vmatpush.bf16.msra.mxu0 0
    %144 = vmatpush.bf16.msra.mxu0 0
    %145 = vmatpush.bf16.msra.mxu0 %v129
    %146 = vmatmul.bf16.gmra.mxu0 %v133
    %v147 = vpop.f32.mrf.mxu0
    %v148 = vadd.f32 %v123, %v147
    %v149 = vpop.f32.mrf.mxu0
    %v150 = vadd.f32 %v123, %v149
    %151 = vmatmul.bf16.gmra.mxu0 %v136
    %v152 = vpop.f32.mrf.mxu0
    %v153 = vadd.f32 %v123, %v152
    %v154 = vpop.f32.mrf.mxu0
    %v155 = vadd.f32 %v123, %v154
    %156 = vdwg.mxu0
    %v157 = vld [vmem:[%s1] sm:$0x3]
    %v158 = vld [vmem:[%s6] sm:$0xff]
    %v159 = vld [vmem:[%s6 + $0x8] sm:$0xff]
    %v160 = vpack.c.bf16 %v157, %v157
    %v161 = vld [vmem:[%s7] sm:$0x3]
    %v163 = vperm.slane %v161, 0
    %v164 = vperm.slane %v161, 1
    %v169 = vunpack.c.l.b16 %v158
    %v170 = vunpack.c.h.b16 %v158
    %v171 = vunpack.c.l.b16 %v159
    %v172 = vunpack.c.h.b16 %v159
    %v173 = vpack.c.b16 %v171, %v169
    %v174 = vpack.c.b16 %v172, %v170
    %v178 = vsel %vm131, %v160, 0
    %180 = vmatpush.bf16.msra.mxu0 0
    %181 = vmatpush.bf16.msra.mxu0 0
    %182 = vmatpush.bf16.msra.mxu0 0
    %183 = vmatpush.bf16.msra.mxu0 0
    %184 = vmatpush.bf16.msra.mxu0 0
    %185 = vmatpush.bf16.msra.mxu0 0
    %186 = vmatpush.bf16.msra.mxu0 0
    %187 = vmatpush.bf16.msra.mxu0 %v173
    %188 = vmatmul.bf16.gmra.mxu0 %v178
    %v189 = vpop.f32.mrf.mxu0
    %v190 = vadd.f32 %v163, %v189
    %v191 = vpop.f32.mrf.mxu0
    %192 = vdwg.mxu0
    %193 = vmatpush.bf16.msra.mxu0 0
    %194 = vmatpush.bf16.msra.mxu0 0
    %195 = vmatpush.bf16.msra.mxu0 0
    %196 = vmatpush.bf16.msra.mxu0 0
    %197 = vmatpush.bf16.msra.mxu0 0
    %198 = vmatpush.bf16.msra.mxu0 0
    %199 = vmatpush.bf16.msra.mxu0 0
    %200 = vmatpush.bf16.msra.mxu0 %v174
    %201 = vmatmul.bf16.gmra.mxu0 %v178
    %v202 = vpop.f32.mrf.mxu0
    %v203 = vadd.f32 %v164, %v202
    %v204 = vpop.f32.mrf.mxu0
    %205 = vdwg.mxu0
    %v206 = vlaneseq
    %v207 = vshrl.u32 %v206, 7
    %v208 = vadd.s32 %v207, 8
    %v209 = vadd.s32 %v207, 16
    %v210 = vadd.s32 %v207, 24
    %v211 = vlaneseq
    %v212 = vand.u32 %v211, 127
    %v213 = vmul.u32 %v212, 16
    %vm214 = vcmp.ge.s32.totalorder %v207, %v213
    %vm215 = vcmp.ge.s32.totalorder %v208, %v213
    %vm216 = vcmp.ge.s32.totalorder %v209, %v213
    %vm217 = vcmp.ge.s32.totalorder %v210, %v213
    %v218 = vadd.s32 %v213, 16
    %vm219 = vcmp.lt.s32.totalorder %v207, %v218
    %vm220 = vcmp.lt.s32.totalorder %v208, %v218
    %vm221 = vcmp.lt.s32.totalorder %v209, %v218
    %vm222 = vcmp.lt.s32.totalorder %v210, %v218
    %vm223 = vmand %vm214, %vm219
    %vm224 = vmand %vm215, %vm220
    %vm225 = vmand %vm216, %vm221
    %vm226 = vmand %vm217, %vm222
    %v227 = vsel %vm223, 1.0, 0.0
    %v228 = vsel %vm224, 1.0, 0.0
    %v229 = vsel %vm225, 1.0, 0.0
    %v230 = vsel %vm226, 1.0, 0.0
    %vm231 = vcmask 15360
    %v233 = vsel %vm231, %v227, 0
    %v236 = vsel %vm231, %v228, 0
    %v239 = vsel %vm231, %v229, 0
    %v242 = vsel %vm231, %v230, 0
    %vm244 = vcmask 1041408
    %v246 = vsel %vm244, %v190, 0
    %v249 = vsel %vm244, %v203, 0
    %251 = vmatpush.msra.mxu0 0.0
    %252 = vmatpush.msra.mxu0 0.0
    %253 = vmatpush.msra.mxu0 0.0
    %254 = vmatpush.msra.mxu0 0.0
    %255 = vmatpush.msra.mxu0 0.0
    %256 = vmatpush.msra.mxu0 0.0
    %257 = vmatpush.msra.mxu0 0.0
    %258 = vmatpush.msra.mxu0 0.0
    %259 = vmatpush.msra.mxu0 0.0
    %260 = vmatpush.msra.mxu0 0.0
    %261 = vmatpush.msra.mxu0 0.0
    %262 = vmatpush.msra.mxu0 0.0
    %263 = vmatpush.msra.mxu0 0.0
    %264 = vmatpush.msra.mxu0 0.0
    %265 = vmatpush.msra.mxu0 0.0
    %266 = vmatpush.msra.mxu0 %v246
    %267 = vmatmul.f32.gmra.mxu0 %v233
    %v268 = vpop.f32.mrf.mxu0
    %v269 = vadd.f32 0.0, %v268
    %270 = vmatmul.f32.gmra.mxu0 %v236
    %v271 = vpop.f32.mrf.mxu0
    %v272 = vadd.f32 0.0, %v271
    %273 = vmatmul.f32.gmra.mxu0 %v239
    %v274 = vpop.f32.mrf.mxu0
    %v275 = vadd.f32 0.0, %v274
    %276 = vmatmul.f32.gmra.mxu0 %v242
    %v277 = vpop.f32.mrf.mxu0
    %v278 = vadd.f32 0.0, %v277
    %279 = vdwg.mxu0
    %280 = vmatpush.msra.mxu0 0.0
    %281 = vmatpush.msra.mxu0 0.0
    %282 = vmatpush.msra.mxu0 0.0
    %283 = vmatpush.msra.mxu0 0.0
    %284 = vmatpush.msra.mxu0 0.0
    %285 = vmatpush.msra.mxu0 0.0
    %286 = vmatpush.msra.mxu0 0.0
    %287 = vmatpush.msra.mxu0 0.0
    %288 = vmatpush.msra.mxu0 0.0
    %289 = vmatpush.msra.mxu0 0.0
    %290 = vmatpush.msra.mxu0 0.0
    %291 = vmatpush.msra.mxu0 0.0
    %292 = vmatpush.msra.mxu0 0.0
    %293 = vmatpush.msra.mxu0 0.0
    %294 = vmatpush.msra.mxu0 0.0
    %295 = vmatpush.msra.mxu0 %v249
    %296 = vmatmul.f32.gmra.mxu0 %v233
    %v297 = vpop.f32.mrf.mxu0
    %v298 = vadd.f32 0.0, %v297
    %299 = vmatmul.f32.gmra.mxu0 %v236
    %v300 = vpop.f32.mrf.mxu0
    %v301 = vadd.f32 0.0, %v300
    %302 = vmatmul.f32.gmra.mxu0 %v239
    %v303 = vpop.f32.mrf.mxu0
    %v304 = vadd.f32 0.0, %v303
    %305 = vmatmul.f32.gmra.mxu0 %v242
    %v306 = vpop.f32.mrf.mxu0
    %v307 = vadd.f32 0.0, %v306
    %308 = vdwg.mxu0
    %v309 = vadd.s32 %v207, 4294967292
    %v310 = vadd.s32 %v208, 4294967292
    %vm311 = vcmp.eq.s32.totalorder %v212, %v309
    %vm312 = vcmp.eq.s32.totalorder %v212, %v310
    %v313 = vsel %vm311, 1.0, 0.0
    %v314 = vsel %vm312, 1.0, 0.0
    %v315 = vpack.c.bf16 %v314, %v313
    %v316 = vadd.s32 %v207, 4294967293
    %v317 = vadd.s32 %v208, 4294967293
    %vm318 = vcmp.eq.s32.totalorder %v212, %v316
    %vm319 = vcmp.eq.s32.totalorder %v212, %v317
    %v320 = vsel %vm318, 1.0, 0.0
    %v321 = vsel %vm319, 1.0, 0.0
    %v322 = vpack.c.bf16 %v321, %v320
    %v323 = vadd.s32 %v207, 4294967294
    %v324 = vadd.s32 %v208, 4294967294
    %vm325 = vcmp.eq.s32.totalorder %v212, %v323
    %vm326 = vcmp.eq.s32.totalorder %v212, %v324
    %v327 = vsel %vm325, 1.0, 0.0
    %v328 = vsel %vm326, 1.0, 0.0
    %v329 = vpack.c.bf16 %v328, %v327
    %v330 = vadd.s32 %v207, 4294967295
    %v331 = vadd.s32 %v208, 4294967295
    %vm332 = vcmp.eq.s32.totalorder %v212, %v330
    %vm333 = vcmp.eq.s32.totalorder %v212, %v331
    %v334 = vsel %vm332, 1.0, 0.0
    %v335 = vsel %vm333, 1.0, 0.0
    %v336 = vpack.c.bf16 %v335, %v334
    %vm337 = vcmp.eq.s32.totalorder %v212, %v207
    %vm338 = vcmp.eq.s32.totalorder %v212, %v208
    %v339 = vsel %vm337, 1.0, 0.0
    %v340 = vsel %vm338, 1.0, 0.0
    %v341 = vpack.c.bf16 %v340, %v339
    %v342 = vadd.s32 %v207, 1
    %v343 = vadd.s32 %v208, 1
    %vm344 = vcmp.eq.s32.totalorder %v212, %v342
    %vm345 = vcmp.eq.s32.totalorder %v212, %v343
    %v346 = vsel %vm344, 1.0, 0.0
    %v347 = vsel %vm345, 1.0, 0.0
    %v348 = vpack.c.bf16 %v347, %v346
    %v349 = vadd.s32 %v207, 2
    %v350 = vadd.s32 %v208, 2
    %vm351 = vcmp.eq.s32.totalorder %v212, %v349
    %vm352 = vcmp.eq.s32.totalorder %v212, %v350
    %v353 = vsel %vm351, 1.0, 0.0
    %v354 = vsel %vm352, 1.0, 0.0
    %v355 = vpack.c.bf16 %v354, %v353
    %v356 = vadd.s32 %v207, 3
    %v357 = vadd.s32 %v208, 3
    %vm358 = vcmp.eq.s32.totalorder %v212, %v356
    %vm359 = vcmp.eq.s32.totalorder %v212, %v357
    %v360 = vsel %vm358, 1.0, 0.0
    %v361 = vsel %vm359, 1.0, 0.0
    %v362 = vpack.c.bf16 %v361, %v360
    %v363 = vadd.s32 %v207, 4
    %v364 = vadd.s32 %v208, 4
    %vm365 = vcmp.eq.s32.totalorder %v212, %v363
    %vm366 = vcmp.eq.s32.totalorder %v212, %v364
    %v367 = vsel %vm365, 1.0, 0.0
    %v368 = vsel %vm366, 1.0, 0.0
    %v369 = vpack.c.bf16 %v368, %v367
    %v370 = vld [vmem:[%s8] sm:$0xf]
    %v371 = vld [vmem:[%s8 + $0x4] sm:$0xf]
    %v372 = vld [vmem:[%s8 + $0x8] sm:$0xf]
    %v373 = vld [vmem:[%s8 + $0xc] sm:$0xf]
    %v374 = vpack.c.bf16 %v150, %v148
    %v375 = vpack.c.bf16 %v155, %v153
    %v376 = vld [vmem:[%s9] sm:$0x1]
    %v378 = vperm.slane %v376, 0
    %v384 = vunpack.c.l.b16 %v370
    %v385 = vunpack.c.l.b16 %v371
    %v386 = vunpack.c.l.b16 %v372
    %v387 = vunpack.c.l.b16 %v373
    %v388 = vpack.c.b16 %v385, %v384
    %v389 = vpack.c.b16 %v387, %v386
    %v393 = vsel %vm87, %v374, 0
    %v396 = vsel %vm87, %v375, 0
    %398 = vmatpush.bf16.msra.mxu0 0
    %399 = vmatpush.bf16.msra.mxu0 0
    %400 = vmatpush.bf16.msra.mxu0 0
    %401 = vmatpush.bf16.msra.mxu0 0
    %402 = vmatpush.bf16.msra.mxu0 0
    %403 = vmatpush.bf16.msra.mxu0 0
    %404 = vmatpush.bf16.msra.mxu0 %v389
    %405 = vmatpush.bf16.msra.mxu0 %v388
    %406 = vmatmul.bf16.gmra.mxu0 %v393
    %v407 = vpop.f32.mrf.mxu0
    %v408 = vadd.f32 %v378, %v407
    %v409 = vpop.f32.mrf.mxu0
    %v410 = vadd.f32 %v378, %v409
    %411 = vmatmul.bf16.gmra.mxu0 %v396
    %v412 = vpop.f32.mrf.mxu0
    %v413 = vadd.f32 %v378, %v412
    %v414 = vpop.f32.mrf.mxu0
    %v415 = vadd.f32 %v378, %v414
    %416 = vdwg.mxu0
    %v417 = vpack.c.bf16 %v410, %v408
    %419 = vrot.lane.b32.xlu0 %v417, 96
    %v420 = vpop.permute.xlu0 %419
    %v422 = vsel %vm131, %v417, 0
    %v425 = vsel %vm131, %v420, 0
    %427 = vmatpush.bf16.xpose.msra.mxu0 0
    %428 = vmatpush.bf16.xpose.msra.mxu0 0
    %429 = vmatpush.bf16.xpose.msra.mxu0 0
    %430 = vmatpush.bf16.xpose.msra.mxu0 0
    %431 = vmatpush.bf16.xpose.msra.mxu0 0
    %432 = vmatpush.bf16.xpose.msra.mxu0 0
    %433 = vmatpush.bf16.xpose.msra.mxu0 0
    %434 = vmatpush.bf16.xpose.msra.mxu0 %v425
    %435 = vmatmul.bf16.gmra.mxu0 %v422
    %v436 = vpop.f32.mrf.mxu0
    %v437 = vadd.f32 0.0, %v436
    %v438 = vpop.f32.mrf.mxu0
    %v439 = vadd.f32 0.0, %v438
    %440 = vdwg.mxu0
    %v441 = vmul.f32 %v437, 0.25
    %v442 = vmul.f32 %v439, 0.25
    %v443 = vsel %vm131, %v441, -inf
    %444 = vmax.xlane.f32.xlu0 %v443
    %v445 = vpop.xlane.xlu0 %444
    %v446 = vsel %vm131, %v442, -inf
    %447 = vmax.xlane.f32.xlu0 %v446
    %v448 = vpop.xlane.xlu0 %447
    %v449 = vsub.f32 %v441, %v445
    %v450 = vsub.f32 %v442, %v448
    %v451 = vmul.f32 %v449, 1.442695
    %v452 = vpow.pop %v451
    %v453 = vmul.f32 %v450, 1.442695
    %v454 = vpow.pop %v453
    %v455 = vsel %vm131, %v452, 0.0
    %456 = vadd.xlane.f32.xlu0 %v455
    %v457 = vpop.xlane.xlu0 %456
    %v458 = vsel %vm131, %v454, 0.0
    %459 = vadd.xlane.f32.xlu0 %v458
    %v460 = vpop.xlane.xlu0 %459
    %v461 = vrcp.pop %v457
    %v462 = vrcp.pop %v460
    %v463 = vmul.f32 %v452, %v461
    %v464 = vmul.f32 %v454, %v462
    %v465 = vpack.c.bf16 %v464, %v463
    %466 = vrot.lane.b32.xlu0 %v417, 64
    %v467 = vpop.permute.xlu0 %466
    %v470 = vsel %vm131, %v465, 0
    %472 = vmatpush.bf16.msra.mxu0 0
    %473 = vmatpush.bf16.msra.mxu0 0
    %474 = vmatpush.bf16.msra.mxu0 0
    %475 = vmatpush.bf16.msra.mxu0 0
    %476 = vmatpush.bf16.msra.mxu0 0
    %477 = vmatpush.bf16.msra.mxu0 0
    %478 = vmatpush.bf16.msra.mxu0 0
    %479 = vmatpush.bf16.msra.mxu0 %v467
    %480 = vmatmul.bf16.gmra.mxu0 %v470
    %v481 = vpop.f32.mrf.mxu0
    %v482 = vadd.f32 0.0, %v481
    %v483 = vpop.f32.mrf.mxu0
    %v484 = vadd.f32 0.0, %v483
    %485 = vdwg.mxu0
    %486 = vst.msk [vmem:[#allocation2] sm:$0xff] %vm131, %v482
    %487 = vst.msk [vmem:[#allocation2 + $0x8] sm:$0xff] %vm131, %v484
    %488 = vrot.lane.b32.xlu0 %v417, 112
    %v489 = vpop.permute.xlu0 %488
    %490 = vrot.lane.b32.xlu0 %v417, 80
    %v491 = vpop.permute.xlu0 %490
    %v493 = vsel %vm131, %v489, 0
    %v496 = vsel %vm131, %v491, 0
    %498 = vmatpush.bf16.xpose.msra.mxu0 0
    %499 = vmatpush.bf16.xpose.msra.mxu0 0
    %500 = vmatpush.bf16.xpose.msra.mxu0 0
    %501 = vmatpush.bf16.xpose.msra.mxu0 0
    %502 = vmatpush.bf16.xpose.msra.mxu0 0
    %503 = vmatpush.bf16.xpose.msra.mxu0 0
    %504 = vmatpush.bf16.xpose.msra.mxu0 0
    %505 = vmatpush.bf16.xpose.msra.mxu0 %v496
    %506 = vmatmul.bf16.gmra.mxu0 %v493
    %v507 = vpop.f32.mrf.mxu0
    %v508 = vadd.f32 0.0, %v507
    %v509 = vpop.f32.mrf.mxu0
    %v510 = vadd.f32 0.0, %v509
    %511 = vdwg.mxu0
    %v512 = vmul.f32 %v508, 0.25
    %v513 = vmul.f32 %v510, 0.25
    %v514 = vsel %vm131, %v512, -inf
    %515 = vmax.xlane.f32.xlu0 %v514
    %v516 = vpop.xlane.xlu0 %515
    %v517 = vsel %vm131, %v513, -inf
    %518 = vmax.xlane.f32.xlu0 %v517
    %v519 = vpop.xlane.xlu0 %518
    %v520 = vsub.f32 %v512, %v516
    %v521 = vsub.f32 %v513, %v519
    %v522 = vmul.f32 %v520, 1.442695
    %v523 = vpow.pop %v522
    %v524 = vmul.f32 %v521, 1.442695
    %v525 = vpow.pop %v524
    %v526 = vsel %vm131, %v523, 0.0
    %527 = vadd.xlane.f32.xlu0 %v526
    %v528 = vpop.xlane.xlu0 %527
    %v529 = vsel %vm131, %v525, 0.0
    %530 = vadd.xlane.f32.xlu0 %v529
    %v531 = vpop.xlane.xlu0 %530
    %v532 = vrcp.pop %v528
    %v533 = vrcp.pop %v531
    %v534 = vmul.f32 %v523, %v532
    %v535 = vmul.f32 %v525, %v533
    %v536 = vpack.c.bf16 %v535, %v534
    %537 = vrot.lane.b32.xlu0 %v417, 48
    %v538 = vpop.permute.xlu0 %537
    %v541 = vsel %vm131, %v536, 0
    %543 = vmatpush.bf16.msra.mxu0 0
    %544 = vmatpush.bf16.msra.mxu0 0
    %545 = vmatpush.bf16.msra.mxu0 0
    %546 = vmatpush.bf16.msra.mxu0 0
    %547 = vmatpush.bf16.msra.mxu0 0
    %548 = vmatpush.bf16.msra.mxu0 0
    %549 = vmatpush.bf16.msra.mxu0 0
    %550 = vmatpush.bf16.msra.mxu0 %v538
    %551 = vmatmul.bf16.gmra.mxu0 %v541
    %v552 = vpop.f32.mrf.mxu0
    %v553 = vadd.f32 0.0, %v552
    %v554 = vpop.f32.mrf.mxu0
    %v555 = vadd.f32 0.0, %v554
    %556 = vdwg.mxu0
    %559 = vrot.lane.b32.xlu0 %v553, 16
    %v560 = vpop.permute.xlu0 %559
    %561 = vrot.lane.b32.xlu0 %v555, 16
    %v562 = vpop.permute.xlu0 %561
    %vm565 = vcmask 261248
    %566 = vst.msk [vmem:[#allocation2] sm:$0xff] %vm565, %v560
    %567 = vst.msk [vmem:[#allocation2 + $0x8] sm:$0xff] %vm565, %v562
    %v568 = vpack.c.bf16 %v415, %v413
    %570 = vrot.lane.b32.xlu0 %v568, 96
    %v571 = vpop.permute.xlu0 %570
    %v573 = vsel %vm131, %v568, 0
    %v576 = vsel %vm131, %v571, 0
    %578 = vmatpush.bf16.xpose.msra.mxu0 0
    %579 = vmatpush.bf16.xpose.msra.mxu0 0
    %580 = vmatpush.bf16.xpose.msra.mxu0 0
    %581 = vmatpush.bf16.xpose.msra.mxu0 0
    %582 = vmatpush.bf16.xpose.msra.mxu0 0
    %583 = vmatpush.bf16.xpose.msra.mxu0 0
    %584 = vmatpush.bf16.xpose.msra.mxu0 0
    %585 = vmatpush.bf16.xpose.msra.mxu0 %v576
    %586 = vmatmul.bf16.gmra.mxu0 %v573
    %v587 = vpop.f32.mrf.mxu0
    %v588 = vadd.f32 0.0, %v587
    %v589 = vpop.f32.mrf.mxu0
    %v590 = vadd.f32 0.0, %v589
    %591 = vdwg.mxu0
    %v592 = vmul.f32 %v588, 0.25
    %v593 = vmul.f32 %v590, 0.25
    %v594 = vsel %vm131, %v592, -inf
    %595 = vmax.xlane.f32.xlu0 %v594
    %v596 = vpop.xlane.xlu0 %595
    %v597 = vsel %vm131, %v593, -inf
    %598 = vmax.xlane.f32.xlu0 %v597
    %v599 = vpop.xlane.xlu0 %598
    %v600 = vsub.f32 %v592, %v596
    %v601 = vsub.f32 %v593, %v599
    %v602 = vmul.f32 %v600, 1.442695
    %v603 = vpow.pop %v602
    %v604 = vmul.f32 %v601, 1.442695
    %v605 = vpow.pop %v604
    %v606 = vsel %vm131, %v603, 0.0
    %607 = vadd.xlane.f32.xlu0 %v606
    %v608 = vpop.xlane.xlu0 %607
    %v609 = vsel %vm131, %v605, 0.0
    %610 = vadd.xlane.f32.xlu0 %v609
    %v611 = vpop.xlane.xlu0 %610
    %v612 = vrcp.pop %v608
    %v613 = vrcp.pop %v611
    %v614 = vmul.f32 %v603, %v612
    %v615 = vmul.f32 %v605, %v613
    %v616 = vpack.c.bf16 %v615, %v614
    %617 = vrot.lane.b32.xlu0 %v568, 64
    %v618 = vpop.permute.xlu0 %617
    %v621 = vsel %vm131, %v616, 0
    %623 = vmatpush.bf16.msra.mxu0 0
    %624 = vmatpush.bf16.msra.mxu0 0
    %625 = vmatpush.bf16.msra.mxu0 0
    %626 = vmatpush.bf16.msra.mxu0 0
    %627 = vmatpush.bf16.msra.mxu0 0
    %628 = vmatpush.bf16.msra.mxu0 0
    %629 = vmatpush.bf16.msra.mxu0 0
    %630 = vmatpush.bf16.msra.mxu0 %v618
    %631 = vmatmul.bf16.gmra.mxu0 %v621
    %v632 = vpop.f32.mrf.mxu0
    %v633 = vadd.f32 0.0, %v632
    %v634 = vpop.f32.mrf.mxu0
    %v635 = vadd.f32 0.0, %v634
    %636 = vdwg.mxu0
    %637 = vst.msk [vmem:[#allocation2 + $0x10] sm:$0xff] %vm131, %v633
    %638 = vst.msk [vmem:[#allocation2 + $0x18] sm:$0xff] %vm131, %v635
    %639 = vrot.lane.b32.xlu0 %v568, 112
    %v640 = vpop.permute.xlu0 %639
    %641 = vrot.lane.b32.xlu0 %v568, 80
    %v642 = vpop.permute.xlu0 %641
    %v644 = vsel %vm131, %v640, 0
    %v647 = vsel %vm131, %v642, 0
    %649 = vmatpush.bf16.xpose.msra.mxu0 0
    %650 = vmatpush.bf16.xpose.msra.mxu0 0
    %651 = vmatpush.bf16.xpose.msra.mxu0 0
    %652 = vmatpush.bf16.xpose.msra.mxu0 0
    %653 = vmatpush.bf16.xpose.msra.mxu0 0
    %654 = vmatpush.bf16.xpose.msra.mxu0 0
    %655 = vmatpush.bf16.xpose.msra.mxu0 0
    %656 = vmatpush.bf16.xpose.msra.mxu0 %v647
    %657 = vmatmul.bf16.gmra.mxu0 %v644
    %v658 = vpop.f32.mrf.mxu0
    %v659 = vadd.f32 0.0, %v658
    %v660 = vpop.f32.mrf.mxu0
    %v661 = vadd.f32 0.0, %v660
    %662 = vdwg.mxu0
    %v663 = vmul.f32 %v659, 0.25
    %v664 = vmul.f32 %v661, 0.25
    %v665 = vsel %vm131, %v663, -inf
    %666 = vmax.xlane.f32.xlu0 %v665
    %v667 = vpop.xlane.xlu0 %666
    %v668 = vsel %vm131, %v664, -inf
    %669 = vmax.xlane.f32.xlu0 %v668
    %v670 = vpop.xlane.xlu0 %669
    %v671 = vsub.f32 %v663, %v667
    %v672 = vsub.f32 %v664, %v670
    %v673 = vmul.f32 %v671, 1.442695
    %v674 = vpow.pop %v673
    %v675 = vmul.f32 %v672, 1.442695
    %v676 = vpow.pop %v675
    %v677 = vsel %vm131, %v674, 0.0
    %678 = vadd.xlane.f32.xlu0 %v677
    %v679 = vpop.xlane.xlu0 %678
    %v680 = vsel %vm131, %v676, 0.0
    %681 = vadd.xlane.f32.xlu0 %v680
    %v682 = vpop.xlane.xlu0 %681
    %v683 = vrcp.pop %v679
    %v684 = vrcp.pop %v682
    %v685 = vmul.f32 %v674, %v683
    %v686 = vmul.f32 %v676, %v684
    %v687 = vpack.c.bf16 %v686, %v685
    %688 = vrot.lane.b32.xlu0 %v568, 48
    %v689 = vpop.permute.xlu0 %688
    %v692 = vsel %vm131, %v687, 0
    %694 = vmatpush.bf16.msra.mxu0 0
    %695 = vmatpush.bf16.msra.mxu0 0
    %696 = vmatpush.bf16.msra.mxu0 0
    %697 = vmatpush.bf16.msra.mxu0 0
    %698 = vmatpush.bf16.msra.mxu0 0
    %699 = vmatpush.bf16.msra.mxu0 0
    %700 = vmatpush.bf16.msra.mxu0 0
    %701 = vmatpush.bf16.msra.mxu0 %v689
    %702 = vmatmul.bf16.gmra.mxu0 %v692
    %v703 = vpop.f32.mrf.mxu0
    %v704 = vadd.f32 0.0, %v703
    %v705 = vpop.f32.mrf.mxu0
    %v706 = vadd.f32 0.0, %v705
    %707 = vdwg.mxu0
    %710 = vrot.lane.b32.xlu0 %v704, 16
    %v711 = vpop.permute.xlu0 %710
    %712 = vrot.lane.b32.xlu0 %v706, 16
    %v713 = vpop.permute.xlu0 %712
    %716 = vst.msk [vmem:[#allocation2 + $0x10] sm:$0xff] %vm565, %v711
    %717 = vst.msk [vmem:[#allocation2 + $0x18] sm:$0xff] %vm565, %v713
    %v718 = vld [vmem:[#allocation2] sm:$0xff]
    %v719 = vld [vmem:[#allocation2 + $0x8] sm:$0xff]
    %v720 = vld [vmem:[#allocation2 + $0x10] sm:$0xff]
    %v721 = vld [vmem:[#allocation2 + $0x18] sm:$0xff]
    %v722 = vld [vmem:[%s10] sm:$0xf]
    %v723 = vld [vmem:[%s10 + $0x4] sm:$0xf]
    %v724 = vld [vmem:[%s10 + $0x8] sm:$0xf]
    %v725 = vld [vmem:[%s10 + $0xc] sm:$0xf]
    %v726 = vpack.c.bf16 %v719, %v718
    %v727 = vpack.c.bf16 %v721, %v720
    %v728 = vld [vmem:[%s11] sm:$0x1]
    %v730 = vperm.slane %v728, 0
    %v736 = vunpack.c.l.b16 %v722
    %v737 = vunpack.c.l.b16 %v723
    %v738 = vunpack.c.l.b16 %v724
    %v739 = vunpack.c.l.b16 %v725
    %v740 = vpack.c.b16 %v737, %v736
    %v741 = vpack.c.b16 %v739, %v738
    %v745 = vsel %vm87, %v726, 0
    %v748 = vsel %vm87, %v727, 0
    %750 = vmatpush.bf16.msra.mxu0 0
    %751 = vmatpush.bf16.msra.mxu0 0
    %752 = vmatpush.bf16.msra.mxu0 0
    %753 = vmatpush.bf16.msra.mxu0 0
    %754 = vmatpush.bf16.msra.mxu0 0
    %755 = vmatpush.bf16.msra.mxu0 0
    %756 = vmatpush.bf16.msra.mxu0 %v741
    %757 = vmatpush.bf16.msra.mxu0 %v740
    %758 = vmatmul.bf16.gmra.mxu0 %v745
    %v759 = vpop.f32.mrf.mxu0
    %v760 = vadd.f32 %v730, %v759
    %v761 = vpop.f32.mrf.mxu0
    %v762 = vadd.f32 %v730, %v761
    %763 = vmatmul.bf16.gmra.mxu0 %v748
    %v764 = vpop.f32.mrf.mxu0
    %v765 = vadd.f32 %v730, %v764
    %v766 = vpop.f32.mrf.mxu0
    %v767 = vadd.f32 %v730, %v766
    %768 = vdwg.mxu0
    %v769 = vadd.f32 %v760, %v148
    %v770 = vadd.f32 %v762, %v150
    %v771 = vadd.f32 %v765, %v153
    %v772 = vadd.f32 %v767, %v155
    %v773 = vsel %vm87, %v769, 0.0
    %774 = vadd.xlane.f32.xlu0 %v773
    %v775 = vpop.xlane.xlu0 %774
    %v776 = vsel %vm87, %v770, 0.0
    %777 = vadd.xlane.f32.xlu0 %v776
    %v778 = vpop.xlane.xlu0 %777
    %v779 = vsel %vm87, %v771, 0.0
    %780 = vadd.xlane.f32.xlu0 %v779
    %v781 = vpop.xlane.xlu0 %780
    %v782 = vsel %vm87, %v772, 0.0
    %783 = vadd.xlane.f32.xlu0 %v782
    %v784 = vpop.xlane.xlu0 %783
    %v785 = vrcp.pop 32.0
    %v786 = vmul.f32 32.0, %v785
    %v787 = vsub.f32 1.0, %v786
    %v788 = vmul.f32 %v785, %v787
    %v789 = vadd.f32 %v785, %v788
    %vm790 = vweird.f32 %v785
    %v791 = vsel %vm790, %v785, %v789
    %v792 = vmul.f32 %v775, %v791
    %v793 = vmul.f32 %v778, %v791
    %v794 = vmul.f32 %v781, %v791
    %v795 = vmul.f32 %v784, %v791
    %v796 = vsub.f32 %v769, %v792
    %v797 = vsub.f32 %v770, %v793
    %v798 = vsub.f32 %v771, %v794
    %v799 = vsub.f32 %v772, %v795
    %v800 = vmul.f32 %v796, %v796
    %v801 = vmul.f32 %v797, %v797
    %v802 = vmul.f32 %v798, %v798
    %v803 = vmul.f32 %v799, %v799
    %v804 = vsel %vm87, %v800, 0.0
    %805 = vadd.xlane.f32.xlu0 %v804
    %v806 = vpop.xlane.xlu0 %805
    %v807 = vsel %vm87, %v801, 0.0
    %808 = vadd.xlane.f32.xlu0 %v807
    %v809 = vpop.xlane.xlu0 %808
    %v810 = vsel %vm87, %v802, 0.0
    %811 = vadd.xlane.f32.xlu0 %v810
    %v812 = vpop.xlane.xlu0 %811
    %v813 = vsel %vm87, %v803, 0.0
    %814 = vadd.xlane.f32.xlu0 %v813
    %v815 = vpop.xlane.xlu0 %814
    %v816 = vmul.f32 %v806, %v791
    %v817 = vmul.f32 %v809, %v791
    %v818 = vmul.f32 %v812, %v791
    %v819 = vmul.f32 %v815, %v791
    %v820 = vadd.f32 %v816, 1e-05
    %v821 = vadd.f32 %v817, 1e-05
    %v822 = vadd.f32 %v818, 1e-05
    %v823 = vadd.f32 %v819, 1e-05
    %v824 = vrsqrt.pop %v820
    %v825 = vmul.f32 %v824, %v820
    %v826 = vmul.f32 %v825, %v824
    %v827 = vmul.f32 0.5, %v826
    %v828 = vsub.f32 1.5, %v827
    %v829 = vmul.f32 %v824, %v828
    %vm830 = vweird.f32 %v820
    %vm831 = vweird.f32 %v824
    %vm832 = vmor %vm830, %vm831
    %v833 = vsel %vm832, %v824, %v829
    %v834 = vrsqrt.pop %v821
    %v835 = vmul.f32 %v834, %v821
    %v836 = vmul.f32 %v835, %v834
    %v837 = vmul.f32 0.5, %v836
    %v838 = vsub.f32 1.5, %v837
    %v839 = vmul.f32 %v834, %v838
    %vm840 = vweird.f32 %v821
    %vm841 = vweird.f32 %v834
    %vm842 = vmor %vm840, %vm841
    %v843 = vsel %vm842, %v834, %v839
    %v844 = vrsqrt.pop %v822
    %v845 = vmul.f32 %v844, %v822
    %v846 = vmul.f32 %v845, %v844
    %v847 = vmul.f32 0.5, %v846
    %v848 = vsub.f32 1.5, %v847
    %v849 = vmul.f32 %v844, %v848
    %vm850 = vweird.f32 %v822
    %vm851 = vweird.f32 %v844
    %vm852 = vmor %vm850, %vm851
    %v853 = vsel %vm852, %v844, %v849
    %v854 = vrsqrt.pop %v823
    %v855 = vmul.f32 %v854, %v823
    %v856 = vmul.f32 %v855, %v854
    %v857 = vmul.f32 0.5, %v856
    %v858 = vsub.f32 1.5, %v857
    %v859 = vmul.f32 %v854, %v858
    %vm860 = vweird.f32 %v823
    %vm861 = vweird.f32 %v854
    %vm862 = vmor %vm860, %vm861
    %v863 = vsel %vm862, %v854, %v859
    %v864 = vmul.f32 %v796, %v833
    %v865 = vmul.f32 %v797, %v843
    %v866 = vmul.f32 %v798, %v853
    %v867 = vmul.f32 %v799, %v863
    %v868 = vmul.f32 %v269, %v864
    %v869 = vmul.f32 %v272, %v865
    %v870 = vmul.f32 %v275, %v866
    %v871 = vmul.f32 %v278, %v867
    %876 = vrot.lane.b32.xlu0 %v269, 96
    %v877 = vpop.permute.xlu0 %876
    %878 = vrot.lane.b32.xlu0 %v272, 96
    %v879 = vpop.permute.xlu0 %878
    %880 = vrot.lane.b32.xlu0 %v275, 96
    %v881 = vpop.permute.xlu0 %880
    %882 = vrot.lane.b32.xlu0 %v278, 96
    %v883 = vpop.permute.xlu0 %882
    %v888 = vadd.f32 %v868, %v877
    %v889 = vadd.f32 %v869, %v879
    %v890 = vadd.f32 %v870, %v881
    %v891 = vadd.f32 %v871, %v883
    %v892 = vpack.c.bf16 %v889, %v888
    %v894 = vsel %vm131, %v315, 0
    %896 = vmatpush.bf16.msra.mxu0 0
    %897 = vmatpush.bf16.msra.mxu0 0
    %898 = vmatpush.bf16.msra.mxu0 0
    %899 = vmatpush.bf16.msra.mxu0 0
    %900 = vmatpush.bf16.msra.mxu0 0
    %901 = vmatpush.bf16.msra.mxu0 0
    %902 = vmatpush.bf16.msra.mxu0 0
    %903 = vmatpush.bf16.msra.mxu0 %v892
    %904 = vmatmul.bf16.gmra.mxu0 %v894
    %v905 = vpop.f32.mrf.mxu0
    %v906 = vadd.f32 0.0, %v905
    %v907 = vpop.f32.mrf.mxu0
    %v908 = vadd.f32 0.0, %v907
    %909 = vdwg.mxu0
    %910 = vst.msk [vmem:[#allocation3] sm:$0xff] %vm87, %v906
    %911 = vst.msk [vmem:[#allocation3 + $0x18] sm:$0xff] %vm87, %v908
    %v913 = vsel %vm131, %v322, 0
    %915 = vmatpush.bf16.msra.mxu0 0
    %916 = vmatpush.bf16.msra.mxu0 0
    %917 = vmatpush.bf16.msra.mxu0 0
    %918 = vmatpush.bf16.msra.mxu0 0
    %919 = vmatpush.bf16.msra.mxu0 0
    %920 = vmatpush.bf16.msra.mxu0 0
    %921 = vmatpush.bf16.msra.mxu0 0
    %922 = vmatpush.bf16.msra.mxu0 %v892
    %923 = vmatmul.bf16.gmra.mxu0 %v913
    %v924 = vpop.f32.mrf.mxu0
    %v925 = vadd.f32 0.0, %v924
    %v926 = vpop.f32.mrf.mxu0
    %v927 = vadd.f32 0.0, %v926
    %928 = vdwg.mxu0
    %931 = vrot.lane.b32.xlu0 %v925, 32
    %v932 = vpop.permute.xlu0 %931
    %933 = vrot.lane.b32.xlu0 %v927, 32
    %v934 = vpop.permute.xlu0 %933
    %vm937 = vcmask 523520
    %938 = vst.msk [vmem:[#allocation3] sm:$0xff] %vm937, %v932
    %939 = vst.msk [vmem:[#allocation3 + $0x18] sm:$0xff] %vm937, %v934
    %v941 = vsel %vm131, %v329, 0
    %943 = vmatpush.bf16.msra.mxu0 0
    %944 = vmatpush.bf16.msra.mxu0 0
    %945 = vmatpush.bf16.msra.mxu0 0
    %946 = vmatpush.bf16.msra.mxu0 0
    %947 = vmatpush.bf16.msra.mxu0 0
    %948 = vmatpush.bf16.msra.mxu0 0
    %949 = vmatpush.bf16.msra.mxu0 0
    %950 = vmatpush.bf16.msra.mxu0 %v892
    %951 = vmatmul.bf16.gmra.mxu0 %v941
    %v952 = vpop.f32.mrf.mxu0
    %v953 = vadd.f32 0.0, %v952
    %v954 = vpop.f32.mrf.mxu0
    %v955 = vadd.f32 0.0, %v954
    %956 = vdwg.mxu0
    %959 = vrot.lane.b32.xlu0 %v953, 64
    %v960 = vpop.permute.xlu0 %959
    %961 = vrot.lane.b32.xlu0 %v955, 64
    %v962 = vpop.permute.xlu0 %961
    %vm965 = vcmask 785920
    %966 = vst.msk [vmem:[#allocation3] sm:$0xff] %vm965, %v960
    %967 = vst.msk [vmem:[#allocation3 + $0x18] sm:$0xff] %vm965, %v962
    %v969 = vsel %vm131, %v336, 0
    %971 = vmatpush.bf16.msra.mxu0 0
    %972 = vmatpush.bf16.msra.mxu0 0
    %973 = vmatpush.bf16.msra.mxu0 0
    %974 = vmatpush.bf16.msra.mxu0 0
    %975 = vmatpush.bf16.msra.mxu0 0
    %976 = vmatpush.bf16.msra.mxu0 0
    %977 = vmatpush.bf16.msra.mxu0 0
    %978 = vmatpush.bf16.msra.mxu0 %v892
    %979 = vmatmul.bf16.gmra.mxu0 %v969
    %v980 = vpop.f32.mrf.mxu0
    %v981 = vadd.f32 0.0, %v980
    %v982 = vpop.f32.mrf.mxu0
    %v983 = vadd.f32 0.0, %v982
    %984 = vdwg.mxu0
    %987 = vrot.lane.b32.xlu0 %v981, 96
    %v988 = vpop.permute.xlu0 %987
    %989 = vrot.lane.b32.xlu0 %v983, 96
    %v990 = vpop.permute.xlu0 %989
    %vm993 = vcmask 1048320
    %994 = vst.msk [vmem:[#allocation3] sm:$0xff] %vm993, %v988
    %995 = vst.msk [vmem:[#allocation3 + $0x18] sm:$0xff] %vm993, %v990
    %v997 = vsel %vm131, %v341, 0
    %999 = vmatpush.bf16.msra.mxu0 0
    %1000 = vmatpush.bf16.msra.mxu0 0
    %1001 = vmatpush.bf16.msra.mxu0 0
    %1002 = vmatpush.bf16.msra.mxu0 0
    %1003 = vmatpush.bf16.msra.mxu0 0
    %1004 = vmatpush.bf16.msra.mxu0 0
    %1005 = vmatpush.bf16.msra.mxu0 0
    %1006 = vmatpush.bf16.msra.mxu0 %v892
    %1007 = vmatmul.bf16.gmra.mxu0 %v997
    %v1008 = vpop.f32.mrf.mxu0
    %v1009 = vadd.f32 0.0, %v1008
    %v1010 = vpop.f32.mrf.mxu0
    %v1011 = vadd.f32 0.0, %v1010
    %1012 = vdwg.mxu0
    %1013 = vst.msk [vmem:[#allocation3 + $0x8] sm:$0xff] %vm87, %v1009
    %1014 = vst.msk [vmem:[#allocation3 + $0x20] sm:$0xff] %vm87, %v1011
    %v1016 = vsel %vm131, %v348, 0
    %1018 = vmatpush.bf16.msra.mxu0 0
    %1019 = vmatpush.bf16.msra.mxu0 0
    %1020 = vmatpush.bf16.msra.mxu0 0
    %1021 = vmatpush.bf16.msra.mxu0 0
    %1022 = vmatpush.bf16.msra.mxu0 0
    %1023 = vmatpush.bf16.msra.mxu0 0
    %1024 = vmatpush.bf16.msra.mxu0 0
    %1025 = vmatpush.bf16.msra.mxu0 %v892
    %1026 = vmatmul.bf16.gmra.mxu0 %v1016
    %v1027 = vpop.f32.mrf.mxu0
    %v1028 = vadd.f32 0.0, %v1027
    %v1029 = vpop.f32.mrf.mxu0
    %v1030 = vadd.f32 0.0, %v1029
    %1031 = vdwg.mxu0
    %1034 = vrot.lane.b32.xlu0 %v1028, 32
    %v1035 = vpop.permute.xlu0 %1034
    %1036 = vrot.lane.b32.xlu0 %v1030, 32
    %v1037 = vpop.permute.xlu0 %1036
    %1040 = vst.msk [vmem:[#allocation3 + $0x8] sm:$0xff] %vm937, %v1035
    %1041 = vst.msk [vmem:[#allocation3 + $0x20] sm:$0xff] %vm937, %v1037
    %v1043 = vsel %vm131, %v355, 0
    %1045 = vmatpush.bf16.msra.mxu0 0
    %1046 = vmatpush.bf16.msra.mxu0 0
    %1047 = vmatpush.bf16.msra.mxu0 0
    %1048 = vmatpush.bf16.msra.mxu0 0
    %1049 = vmatpush.bf16.msra.mxu0 0
    %1050 = vmatpush.bf16.msra.mxu0 0
    %1051 = vmatpush.bf16.msra.mxu0 0
    %1052 = vmatpush.bf16.msra.mxu0 %v892
    %1053 = vmatmul.bf16.gmra.mxu0 %v1043
    %v1054 = vpop.f32.mrf.mxu0
    %v1055 = vadd.f32 0.0, %v1054
    %v1056 = vpop.f32.mrf.mxu0
    %v1057 = vadd.f32 0.0, %v1056
    %1058 = vdwg.mxu0
    %1061 = vrot.lane.b32.xlu0 %v1055, 64
    %v1062 = vpop.permute.xlu0 %1061
    %1063 = vrot.lane.b32.xlu0 %v1057, 64
    %v1064 = vpop.permute.xlu0 %1063
    %1067 = vst.msk [vmem:[#allocation3 + $0x8] sm:$0xff] %vm965, %v1062
    %1068 = vst.msk [vmem:[#allocation3 + $0x20] sm:$0xff] %vm965, %v1064
    %v1070 = vsel %vm131, %v362, 0
    %1072 = vmatpush.bf16.msra.mxu0 0
    %1073 = vmatpush.bf16.msra.mxu0 0
    %1074 = vmatpush.bf16.msra.mxu0 0
    %1075 = vmatpush.bf16.msra.mxu0 0
    %1076 = vmatpush.bf16.msra.mxu0 0
    %1077 = vmatpush.bf16.msra.mxu0 0
    %1078 = vmatpush.bf16.msra.mxu0 0
    %1079 = vmatpush.bf16.msra.mxu0 %v892
    %1080 = vmatmul.bf16.gmra.mxu0 %v1070
    %v1081 = vpop.f32.mrf.mxu0
    %v1082 = vadd.f32 0.0, %v1081
    %v1083 = vpop.f32.mrf.mxu0
    %v1084 = vadd.f32 0.0, %v1083
    %1085 = vdwg.mxu0
    %1088 = vrot.lane.b32.xlu0 %v1082, 96
    %v1089 = vpop.permute.xlu0 %1088
    %1090 = vrot.lane.b32.xlu0 %v1084, 96
    %v1091 = vpop.permute.xlu0 %1090
    %1094 = vst.msk [vmem:[#allocation3 + $0x8] sm:$0xff] %vm993, %v1089
    %1095 = vst.msk [vmem:[#allocation3 + $0x20] sm:$0xff] %vm993, %v1091
    %v1097 = vsel %vm131, %v369, 0
    %1099 = vmatpush.bf16.msra.mxu0 0
    %1100 = vmatpush.bf16.msra.mxu0 0
    %1101 = vmatpush.bf16.msra.mxu0 0
    %1102 = vmatpush.bf16.msra.mxu0 0
    %1103 = vmatpush.bf16.msra.mxu0 0
    %1104 = vmatpush.bf16.msra.mxu0 0
    %1105 = vmatpush.bf16.msra.mxu0 0
    %1106 = vmatpush.bf16.msra.mxu0 %v892
    %1107 = vmatmul.bf16.gmra.mxu0 %v1097
    %v1108 = vpop.f32.mrf.mxu0
    %v1109 = vadd.f32 0.0, %v1108
    %v1110 = vpop.f32.mrf.mxu0
    %v1111 = vadd.f32 0.0, %v1110
    %1112 = vdwg.mxu0
    %1113 = vst.msk [vmem:[#allocation3 + $0x10] sm:$0xff] %vm87, %v1109
    %1114 = vst.msk [vmem:[#allocation3 + $0x28] sm:$0xff] %vm87, %v1111
    %v1115 = vpack.c.bf16 %v891, %v890
    %1116 = vmatpush.bf16.msra.mxu0 0
    %1117 = vmatpush.bf16.msra.mxu0 0
    %1118 = vmatpush.bf16.msra.mxu0 0
    %1119 = vmatpush.bf16.msra.mxu0 0
    %1120 = vmatpush.bf16.msra.mxu0 0
    %1121 = vmatpush.bf16.msra.mxu0 0
    %1122 = vmatpush.bf16.msra.mxu0 0
    %1123 = vmatpush.bf16.msra.mxu0 %v1115
    %1124 = vmatmul.bf16.gmra.mxu0 %v894
    %v1125 = vpop.f32.mrf.mxu0
    %v1126 = vadd.f32 0.0, %v1125
    %v1127 = vpop.f32.mrf.mxu0
    %v1128 = vadd.f32 0.0, %v1127
    %1129 = vdwg.mxu0
    %1130 = vst.msk [vmem:[#allocation3 + $0x30] sm:$0xff] %vm87, %v1126
    %1131 = vst.msk [vmem:[#allocation3 + $0x48] sm:$0xff] %vm87, %v1128
    %1132 = vmatpush.bf16.msra.mxu0 0
    %1133 = vmatpush.bf16.msra.mxu0 0
    %1134 = vmatpush.bf16.msra.mxu0 0
    %1135 = vmatpush.bf16.msra.mxu0 0
    %1136 = vmatpush.bf16.msra.mxu0 0
    %1137 = vmatpush.bf16.msra.mxu0 0
    %1138 = vmatpush.bf16.msra.mxu0 0
    %1139 = vmatpush.bf16.msra.mxu0 %v1115
    %1140 = vmatmul.bf16.gmra.mxu0 %v913
    %v1141 = vpop.f32.mrf.mxu0
    %v1142 = vadd.f32 0.0, %v1141
    %v1143 = vpop.f32.mrf.mxu0
    %v1144 = vadd.f32 0.0, %v1143
    %1145 = vdwg.mxu0
    %1148 = vrot.lane.b32.xlu0 %v1142, 32
    %v1149 = vpop.permute.xlu0 %1148
    %1150 = vrot.lane.b32.xlu0 %v1144, 32
    %v1151 = vpop.permute.xlu0 %1150
    %1154 = vst.msk [vmem:[#allocation3 + $0x30] sm:$0xff] %vm937, %v1149
    %1155 = vst.msk [vmem:[#allocation3 + $0x48] sm:$0xff] %vm937, %v1151
    %1156 = vmatpush.bf16.msra.mxu0 0
    %1157 = vmatpush.bf16.msra.mxu0 0
    %1158 = vmatpush.bf16.msra.mxu0 0
    %1159 = vmatpush.bf16.msra.mxu0 0
    %1160 = vmatpush.bf16.msra.mxu0 0
    %1161 = vmatpush.bf16.msra.mxu0 0
    %1162 = vmatpush.bf16.msra.mxu0 0
    %1163 = vmatpush.bf16.msra.mxu0 %v1115
    %1164 = vmatmul.bf16.gmra.mxu0 %v941
    %v1165 = vpop.f32.mrf.mxu0
    %v1166 = vadd.f32 0.0, %v1165
    %v1167 = vpop.f32.mrf.mxu0
    %v1168 = vadd.f32 0.0, %v1167
    %1169 = vdwg.mxu0
    %1172 = vrot.lane.b32.xlu0 %v1166, 64
    %v1173 = vpop.permute.xlu0 %1172
    %1174 = vrot.lane.b32.xlu0 %v1168, 64
    %v1175 = vpop.permute.xlu0 %1174
    %1178 = vst.msk [vmem:[#allocation3 + $0x30] sm:$0xff] %vm965, %v1173
    %1179 = vst.msk [vmem:[#allocation3 + $0x48] sm:$0xff] %vm965, %v1175
    %1180 = vmatpush.bf16.msra.mxu0 0
    %1181 = vmatpush.bf16.msra.mxu0 0
    %1182 = vmatpush.bf16.msra.mxu0 0
    %1183 = vmatpush.bf16.msra.mxu0 0
    %1184 = vmatpush.bf16.msra.mxu0 0
    %1185 = vmatpush.bf16.msra.mxu0 0
    %1186 = vmatpush.bf16.msra.mxu0 0
    %1187 = vmatpush.bf16.msra.mxu0 %v1115
    %1188 = vmatmul.bf16.gmra.mxu0 %v969
    %v1189 = vpop.f32.mrf.mxu0
    %v1190 = vadd.f32 0.0, %v1189
    %v1191 = vpop.f32.mrf.mxu0
    %v1192 = vadd.f32 0.0, %v1191
    %1193 = vdwg.mxu0
    %1196 = vrot.lane.b32.xlu0 %v1190, 96
    %v1197 = vpop.permute.xlu0 %1196
    %1198 = vrot.lane.b32.xlu0 %v1192, 96
    %v1199 = vpop.permute.xlu0 %1198
    %1202 = vst.msk [vmem:[#allocation3 + $0x30] sm:$0xff] %vm993, %v1197
    %1203 = vst.msk [vmem:[#allocation3 + $0x48] sm:$0xff] %vm993, %v1199
    %1204 = vmatpush.bf16.msra.mxu0 0
    %1205 = vmatpush.bf16.msra.mxu0 0
    %1206 = vmatpush.bf16.msra.mxu0 0
    %1207 = vmatpush.bf16.msra.mxu0 0
    %1208 = vmatpush.bf16.msra.mxu0 0
    %1209 = vmatpush.bf16.msra.mxu0 0
    %1210 = vmatpush.bf16.msra.mxu0 0
    %1211 = vmatpush.bf16.msra.mxu0 %v1115
    %1212 = vmatmul.bf16.gmra.mxu0 %v997
    %v1213 = vpop.f32.mrf.mxu0
    %v1214 = vadd.f32 0.0, %v1213
    %v1215 = vpop.f32.mrf.mxu0
    %v1216 = vadd.f32 0.0, %v1215
    %1217 = vdwg.mxu0
    %1218 = vst.msk [vmem:[#allocation3 + $0x38] sm:$0xff] %vm87, %v1214
    %1219 = vst.msk [vmem:[#allocation3 + $0x50] sm:$0xff] %vm87, %v1216
    %1220 = vmatpush.bf16.msra.mxu0 0
    %1221 = vmatpush.bf16.msra.mxu0 0
    %1222 = vmatpush.bf16.msra.mxu0 0
    %1223 = vmatpush.bf16.msra.mxu0 0
    %1224 = vmatpush.bf16.msra.mxu0 0
    %1225 = vmatpush.bf16.msra.mxu0 0
    %1226 = vmatpush.bf16.msra.mxu0 0
    %1227 = vmatpush.bf16.msra.mxu0 %v1115
    %1228 = vmatmul.bf16.gmra.mxu0 %v1016
    %v1229 = vpop.f32.mrf.mxu0
    %v1230 = vadd.f32 0.0, %v1229
    %v1231 = vpop.f32.mrf.mxu0
    %v1232 = vadd.f32 0.0, %v1231
    %1233 = vdwg.mxu0
    %1236 = vrot.lane.b32.xlu0 %v1230, 32
    %v1237 = vpop.permute.xlu0 %1236
    %1238 = vrot.lane.b32.xlu0 %v1232, 32
    %v1239 = vpop.permute.xlu0 %1238
    %1242 = vst.msk [vmem:[#allocation3 + $0x38] sm:$0xff] %vm937, %v1237
    %1243 = vst.msk [vmem:[#allocation3 + $0x50] sm:$0xff] %vm937, %v1239
    %1244 = vmatpush.bf16.msra.mxu0 0
    %1245 = vmatpush.bf16.msra.mxu0 0
    %1246 = vmatpush.bf16.msra.mxu0 0
    %1247 = vmatpush.bf16.msra.mxu0 0
    %1248 = vmatpush.bf16.msra.mxu0 0
    %1249 = vmatpush.bf16.msra.mxu0 0
    %1250 = vmatpush.bf16.msra.mxu0 0
    %1251 = vmatpush.bf16.msra.mxu0 %v1115
    %1252 = vmatmul.bf16.gmra.mxu0 %v1043
    %v1253 = vpop.f32.mrf.mxu0
    %v1254 = vadd.f32 0.0, %v1253
    %v1255 = vpop.f32.mrf.mxu0
    %v1256 = vadd.f32 0.0, %v1255
    %1257 = vdwg.mxu0
    %1260 = vrot.lane.b32.xlu0 %v1254, 64
    %v1261 = vpop.permute.xlu0 %1260
    %1262 = vrot.lane.b32.xlu0 %v1256, 64
    %v1263 = vpop.permute.xlu0 %1262
    %1266 = vst.msk [vmem:[#allocation3 + $0x38] sm:$0xff] %vm965, %v1261
    %1267 = vst.msk [vmem:[#allocation3 + $0x50] sm:$0xff] %vm965, %v1263
    %1268 = vmatpush.bf16.msra.mxu0 0
    %1269 = vmatpush.bf16.msra.mxu0 0
    %1270 = vmatpush.bf16.msra.mxu0 0
    %1271 = vmatpush.bf16.msra.mxu0 0
    %1272 = vmatpush.bf16.msra.mxu0 0
    %1273 = vmatpush.bf16.msra.mxu0 0
    %1274 = vmatpush.bf16.msra.mxu0 0
    %1275 = vmatpush.bf16.msra.mxu0 %v1115
    %1276 = vmatmul.bf16.gmra.mxu0 %v1070
    %v1277 = vpop.f32.mrf.mxu0
    %v1278 = vadd.f32 0.0, %v1277
    %v1279 = vpop.f32.mrf.mxu0
    %v1280 = vadd.f32 0.0, %v1279
    %1281 = vdwg.mxu0
    %1284 = vrot.lane.b32.xlu0 %v1278, 96
    %v1285 = vpop.permute.xlu0 %1284
    %1286 = vrot.lane.b32.xlu0 %v1280, 96
    %v1287 = vpop.permute.xlu0 %1286
    %1290 = vst.msk [vmem:[#allocation3 + $0x38] sm:$0xff] %vm993, %v1285
    %1291 = vst.msk [vmem:[#allocation3 + $0x50] sm:$0xff] %vm993, %v1287
    %1292 = vmatpush.bf16.msra.mxu0 0
    %1293 = vmatpush.bf16.msra.mxu0 0
    %1294 = vmatpush.bf16.msra.mxu0 0
    %1295 = vmatpush.bf16.msra.mxu0 0
    %1296 = vmatpush.bf16.msra.mxu0 0
    %1297 = vmatpush.bf16.msra.mxu0 0
    %1298 = vmatpush.bf16.msra.mxu0 0
    %1299 = vmatpush.bf16.msra.mxu0 %v1115
    %1300 = vmatmul.bf16.gmra.mxu0 %v1097
    %v1301 = vpop.f32.mrf.mxu0
    %v1302 = vadd.f32 0.0, %v1301
    %v1303 = vpop.f32.mrf.mxu0
    %v1304 = vadd.f32 0.0, %v1303
    %1305 = vdwg.mxu0
    %1306 = vst.msk [vmem:[#allocation3 + $0x40] sm:$0xff] %vm87, %v1302
    %1307 = vst.msk [vmem:[#allocation3 + $0x58] sm:$0xff] %vm87, %v1304
    %v1308 = vld [vmem:[#allocation3] sm:$0xff]
    %v1309 = vld [vmem:[#allocation3 + $0x8] sm:$0xff]
    %v1310 = vld [vmem:[#allocation3 + $0x10] sm:$0xff]
    %v1311 = vld [vmem:[#allocation3 + $0x18] sm:$0xff]
    %v1312 = vld [vmem:[#allocation3 + $0x20] sm:$0xff]
    %v1313 = vld [vmem:[#allocation3 + $0x28] sm:$0xff]
    %v1314 = vld [vmem:[#allocation3 + $0x30] sm:$0xff]
    %v1315 = vld [vmem:[#allocation3 + $0x38] sm:$0xff]
    %v1316 = vld [vmem:[#allocation3 + $0x40] sm:$0xff]
    %v1317 = vld [vmem:[#allocation3 + $0x48] sm:$0xff]
    %v1318 = vld [vmem:[#allocation3 + $0x50] sm:$0xff]
    %v1319 = vld [vmem:[#allocation3 + $0x58] sm:$0xff]
    %v1320 = vld [vmem:[%s12] sm:$0xf]
    %v1321 = vld [vmem:[%s12 + $0x4] sm:$0xf]
    %v1322 = vld [vmem:[%s12 + $0x8] sm:$0xf]
    %v1323 = vld [vmem:[%s12 + $0xc] sm:$0xf]
    %v1324 = vld [vmem:[%s12 + $0x10] sm:$0xf]
    %v1325 = vld [vmem:[%s12 + $0x14] sm:$0xf]
    %v1326 = vld [vmem:[%s12 + $0x18] sm:$0xf]
    %v1327 = vld [vmem:[%s12 + $0x1c] sm:$0xf]
    %v1328 = vld [vmem:[%s12 + $0x20] sm:$0xf]
    %v1329 = vld [vmem:[%s12 + $0x24] sm:$0xf]
    %v1330 = vld [vmem:[%s12 + $0x28] sm:$0xf]
    %v1331 = vld [vmem:[%s12 + $0x2c] sm:$0xf]
    %v1332 = vld [vmem:[%s12 + $0x30] sm:$0xf]
    %v1333 = vld [vmem:[%s12 + $0x34] sm:$0xf]
    %v1334 = vld [vmem:[%s12 + $0x38] sm:$0xf]
    %v1335 = vld [vmem:[%s12 + $0x3c] sm:$0xf]
    %v1336 = vld [vmem:[%s12 + $0x40] sm:$0xf]
    %v1337 = vld [vmem:[%s12 + $0x44] sm:$0xf]
    %v1338 = vld [vmem:[%s12 + $0x48] sm:$0xf]
    %v1339 = vld [vmem:[%s12 + $0x4c] sm:$0xf]
    %v1340 = vld [vmem:[%s12 + $0x50] sm:$0xf]
    %v1341 = vld [vmem:[%s12 + $0x54] sm:$0xf]
    %v1342 = vld [vmem:[%s12 + $0x58] sm:$0xf]
    %v1343 = vld [vmem:[%s12 + $0x5c] sm:$0xf]
    %v1344 = vld [vmem:[%s12 + $0x60] sm:$0xf]
    %v1345 = vld [vmem:[%s12 + $0x64] sm:$0xf]
    %v1346 = vld [vmem:[%s12 + $0x68] sm:$0xf]
    %v1347 = vld [vmem:[%s12 + $0x6c] sm:$0xf]
    %v1348 = vld [vmem:[%s12 + $0x70] sm:$0xf]
    %v1349 = vld [vmem:[%s12 + $0x74] sm:$0xf]
    %v1350 = vld [vmem:[%s12 + $0x78] sm:$0xf]
    %v1351 = vld [vmem:[%s12 + $0x7c] sm:$0xf]
    %v1352 = vld [vmem:[%s12 + $0x80] sm:$0xf]
    %v1353 = vld [vmem:[%s12 + $0x84] sm:$0xf]
    %v1354 = vld [vmem:[%s12 + $0x88] sm:$0xf]
    %v1355 = vld [vmem:[%s12 + $0x8c] sm:$0xf]
    %v1356 = vpack.c.bf16 %v1311, %v1308
    %v1357 = vpack.c.bf16 %v1312, %v1309
    %v1358 = vpack.c.bf16 %v1313, %v1310
    %v1359 = vpack.c.bf16 %v1317, %v1314
    %v1360 = vpack.c.bf16 %v1318, %v1315
    %v1361 = vpack.c.bf16 %v1319, %v1316
    %v1362 = vld [vmem:[%s13] sm:$0x1]
    %v1364 = vperm.slane %v1362, 0
    %v1402 = vunpack.c.l.b16 %v1320
    %v1403 = vunpack.c.l.b16 %v1321
    %v1404 = vunpack.c.l.b16 %v1322
    %v1405 = vunpack.c.l.b16 %v1323
    %v1406 = vunpack.c.l.b16 %v1324
    %v1407 = vunpack.c.l.b16 %v1325
    %v1408 = vunpack.c.l.b16 %v1326
    %v1409 = vunpack.c.l.b16 %v1327
    %v1410 = vunpack.c.l.b16 %v1328
    %v1411 = vunpack.c.l.b16 %v1329
    %v1412 = vunpack.c.l.b16 %v1330
    %v1413 = vunpack.c.l.b16 %v1331
    %v1414 = vunpack.c.l.b16 %v1332
    %v1415 = vunpack.c.l.b16 %v1333
    %v1416 = vunpack.c.l.b16 %v1334
    %v1417 = vunpack.c.l.b16 %v1335
    %v1418 = vunpack.c.l.b16 %v1336
    %v1419 = vunpack.c.l.b16 %v1337
    %v1420 = vunpack.c.l.b16 %v1338
    %v1421 = vunpack.c.l.b16 %v1339
    %v1422 = vunpack.c.l.b16 %v1340
    %v1423 = vunpack.c.l.b16 %v1341
    %v1424 = vunpack.c.l.b16 %v1342
    %v1425 = vunpack.c.l.b16 %v1343
    %v1426 = vunpack.c.l.b16 %v1344
    %v1427 = vunpack.c.l.b16 %v1345
    %v1428 = vunpack.c.l.b16 %v1346
    %v1429 = vunpack.c.l.b16 %v1347
    %v1430 = vunpack.c.l.b16 %v1348
    %v1431 = vunpack.c.l.b16 %v1349
    %v1432 = vunpack.c.l.b16 %v1350
    %v1433 = vunpack.c.l.b16 %v1351
    %v1434 = vunpack.c.l.b16 %v1352
    %v1435 = vunpack.c.l.b16 %v1353
    %v1436 = vunpack.c.l.b16 %v1354
    %v1437 = vunpack.c.l.b16 %v1355
    %v1438 = vpack.c.b16 %v1403, %v1402
    %v1439 = vpack.c.b16 %v1405, %v1404
    %v1440 = vpack.c.b16 %v1407, %v1406
    %v1441 = vpack.c.b16 %v1409, %v1408
    %v1442 = vpack.c.b16 %v1411, %v1410
    %v1443 = vpack.c.b16 %v1413, %v1412
    %v1444 = vpack.c.b16 %v1415, %v1414
    %v1445 = vpack.c.b16 %v1417, %v1416
    %v1446 = vpack.c.b16 %v1419, %v1418
    %v1447 = vpack.c.b16 %v1421, %v1420
    %v1448 = vpack.c.b16 %v1423, %v1422
    %v1449 = vpack.c.b16 %v1425, %v1424
    %v1450 = vpack.c.b16 %v1427, %v1426
    %v1451 = vpack.c.b16 %v1429, %v1428
    %v1452 = vpack.c.b16 %v1431, %v1430
    %v1453 = vpack.c.b16 %v1433, %v1432
    %v1454 = vpack.c.b16 %v1435, %v1434
    %v1455 = vpack.c.b16 %v1437, %v1436
    %v1475 = vsel %vm87, %v1358, 0
    %v1478 = vsel %vm87, %v1361, 0
    %1480 = vmatpush.bf16.msra.mxu0 %v1445
    %1481 = vmatpush.bf16.msra.mxu0 %v1444
    %1482 = vmatpush.bf16.msra.mxu0 %v1443
    %1483 = vmatpush.bf16.msra.mxu0 %v1442
    %1484 = vmatpush.bf16.msra.mxu0 %v1441
    %1485 = vmatpush.bf16.msra.mxu0 %v1440
    %1486 = vmatpush.bf16.msra.mxu0 %v1439
    %1487 = vmatpush.bf16.msra.mxu0 %v1438
    %1488 = vmatmul.bf16.gmra.mxu0 %v1356
    %v1489 = vpop.f32.mrf.mxu0
    %v1490 = vadd.f32 %v1364, %v1489
    %v1491 = vpop.f32.mrf.mxu0
    %v1492 = vadd.f32 %v1364, %v1491
    %1493 = vmatmul.bf16.gmra.mxu0 %v1359
    %v1494 = vpop.f32.mrf.mxu0
    %v1495 = vadd.f32 %v1364, %v1494
    %v1496 = vpop.f32.mrf.mxu0
    %v1497 = vadd.f32 %v1364, %v1496
    %1498 = vdwg.mxu0
    %1499 = vmatpush.bf16.msra.mxu0 %v1453
    %1500 = vmatpush.bf16.msra.mxu0 %v1452
    %1501 = vmatpush.bf16.msra.mxu0 %v1451
    %1502 = vmatpush.bf16.msra.mxu0 %v1450
    %1503 = vmatpush.bf16.msra.mxu0 %v1449
    %1504 = vmatpush.bf16.msra.mxu0 %v1448
    %1505 = vmatpush.bf16.msra.mxu0 %v1447
    %1506 = vmatpush.bf16.msra.mxu0 %v1446
    %1507 = vmatmul.bf16.gmra.mxu0 %v1357
    %v1508 = vpop.f32.mrf.mxu0
    %v1509 = vadd.f32 %v1490, %v1508
    %v1510 = vpop.f32.mrf.mxu0
    %v1511 = vadd.f32 %v1492, %v1510
    %1512 = vmatmul.bf16.gmra.mxu0 %v1360
    %v1513 = vpop.f32.mrf.mxu0
    %v1514 = vadd.f32 %v1495, %v1513
    %v1515 = vpop.f32.mrf.mxu0
    %v1516 = vadd.f32 %v1497, %v1515
    %1517 = vdwg.mxu0
    %1518 = vmatpush.bf16.msra.mxu0 0
    %1519 = vmatpush.bf16.msra.mxu0 0
    %1520 = vmatpush.bf16.msra.mxu0 0
    %1521 = vmatpush.bf16.msra.mxu0 0
    %1522 = vmatpush.bf16.msra.mxu0 0
    %1523 = vmatpush.bf16.msra.mxu0 0
    %1524 = vmatpush.bf16.msra.mxu0 %v1455
    %1525 = vmatpush.bf16.msra.mxu0 %v1454
    %1526 = vmatmul.bf16.gmra.mxu0 %v1475
    %v1527 = vpop.f32.mrf.mxu0
    %v1528 = vadd.f32 %v1509, %v1527
    %v1529 = vpop.f32.mrf.mxu0
    %v1530 = vadd.f32 %v1511, %v1529
    %1531 = vmatmul.bf16.gmra.mxu0 %v1478
    %v1532 = vpop.f32.mrf.mxu0
    %v1533 = vadd.f32 %v1514, %v1532
    %v1534 = vpop.f32.mrf.mxu0
    %v1535 = vadd.f32 %v1516, %v1534
    %1536 = vdwg.mxu0
    %v1537 = vmax.f32 %v1528, 0.0
    %v1538 = vmax.f32 %v1530, 0.0
    %v1539 = vmax.f32 %v1533, 0.0
    %v1540 = vmax.f32 %v1535, 0.0
    %v1541 = vand.u32 2147483647, %v1528
    %v1542 = vand.u32 2147483647, %v1530
    %v1543 = vand.u32 2147483647, %v1533
    %v1544 = vand.u32 2147483647, %v1535
    %v1545 = vsub.f32 0.0, %v1541
    %v1546 = vsub.f32 0.0, %v1542
    %v1547 = vsub.f32 0.0, %v1543
    %v1548 = vsub.f32 0.0, %v1544
    %v1549 = vmul.f32 %v1545, 1.442695
    %v1550 = vpow.pop %v1549
    %v1551 = vmul.f32 %v1546, 1.442695
    %v1552 = vpow.pop %v1551
    %v1553 = vmul.f32 %v1547, 1.442695
    %v1554 = vpow.pop %v1553
    %v1555 = vmul.f32 %v1548, 1.442695
    %v1556 = vpow.pop %v1555
    %v1557 = vadd.f32 %v1550, 1.0
    %v1558 = vadd.f32 %v1552, 1.0
    %v1559 = vadd.f32 %v1554, 1.0
    %v1560 = vadd.f32 %v1556, 1.0
    %v1561 = vlog2.pop %v1557
    %v1562 = vmul.f32 %v1561, 0.6931472
    %v1563 = vlog2.pop %v1558
    %v1564 = vmul.f32 %v1563, 0.6931472
    %v1565 = vlog2.pop %v1559
    %v1566 = vmul.f32 %v1565, 0.6931472
    %v1567 = vlog2.pop %v1560
    %v1568 = vmul.f32 %v1567, 0.6931472
    %v1569 = vadd.f32 %v1537, %v1562
    %v1570 = vadd.f32 %v1538, %v1564
    %v1571 = vadd.f32 %v1539, %v1566
    %v1572 = vadd.f32 %v1540, %v1568
    %v1573 = vtanh.pop %v1569
    %v1574 = vtanh.pop %v1570
    %v1575 = vtanh.pop %v1571
    %v1576 = vtanh.pop %v1572
    %v1577 = vmul.f32 %v1528, %v1573
    %v1578 = vmul.f32 %v1530, %v1574
    %v1579 = vmul.f32 %v1533, %v1575
    %v1580 = vmul.f32 %v1535, %v1576
    %v1581 = vld [vmem:[%s14] sm:$0xf]
    %v1582 = vld [vmem:[%s14 + $0x4] sm:$0xf]
    %v1583 = vld [vmem:[%s14 + $0x8] sm:$0xf]
    %v1584 = vld [vmem:[%s14 + $0xc] sm:$0xf]
    %v1585 = vld [vmem:[%s14 + $0x10] sm:$0xf]
    %v1586 = vld [vmem:[%s14 + $0x14] sm:$0xf]
    %v1587 = vld [vmem:[%s14 + $0x18] sm:$0xf]
    %v1588 = vld [vmem:[%s14 + $0x1c] sm:$0xf]
    %v1589 = vpack.c.bf16 %v1578, %v1577
    %v1590 = vpack.c.bf16 %v1580, %v1579
    %v1591 = vld [vmem:[%s15] sm:$0x1]
    %v1593 = vperm.slane %v1591, 0
    %v1603 = vunpack.c.l.b16 %v1581
    %v1604 = vunpack.c.l.b16 %v1582
    %v1605 = vunpack.c.l.b16 %v1583
    %v1606 = vunpack.c.l.b16 %v1584
    %v1607 = vunpack.c.l.b16 %v1585
    %v1608 = vunpack.c.l.b16 %v1586
    %v1609 = vunpack.c.l.b16 %v1587
    %v1610 = vunpack.c.l.b16 %v1588
    %v1611 = vpack.c.b16 %v1604, %v1603
    %v1612 = vpack.c.b16 %v1606, %v1605
    %v1613 = vpack.c.b16 %v1608, %v1607
    %v1614 = vpack.c.b16 %v1610, %v1609
    %vm1619 = vcmask 523264
    %v1621 = vsel %vm1619, %v1589, 0
    %v1624 = vsel %vm1619, %v1590, 0
    %1626 = vmatpush.bf16.msra.mxu0 0
    %1627 = vmatpush.bf16.msra.mxu0 0
    %1628 = vmatpush.bf16.msra.mxu0 0
    %1629 = vmatpush.bf16.msra.mxu0 0
    %1630 = vmatpush.bf16.msra.mxu0 %v1614
    %1631 = vmatpush.bf16.msra.mxu0 %v1613
    %1632 = vmatpush.bf16.msra.mxu0 %v1612
    %1633 = vmatpush.bf16.msra.mxu0 %v1611
    %1634 = vmatmul.bf16.gmra.mxu0 %v1621
    %v1635 = vpop.f32.mrf.mxu0
    %v1636 = vadd.f32 %v1593, %v1635
    %v1637 = vpop.f32.mrf.mxu0
    %v1638 = vadd.f32 %v1593, %v1637
    %1639 = vmatmul.bf16.gmra.mxu0 %v1624
    %v1640 = vpop.f32.mrf.mxu0
    %v1641 = vadd.f32 %v1593, %v1640
    %v1642 = vpop.f32.mrf.mxu0
    %v1643 = vadd.f32 %v1593, %v1642
    %1644 = vdwg.mxu0
    %v1645 = vadd.f32 %v1636, %v888
    %v1646 = vadd.f32 %v1638, %v889
    %v1647 = vadd.f32 %v1641, %v890
    %v1648 = vadd.f32 %v1643, %v891
    %v1649 = vsel %vm87, %v1645, 0.0
    %1650 = vadd.xlane.f32.xlu0 %v1649
    %v1651 = vpop.xlane.xlu0 %1650
    %v1652 = vsel %vm87, %v1646, 0.0
    %1653 = vadd.xlane.f32.xlu0 %v1652
    %v1654 = vpop.xlane.xlu0 %1653
    %v1655 = vsel %vm87, %v1647, 0.0
    %1656 = vadd.xlane.f32.xlu0 %v1655
    %v1657 = vpop.xlane.xlu0 %1656
    %v1658 = vsel %vm87, %v1648, 0.0
    %1659 = vadd.xlane.f32.xlu0 %v1658
    %v1660 = vpop.xlane.xlu0 %1659
    %v1661 = vmul.f32 %v1651, %v791
    %v1662 = vmul.f32 %v1654, %v791
    %v1663 = vmul.f32 %v1657, %v791
    %v1664 = vmul.f32 %v1660, %v791
    %v1665 = vsub.f32 %v1645, %v1661
    %v1666 = vsub.f32 %v1646, %v1662
    %v1667 = vsub.f32 %v1647, %v1663
    %v1668 = vsub.f32 %v1648, %v1664
    %v1669 = vmul.f32 %v1665, %v1665
    %v1670 = vmul.f32 %v1666, %v1666
    %v1671 = vmul.f32 %v1667, %v1667
    %v1672 = vmul.f32 %v1668, %v1668
    %v1673 = vsel %vm87, %v1669, 0.0
    %1674 = vadd.xlane.f32.xlu0 %v1673
    %v1675 = vpop.xlane.xlu0 %1674
    %v1676 = vsel %vm87, %v1670, 0.0
    %1677 = vadd.xlane.f32.xlu0 %v1676
    %v1678 = vpop.xlane.xlu0 %1677
    %v1679 = vsel %vm87, %v1671, 0.0
    %1680 = vadd.xlane.f32.xlu0 %v1679
    %v1681 = vpop.xlane.xlu0 %1680
    %v1682 = vsel %vm87, %v1672, 0.0
    %1683 = vadd.xlane.f32.xlu0 %v1682
    %v1684 = vpop.xlane.xlu0 %1683
    %v1685 = vmul.f32 %v1675, %v791
    %v1686 = vmul.f32 %v1678, %v791
    %v1687 = vmul.f32 %v1681, %v791
    %v1688 = vmul.f32 %v1684, %v791
    %v1689 = vadd.f32 %v1685, 1e-05
    %v1690 = vadd.f32 %v1686, 1e-05
    %v1691 = vadd.f32 %v1687, 1e-05
    %v1692 = vadd.f32 %v1688, 1e-05
    %v1693 = vrsqrt.pop %v1689
    %v1694 = vmul.f32 %v1693, %v1689
    %v1695 = vmul.f32 %v1694, %v1693
    %v1696 = vmul.f32 0.5, %v1695
    %v1697 = vsub.f32 1.5, %v1696
    %v1698 = vmul.f32 %v1693, %v1697
    %vm1699 = vweird.f32 %v1689
    %vm1700 = vweird.f32 %v1693
    %vm1701 = vmor %vm1699, %vm1700
    %v1702 = vsel %vm1701, %v1693, %v1698
    %v1703 = vrsqrt.pop %v1690
    %v1704 = vmul.f32 %v1703, %v1690
    %v1705 = vmul.f32 %v1704, %v1703
    %v1706 = vmul.f32 0.5, %v1705
    %v1707 = vsub.f32 1.5, %v1706
    %v1708 = vmul.f32 %v1703, %v1707
    %vm1709 = vweird.f32 %v1690
    %vm1710 = vweird.f32 %v1703
    %vm1711 = vmor %vm1709, %vm1710
    %v1712 = vsel %vm1711, %v1703, %v1708
    %v1713 = vrsqrt.pop %v1691
    %v1714 = vmul.f32 %v1713, %v1691
    %v1715 = vmul.f32 %v1714, %v1713
    %v1716 = vmul.f32 0.5, %v1715
    %v1717 = vsub.f32 1.5, %v1716
    %v1718 = vmul.f32 %v1713, %v1717
    %vm1719 = vweird.f32 %v1691
    %vm1720 = vweird.f32 %v1713
    %vm1721 = vmor %vm1719, %vm1720
    %v1722 = vsel %vm1721, %v1713, %v1718
    %v1723 = vrsqrt.pop %v1692
    %v1724 = vmul.f32 %v1723, %v1692
    %v1725 = vmul.f32 %v1724, %v1723
    %v1726 = vmul.f32 0.5, %v1725
    %v1727 = vsub.f32 1.5, %v1726
    %v1728 = vmul.f32 %v1723, %v1727
    %vm1729 = vweird.f32 %v1692
    %vm1730 = vweird.f32 %v1723
    %vm1731 = vmor %vm1729, %vm1730
    %v1732 = vsel %vm1731, %v1723, %v1728
    %v1733 = vmul.f32 %v1665, %v1702
    %v1734 = vmul.f32 %v1666, %v1712
    %v1735 = vmul.f32 %v1667, %v1722
    %v1736 = vmul.f32 %v1668, %v1732
    %1741 = vrot.lane.b32.xlu0 %v1733, 64
    %v1742 = vpop.permute.xlu0 %1741
    %1743 = vrot.lane.b32.xlu0 %v1734, 64
    %v1744 = vpop.permute.xlu0 %1743
    %1745 = vrot.lane.b32.xlu0 %v1735, 64
    %v1746 = vpop.permute.xlu0 %1745
    %1747 = vrot.lane.b32.xlu0 %v1736, 64
    %v1748 = vpop.permute.xlu0 %1747
    %v1753 = vmul.f32 %v269, %v1742
    %v1754 = vmul.f32 %v272, %v1744
    %v1755 = vmul.f32 %v275, %v1746
    %v1756 = vmul.f32 %v278, %v1748
    %v1757 = vadd.f32 %v1753, %v877
    %v1758 = vadd.f32 %v1754, %v879
    %v1759 = vadd.f32 %v1755, %v881
    %v1760 = vadd.f32 %v1756, %v883
    %s1761 = scalar_lea.vmem %s8, 16
    %v1762 = vld [vmem:[%s1761] sm:$0xf]
    %v1763 = vld [vmem:[%s1761 + $0x4] sm:$0xf]
    %v1764 = vld [vmem:[%s1761 + $0x8] sm:$0xf]
    %v1765 = vld [vmem:[%s1761 + $0xc] sm:$0xf]
    %v1766 = vpack.c.bf16 %v1758, %v1757
    %v1767 = vpack.c.bf16 %v1760, %v1759
    %s1768 = scalar_lea.vmem %s9, 1
    %v1769 = vld [vmem:[%s1768] sm:$0x1]
    %v1771 = vperm.slane %v1769, 0
    %1775 = vrot.lane.b32.xlu0 %v1766, 64
    %v1776 = vpop.permute.xlu0 %1775
    %1777 = vrot.lane.b32.xlu0 %v1767, 64
    %v1778 = vpop.permute.xlu0 %1777
    %v1783 = vunpack.c.l.b16 %v1762
    %v1784 = vunpack.c.l.b16 %v1763
    %v1785 = vunpack.c.l.b16 %v1764
    %v1786 = vunpack.c.l.b16 %v1765
    %v1787 = vpack.c.b16 %v1784, %v1783
    %v1788 = vpack.c.b16 %v1786, %v1785
    %v1792 = vsel %vm87, %v1776, 0
    %v1795 = vsel %vm87, %v1778, 0
    %1797 = vmatpush.bf16.msra.mxu0 0
    %1798 = vmatpush.bf16.msra.mxu0 0
    %1799 = vmatpush.bf16.msra.mxu0 0
    %1800 = vmatpush.bf16.msra.mxu0 0
    %1801 = vmatpush.bf16.msra.mxu0 0
    %1802 = vmatpush.bf16.msra.mxu0 0
    %1803 = vmatpush.bf16.msra.mxu0 %v1788
    %1804 = vmatpush.bf16.msra.mxu0 %v1787
    %1805 = vmatmul.bf16.gmra.mxu0 %v1792
    %v1806 = vpop.f32.mrf.mxu0
    %v1807 = vadd.f32 %v1771, %v1806
    %v1808 = vpop.f32.mrf.mxu0
    %v1809 = vadd.f32 %v1771, %v1808
    %1810 = vmatmul.bf16.gmra.mxu0 %v1795
    %v1811 = vpop.f32.mrf.mxu0
    %v1812 = vadd.f32 %v1771, %v1811
    %v1813 = vpop.f32.mrf.mxu0
    %v1814 = vadd.f32 %v1771, %v1813
    %1815 = vdwg.mxu0
    %v1816 = vpack.c.bf16 %v1809, %v1807
    %1818 = vrot.lane.b32.xlu0 %v1816, 96
    %v1819 = vpop.permute.xlu0 %1818
    %v1821 = vsel %vm131, %v1816, 0
    %v1824 = vsel %vm131, %v1819, 0
    %1826 = vmatpush.bf16.xpose.msra.mxu0 0
    %1827 = vmatpush.bf16.xpose.msra.mxu0 0
    %1828 = vmatpush.bf16.xpose.msra.mxu0 0
    %1829 = vmatpush.bf16.xpose.msra.mxu0 0
    %1830 = vmatpush.bf16.xpose.msra.mxu0 0
    %1831 = vmatpush.bf16.xpose.msra.mxu0 0
    %1832 = vmatpush.bf16.xpose.msra.mxu0 0
    %1833 = vmatpush.bf16.xpose.msra.mxu0 %v1824
    %1834 = vmatmul.bf16.gmra.mxu0 %v1821
    %v1835 = vpop.f32.mrf.mxu0
    %v1836 = vadd.f32 0.0, %v1835
    %v1837 = vpop.f32.mrf.mxu0
    %v1838 = vadd.f32 0.0, %v1837
    %1839 = vdwg.mxu0
    %v1840 = vmul.f32 %v1836, 0.25
    %v1841 = vmul.f32 %v1838, 0.25
    %v1842 = vsel %vm131, %v1840, -inf
    %1843 = vmax.xlane.f32.xlu0 %v1842
    %v1844 = vpop.xlane.xlu0 %1843
    %v1845 = vsel %vm131, %v1841, -inf
    %1846 = vmax.xlane.f32.xlu0 %v1845
    %v1847 = vpop.xlane.xlu0 %1846
    %v1848 = vsub.f32 %v1840, %v1844
    %v1849 = vsub.f32 %v1841, %v1847
    %v1850 = vmul.f32 %v1848, 1.442695
    %v1851 = vpow.pop %v1850
    %v1852 = vmul.f32 %v1849, 1.442695
    %v1853 = vpow.pop %v1852
    %v1854 = vsel %vm131, %v1851, 0.0
    %1855 = vadd.xlane.f32.xlu0 %v1854
    %v1856 = vpop.xlane.xlu0 %1855
    %v1857 = vsel %vm131, %v1853, 0.0
    %1858 = vadd.xlane.f32.xlu0 %v1857
    %v1859 = vpop.xlane.xlu0 %1858
    %v1860 = vrcp.pop %v1856
    %v1861 = vrcp.pop %v1859
    %v1862 = vmul.f32 %v1851, %v1860
    %v1863 = vmul.f32 %v1853, %v1861
    %v1864 = vpack.c.bf16 %v1863, %v1862
    %1865 = vrot.lane.b32.xlu0 %v1816, 64
    %v1866 = vpop.permute.xlu0 %1865
    %v1869 = vsel %vm131, %v1864, 0
    %1871 = vmatpush.bf16.msra.mxu0 0
    %1872 = vmatpush.bf16.msra.mxu0 0
    %1873 = vmatpush.bf16.msra.mxu0 0
    %1874 = vmatpush.bf16.msra.mxu0 0
    %1875 = vmatpush.bf16.msra.mxu0 0
    %1876 = vmatpush.bf16.msra.mxu0 0
    %1877 = vmatpush.bf16.msra.mxu0 0
    %1878 = vmatpush.bf16.msra.mxu0 %v1866
    %1879 = vmatmul.bf16.gmra.mxu0 %v1869
    %v1880 = vpop.f32.mrf.mxu0
    %v1881 = vadd.f32 0.0, %v1880
    %v1882 = vpop.f32.mrf.mxu0
    %v1883 = vadd.f32 0.0, %v1882
    %1884 = vdwg.mxu0
    %1885 = vst.msk [vmem:[#allocation2] sm:$0xff] %vm131, %v1881
    %1886 = vst.msk [vmem:[#allocation2 + $0x8] sm:$0xff] %vm131, %v1883
    %1887 = vrot.lane.b32.xlu0 %v1816, 112
    %v1888 = vpop.permute.xlu0 %1887
    %1889 = vrot.lane.b32.xlu0 %v1816, 80
    %v1890 = vpop.permute.xlu0 %1889
    %v1892 = vsel %vm131, %v1888, 0
    %v1895 = vsel %vm131, %v1890, 0
    %1897 = vmatpush.bf16.xpose.msra.mxu0 0
    %1898 = vmatpush.bf16.xpose.msra.mxu0 0
    %1899 = vmatpush.bf16.xpose.msra.mxu0 0
    %1900 = vmatpush.bf16.xpose.msra.mxu0 0
    %1901 = vmatpush.bf16.xpose.msra.mxu0 0
    %1902 = vmatpush.bf16.xpose.msra.mxu0 0
    %1903 = vmatpush.bf16.xpose.msra.mxu0 0
    %1904 = vmatpush.bf16.xpose.msra.mxu0 %v1895
    %1905 = vmatmul.bf16.gmra.mxu0 %v1892
    %v1906 = vpop.f32.mrf.mxu0
    %v1907 = vadd.f32 0.0, %v1906
    %v1908 = vpop.f32.mrf.mxu0
    %v1909 = vadd.f32 0.0, %v1908
    %1910 = vdwg.mxu0
    %v1911 = vmul.f32 %v1907, 0.25
    %v1912 = vmul.f32 %v1909, 0.25
    %v1913 = vsel %vm131, %v1911, -inf
    %1914 = vmax.xlane.f32.xlu0 %v1913
    %v1915 = vpop.xlane.xlu0 %1914
    %v1916 = vsel %vm131, %v1912, -inf
    %1917 = vmax.xlane.f32.xlu0 %v1916
    %v1918 = vpop.xlane.xlu0 %1917
    %v1919 = vsub.f32 %v1911, %v1915
    %v1920 = vsub.f32 %v1912, %v1918
    %v1921 = vmul.f32 %v1919, 1.442695
    %v1922 = vpow.pop %v1921
    %v1923 = vmul.f32 %v1920, 1.442695
    %v1924 = vpow.pop %v1923
    %v1925 = vsel %vm131, %v1922, 0.0
    %1926 = vadd.xlane.f32.xlu0 %v1925
    %v1927 = vpop.xlane.xlu0 %1926
    %v1928 = vsel %vm131, %v1924, 0.0
    %1929 = vadd.xlane.f32.xlu0 %v1928
    %v1930 = vpop.xlane.xlu0 %1929
    %v1931 = vrcp.pop %v1927
    %v1932 = vrcp.pop %v1930
    %v1933 = vmul.f32 %v1922, %v1931
    %v1934 = vmul.f32 %v1924, %v1932
    %v1935 = vpack.c.bf16 %v1934, %v1933
    %1936 = vrot.lane.b32.xlu0 %v1816, 48
    %v1937 = vpop.permute.xlu0 %1936
    %v1940 = vsel %vm131, %v1935, 0
    %1942 = vmatpush.bf16.msra.mxu0 0
    %1943 = vmatpush.bf16.msra.mxu0 0
    %1944 = vmatpush.bf16.msra.mxu0 0
    %1945 = vmatpush.bf16.msra.mxu0 0
    %1946 = vmatpush.bf16.msra.mxu0 0
    %1947 = vmatpush.bf16.msra.mxu0 0
    %1948 = vmatpush.bf16.msra.mxu0 0
    %1949 = vmatpush.bf16.msra.mxu0 %v1937
    %1950 = vmatmul.bf16.gmra.mxu0 %v1940
    %v1951 = vpop.f32.mrf.mxu0
    %v1952 = vadd.f32 0.0, %v1951
    %v1953 = vpop.f32.mrf.mxu0
    %v1954 = vadd.f32 0.0, %v1953
    %1955 = vdwg.mxu0
    %1958 = vrot.lane.b32.xlu0 %v1952, 16
    %v1959 = vpop.permute.xlu0 %1958
    %1960 = vrot.lane.b32.xlu0 %v1954, 16
    %v1961 = vpop.permute.xlu0 %1960
    %1964 = vst.msk [vmem:[#allocation2] sm:$0xff] %vm565, %v1959
    %1965 = vst.msk [vmem:[#allocation2 + $0x8] sm:$0xff] %vm565, %v1961
    %v1966 = vpack.c.bf16 %v1814, %v1812
    %1968 = vrot.lane.b32.xlu0 %v1966, 96
    %v1969 = vpop.permute.xlu0 %1968
    %v1971 = vsel %vm131, %v1966, 0
    %v1974 = vsel %vm131, %v1969, 0
    %1976 = vmatpush.bf16.xpose.msra.mxu0 0
    %1977 = vmatpush.bf16.xpose.msra.mxu0 0
    %1978 = vmatpush.bf16.xpose.msra.mxu0 0
    %1979 = vmatpush.bf16.xpose.msra.mxu0 0
    %1980 = vmatpush.bf16.xpose.msra.mxu0 0
    %1981 = vmatpush.bf16.xpose.msra.mxu0 0
    %1982 = vmatpush.bf16.xpose.msra.mxu0 0
    %1983 = vmatpush.bf16.xpose.msra.mxu0 %v1974
    %1984 = vmatmul.bf16.gmra.mxu0 %v1971
    %v1985 = vpop.f32.mrf.mxu0
    %v1986 = vadd.f32 0.0, %v1985
    %v1987 = vpop.f32.mrf.mxu0
    %v1988 = vadd.f32 0.0, %v1987
    %1989 = vdwg.mxu0
    %v1990 = vmul.f32 %v1986, 0.25
    %v1991 = vmul.f32 %v1988, 0.25
    %v1992 = vsel %vm131, %v1990, -inf
    %1993 = vmax.xlane.f32.xlu0 %v1992
    %v1994 = vpop.xlane.xlu0 %1993
    %v1995 = vsel %vm131, %v1991, -inf
    %1996 = vmax.xlane.f32.xlu0 %v1995
    %v1997 = vpop.xlane.xlu0 %1996
    %v1998 = vsub.f32 %v1990, %v1994
    %v1999 = vsub.f32 %v1991, %v1997
    %v2000 = vmul.f32 %v1998, 1.442695
    %v2001 = vpow.pop %v2000
    %v2002 = vmul.f32 %v1999, 1.442695
    %v2003 = vpow.pop %v2002
    %v2004 = vsel %vm131, %v2001, 0.0
    %2005 = vadd.xlane.f32.xlu0 %v2004
    %v2006 = vpop.xlane.xlu0 %2005
    %v2007 = vsel %vm131, %v2003, 0.0
    %2008 = vadd.xlane.f32.xlu0 %v2007
    %v2009 = vpop.xlane.xlu0 %2008
    %v2010 = vrcp.pop %v2006
    %v2011 = vrcp.pop %v2009
    %v2012 = vmul.f32 %v2001, %v2010
    %v2013 = vmul.f32 %v2003, %v2011
    %v2014 = vpack.c.bf16 %v2013, %v2012
    %2015 = vrot.lane.b32.xlu0 %v1966, 64
    %v2016 = vpop.permute.xlu0 %2015
    %v2019 = vsel %vm131, %v2014, 0
    %2021 = vmatpush.bf16.msra.mxu0 0
    %2022 = vmatpush.bf16.msra.mxu0 0
    %2023 = vmatpush.bf16.msra.mxu0 0
    %2024 = vmatpush.bf16.msra.mxu0 0
    %2025 = vmatpush.bf16.msra.mxu0 0
    %2026 = vmatpush.bf16.msra.mxu0 0
    %2027 = vmatpush.bf16.msra.mxu0 0
    %2028 = vmatpush.bf16.msra.mxu0 %v2016
    %2029 = vmatmul.bf16.gmra.mxu0 %v2019
    %v2030 = vpop.f32.mrf.mxu0
    %v2031 = vadd.f32 0.0, %v2030
    %v2032 = vpop.f32.mrf.mxu0
    %v2033 = vadd.f32 0.0, %v2032
    %2034 = vdwg.mxu0
    %2035 = vst.msk [vmem:[#allocation2 + $0x10] sm:$0xff] %vm131, %v2031
    %2036 = vst.msk [vmem:[#allocation2 + $0x18] sm:$0xff] %vm131, %v2033
    %2037 = vrot.lane.b32.xlu0 %v1966, 112
    %v2038 = vpop.permute.xlu0 %2037
    %2039 = vrot.lane.b32.xlu0 %v1966, 80
    %v2040 = vpop.permute.xlu0 %2039
    %v2042 = vsel %vm131, %v2038, 0
    %v2045 = vsel %vm131, %v2040, 0
    %2047 = vmatpush.bf16.xpose.msra.mxu0 0
    %2048 = vmatpush.bf16.xpose.msra.mxu0 0
    %2049 = vmatpush.bf16.xpose.msra.mxu0 0
    %2050 = vmatpush.bf16.xpose.msra.mxu0 0
    %2051 = vmatpush.bf16.xpose.msra.mxu0 0
    %2052 = vmatpush.bf16.xpose.msra.mxu0 0
    %2053 = vmatpush.bf16.xpose.msra.mxu0 0
    %2054 = vmatpush.bf16.xpose.msra.mxu0 %v2045
    %2055 = vmatmul.bf16.gmra.mxu0 %v2042
    %v2056 = vpop.f32.mrf.mxu0
    %v2057 = vadd.f32 0.0, %v2056
    %v2058 = vpop.f32.mrf.mxu0
    %v2059 = vadd.f32 0.0, %v2058
    %2060 = vdwg.mxu0
    %v2061 = vmul.f32 %v2057, 0.25
    %v2062 = vmul.f32 %v2059, 0.25
    %v2063 = vsel %vm131, %v2061, -inf
    %2064 = vmax.xlane.f32.xlu0 %v2063
    %v2065 = vpop.xlane.xlu0 %2064
    %v2066 = vsel %vm131, %v2062, -inf
    %2067 = vmax.xlane.f32.xlu0 %v2066
    %v2068 = vpop.xlane.xlu0 %2067
    %v2069 = vsub.f32 %v2061, %v2065
    %v2070 = vsub.f32 %v2062, %v2068
    %v2071 = vmul.f32 %v2069, 1.442695
    %v2072 = vpow.pop %v2071
    %v2073 = vmul.f32 %v2070, 1.442695
    %v2074 = vpow.pop %v2073
    %v2075 = vsel %vm131, %v2072, 0.0
    %2076 = vadd.xlane.f32.xlu0 %v2075
    %v2077 = vpop.xlane.xlu0 %2076
    %v2078 = vsel %vm131, %v2074, 0.0
    %2079 = vadd.xlane.f32.xlu0 %v2078
    %v2080 = vpop.xlane.xlu0 %2079
    %v2081 = vrcp.pop %v2077
    %v2082 = vrcp.pop %v2080
    %v2083 = vmul.f32 %v2072, %v2081
    %v2084 = vmul.f32 %v2074, %v2082
    %v2085 = vpack.c.bf16 %v2084, %v2083
    %2086 = vrot.lane.b32.xlu0 %v1966, 48
    %v2087 = vpop.permute.xlu0 %2086
    %v2090 = vsel %vm131, %v2085, 0
    %2092 = vmatpush.bf16.msra.mxu0 0
    %2093 = vmatpush.bf16.msra.mxu0 0
    %2094 = vmatpush.bf16.msra.mxu0 0
    %2095 = vmatpush.bf16.msra.mxu0 0
    %2096 = vmatpush.bf16.msra.mxu0 0
    %2097 = vmatpush.bf16.msra.mxu0 0
    %2098 = vmatpush.bf16.msra.mxu0 0
    %2099 = vmatpush.bf16.msra.mxu0 %v2087
    %2100 = vmatmul.bf16.gmra.mxu0 %v2090
    %v2101 = vpop.f32.mrf.mxu0
    %v2102 = vadd.f32 0.0, %v2101
    %v2103 = vpop.f32.mrf.mxu0
    %v2104 = vadd.f32 0.0, %v2103
    %2105 = vdwg.mxu0
    %2108 = vrot.lane.b32.xlu0 %v2102, 16
    %v2109 = vpop.permute.xlu0 %2108
    %2110 = vrot.lane.b32.xlu0 %v2104, 16
    %v2111 = vpop.permute.xlu0 %2110
    %2114 = vst.msk [vmem:[#allocation2 + $0x10] sm:$0xff] %vm565, %v2109
    %2115 = vst.msk [vmem:[#allocation2 + $0x18] sm:$0xff] %vm565, %v2111
    %v2116 = vld [vmem:[#allocation2] sm:$0xff]
    %v2117 = vld [vmem:[#allocation2 + $0x8] sm:$0xff]
    %v2118 = vld [vmem:[#allocation2 + $0x10] sm:$0xff]
    %v2119 = vld [vmem:[#allocation2 + $0x18] sm:$0xff]
    %s2120 = scalar_lea.vmem %s10, 16
    %v2121 = vld [vmem:[%s2120] sm:$0xf]
    %v2122 = vld [vmem:[%s2120 + $0x4] sm:$0xf]
    %v2123 = vld [vmem:[%s2120 + $0x8] sm:$0xf]
    %v2124 = vld [vmem:[%s2120 + $0xc] sm:$0xf]
    %v2125 = vpack.c.bf16 %v2117, %v2116
    %v2126 = vpack.c.bf16 %v2119, %v2118
    %s2127 = scalar_lea.vmem %s11, 1
    %v2128 = vld [vmem:[%s2127] sm:$0x1]
    %v2130 = vperm.slane %v2128, 0
    %v2136 = vunpack.c.l.b16 %v2121
    %v2137 = vunpack.c.l.b16 %v2122
    %v2138 = vunpack.c.l.b16 %v2123
    %v2139 = vunpack.c.l.b16 %v2124
    %v2140 = vpack.c.b16 %v2137, %v2136
    %v2141 = vpack.c.b16 %v2139, %v2138
    %v2145 = vsel %vm87, %v2125, 0
    %v2148 = vsel %vm87, %v2126, 0
    %2150 = vmatpush.bf16.msra.mxu0 0
    %2151 = vmatpush.bf16.msra.mxu0 0
    %2152 = vmatpush.bf16.msra.mxu0 0
    %2153 = vmatpush.bf16.msra.mxu0 0
    %2154 = vmatpush.bf16.msra.mxu0 0
    %2155 = vmatpush.bf16.msra.mxu0 0
    %2156 = vmatpush.bf16.msra.mxu0 %v2141
    %2157 = vmatpush.bf16.msra.mxu0 %v2140
    %2158 = vmatmul.bf16.gmra.mxu0 %v2145
    %v2159 = vpop.f32.mrf.mxu0
    %v2160 = vadd.f32 %v2130, %v2159
    %v2161 = vpop.f32.mrf.mxu0
    %v2162 = vadd.f32 %v2130, %v2161
    %2163 = vmatmul.bf16.gmra.mxu0 %v2148
    %v2164 = vpop.f32.mrf.mxu0
    %v2165 = vadd.f32 %v2130, %v2164
    %v2166 = vpop.f32.mrf.mxu0
    %v2167 = vadd.f32 %v2130, %v2166
    %2168 = vdwg.mxu0
    %2173 = vrot.lane.b32.xlu0 %v1757, 64
    %v2174 = vpop.permute.xlu0 %2173
    %2175 = vrot.lane.b32.xlu0 %v1758, 64
    %v2176 = vpop.permute.xlu0 %2175
    %2177 = vrot.lane.b32.xlu0 %v1759, 64
    %v2178 = vpop.permute.xlu0 %2177
    %2179 = vrot.lane.b32.xlu0 %v1760, 64
    %v2180 = vpop.permute.xlu0 %2179
    %v2185 = vadd.f32 %v2160, %v2174
    %v2186 = vadd.f32 %v2162, %v2176
    %v2187 = vadd.f32 %v2165, %v2178
    %v2188 = vadd.f32 %v2167, %v2180
    %v2189 = vsel %vm87, %v2185, 0.0
    %2190 = vadd.xlane.f32.xlu0 %v2189
    %v2191 = vpop.xlane.xlu0 %2190
    %v2192 = vsel %vm87, %v2186, 0.0
    %2193 = vadd.xlane.f32.xlu0 %v2192
    %v2194 = vpop.xlane.xlu0 %2193
    %v2195 = vsel %vm87, %v2187, 0.0
    %2196 = vadd.xlane.f32.xlu0 %v2195
    %v2197 = vpop.xlane.xlu0 %2196
    %v2198 = vsel %vm87, %v2188, 0.0
    %2199 = vadd.xlane.f32.xlu0 %v2198
    %v2200 = vpop.xlane.xlu0 %2199
    %v2201 = vmul.f32 %v2191, %v791
    %v2202 = vmul.f32 %v2194, %v791
    %v2203 = vmul.f32 %v2197, %v791
    %v2204 = vmul.f32 %v2200, %v791
    %v2205 = vsub.f32 %v2185, %v2201
    %v2206 = vsub.f32 %v2186, %v2202
    %v2207 = vsub.f32 %v2187, %v2203
    %v2208 = vsub.f32 %v2188, %v2204
    %v2209 = vmul.f32 %v2205, %v2205
    %v2210 = vmul.f32 %v2206, %v2206
    %v2211 = vmul.f32 %v2207, %v2207
    %v2212 = vmul.f32 %v2208, %v2208
    %v2213 = vsel %vm87, %v2209, 0.0
    %2214 = vadd.xlane.f32.xlu0 %v2213
    %v2215 = vpop.xlane.xlu0 %2214
    %v2216 = vsel %vm87, %v2210, 0.0
    %2217 = vadd.xlane.f32.xlu0 %v2216
    %v2218 = vpop.xlane.xlu0 %2217
    %v2219 = vsel %vm87, %v2211, 0.0
    %2220 = vadd.xlane.f32.xlu0 %v2219
    %v2221 = vpop.xlane.xlu0 %2220
    %v2222 = vsel %vm87, %v2212, 0.0
    %2223 = vadd.xlane.f32.xlu0 %v2222
    %v2224 = vpop.xlane.xlu0 %2223
    %v2225 = vmul.f32 %v2215, %v791
    %v2226 = vmul.f32 %v2218, %v791
    %v2227 = vmul.f32 %v2221, %v791
    %v2228 = vmul.f32 %v2224, %v791
    %v2229 = vadd.f32 %v2225, 1e-05
    %v2230 = vadd.f32 %v2226, 1e-05
    %v2231 = vadd.f32 %v2227, 1e-05
    %v2232 = vadd.f32 %v2228, 1e-05
    %v2233 = vrsqrt.pop %v2229
    %v2234 = vmul.f32 %v2233, %v2229
    %v2235 = vmul.f32 %v2234, %v2233
    %v2236 = vmul.f32 0.5, %v2235
    %v2237 = vsub.f32 1.5, %v2236
    %v2238 = vmul.f32 %v2233, %v2237
    %vm2239 = vweird.f32 %v2229
    %vm2240 = vweird.f32 %v2233
    %vm2241 = vmor %vm2239, %vm2240
    %v2242 = vsel %vm2241, %v2233, %v2238
    %v2243 = vrsqrt.pop %v2230
    %v2244 = vmul.f32 %v2243, %v2230
    %v2245 = vmul.f32 %v2244, %v2243
    %v2246 = vmul.f32 0.5, %v2245
    %v2247 = vsub.f32 1.5, %v2246
    %v2248 = vmul.f32 %v2243, %v2247
    %vm2249 = vweird.f32 %v2230
    %vm2250 = vweird.f32 %v2243
    %vm2251 = vmor %vm2249, %vm2250
    %v2252 = vsel %vm2251, %v2243, %v2248
    %v2253 = vrsqrt.pop %v2231
    %v2254 = vmul.f32 %v2253, %v2231
    %v2255 = vmul.f32 %v2254, %v2253
    %v2256 = vmul.f32 0.5, %v2255
    %v2257 = vsub.f32 1.5, %v2256
    %v2258 = vmul.f32 %v2253, %v2257
    %vm2259 = vweird.f32 %v2231
    %vm2260 = vweird.f32 %v2253
    %vm2261 = vmor %vm2259, %vm2260
    %v2262 = vsel %vm2261, %v2253, %v2258
    %v2263 = vrsqrt.pop %v2232
    %v2264 = vmul.f32 %v2263, %v2232
    %v2265 = vmul.f32 %v2264, %v2263
    %v2266 = vmul.f32 0.5, %v2265
    %v2267 = vsub.f32 1.5, %v2266
    %v2268 = vmul.f32 %v2263, %v2267
    %vm2269 = vweird.f32 %v2232
    %vm2270 = vweird.f32 %v2263
    %vm2271 = vmor %vm2269, %vm2270
    %v2272 = vsel %vm2271, %v2263, %v2268
    %v2273 = vmul.f32 %v2205, %v2242
    %v2274 = vmul.f32 %v2206, %v2252
    %v2275 = vmul.f32 %v2207, %v2262
    %v2276 = vmul.f32 %v2208, %v2272
    %v2277 = vmul.f32 %v298, %v2273
    %v2278 = vmul.f32 %v301, %v2274
    %v2279 = vmul.f32 %v304, %v2275
    %v2280 = vmul.f32 %v307, %v2276
    %2285 = vrot.lane.b32.xlu0 %v298, 96
    %v2286 = vpop.permute.xlu0 %2285
    %2287 = vrot.lane.b32.xlu0 %v301, 96
    %v2288 = vpop.permute.xlu0 %2287
    %2289 = vrot.lane.b32.xlu0 %v304, 96
    %v2290 = vpop.permute.xlu0 %2289
    %2291 = vrot.lane.b32.xlu0 %v307, 96
    %v2292 = vpop.permute.xlu0 %2291
    %v2297 = vadd.f32 %v2277, %v2286
    %v2298 = vadd.f32 %v2278, %v2288
    %v2299 = vadd.f32 %v2279, %v2290
    %v2300 = vadd.f32 %v2280, %v2292
    %v2301 = vpack.c.bf16 %v2298, %v2297
    %2302 = vmatpush.bf16.msra.mxu0 0
    %2303 = vmatpush.bf16.msra.mxu0 0
    %2304 = vmatpush.bf16.msra.mxu0 0
    %2305 = vmatpush.bf16.msra.mxu0 0
    %2306 = vmatpush.bf16.msra.mxu0 0
    %2307 = vmatpush.bf16.msra.mxu0 0
    %2308 = vmatpush.bf16.msra.mxu0 0
    %2309 = vmatpush.bf16.msra.mxu0 %v2301
    %2310 = vmatmul.bf16.gmra.mxu0 %v894
    %v2311 = vpop.f32.mrf.mxu0
    %v2312 = vadd.f32 0.0, %v2311
    %v2313 = vpop.f32.mrf.mxu0
    %v2314 = vadd.f32 0.0, %v2313
    %2315 = vdwg.mxu0
    %2316 = vst.msk [vmem:[#allocation3] sm:$0xff] %vm87, %v2312
    %2317 = vst.msk [vmem:[#allocation3 + $0x18] sm:$0xff] %vm87, %v2314
    %2318 = vmatpush.bf16.msra.mxu0 0
    %2319 = vmatpush.bf16.msra.mxu0 0
    %2320 = vmatpush.bf16.msra.mxu0 0
    %2321 = vmatpush.bf16.msra.mxu0 0
    %2322 = vmatpush.bf16.msra.mxu0 0
    %2323 = vmatpush.bf16.msra.mxu0 0
    %2324 = vmatpush.bf16.msra.mxu0 0
    %2325 = vmatpush.bf16.msra.mxu0 %v2301
    %2326 = vmatmul.bf16.gmra.mxu0 %v913
    %v2327 = vpop.f32.mrf.mxu0
    %v2328 = vadd.f32 0.0, %v2327
    %v2329 = vpop.f32.mrf.mxu0
    %v2330 = vadd.f32 0.0, %v2329
    %2331 = vdwg.mxu0
    %2334 = vrot.lane.b32.xlu0 %v2328, 32
    %v2335 = vpop.permute.xlu0 %2334
    %2336 = vrot.lane.b32.xlu0 %v2330, 32
    %v2337 = vpop.permute.xlu0 %2336
    %2340 = vst.msk [vmem:[#allocation3] sm:$0xff] %vm937, %v2335
    %2341 = vst.msk [vmem:[#allocation3 + $0x18] sm:$0xff] %vm937, %v2337
    %2342 = vmatpush.bf16.msra.mxu0 0
    %2343 = vmatpush.bf16.msra.mxu0 0
    %2344 = vmatpush.bf16.msra.mxu0 0
    %2345 = vmatpush.bf16.msra.mxu0 0
    %2346 = vmatpush.bf16.msra.mxu0 0
    %2347 = vmatpush.bf16.msra.mxu0 0
    %2348 = vmatpush.bf16.msra.mxu0 0
    %2349 = vmatpush.bf16.msra.mxu0 %v2301
    %2350 = vmatmul.bf16.gmra.mxu0 %v941
    %v2351 = vpop.f32.mrf.mxu0
    %v2352 = vadd.f32 0.0, %v2351
    %v2353 = vpop.f32.mrf.mxu0
    %v2354 = vadd.f32 0.0, %v2353
    %2355 = vdwg.mxu0
    %2358 = vrot.lane.b32.xlu0 %v2352, 64
    %v2359 = vpop.permute.xlu0 %2358
    %2360 = vrot.lane.b32.xlu0 %v2354, 64
    %v2361 = vpop.permute.xlu0 %2360
    %2364 = vst.msk [vmem:[#allocation3] sm:$0xff] %vm965, %v2359
    %2365 = vst.msk [vmem:[#allocation3 + $0x18] sm:$0xff] %vm965, %v2361
    %2366 = vmatpush.bf16.msra.mxu0 0
    %2367 = vmatpush.bf16.msra.mxu0 0
    %2368 = vmatpush.bf16.msra.mxu0 0
    %2369 = vmatpush.bf16.msra.mxu0 0
    %2370 = vmatpush.bf16.msra.mxu0 0
    %2371 = vmatpush.bf16.msra.mxu0 0
    %2372 = vmatpush.bf16.msra.mxu0 0
    %2373 = vmatpush.bf16.msra.mxu0 %v2301
    %2374 = vmatmul.bf16.gmra.mxu0 %v969
    %v2375 = vpop.f32.mrf.mxu0
    %v2376 = vadd.f32 0.0, %v2375
    %v2377 = vpop.f32.mrf.mxu0
    %v2378 = vadd.f32 0.0, %v2377
    %2379 = vdwg.mxu0
    %2382 = vrot.lane.b32.xlu0 %v2376, 96
    %v2383 = vpop.permute.xlu0 %2382
    %2384 = vrot.lane.b32.xlu0 %v2378, 96
    %v2385 = vpop.permute.xlu0 %2384
    %2388 = vst.msk [vmem:[#allocation3] sm:$0xff] %vm993, %v2383
    %2389 = vst.msk [vmem:[#allocation3 + $0x18] sm:$0xff] %vm993, %v2385
    %2390 = vmatpush.bf16.msra.mxu0 0
    %2391 = vmatpush.bf16.msra.mxu0 0
    %2392 = vmatpush.bf16.msra.mxu0 0
    %2393 = vmatpush.bf16.msra.mxu0 0
    %2394 = vmatpush.bf16.msra.mxu0 0
    %2395 = vmatpush.bf16.msra.mxu0 0
    %2396 = vmatpush.bf16.msra.mxu0 0
    %2397 = vmatpush.bf16.msra.mxu0 %v2301
    %2398 = vmatmul.bf16.gmra.mxu0 %v997
    %v2399 = vpop.f32.mrf.mxu0
    %v2400 = vadd.f32 0.0, %v2399
    %v2401 = vpop.f32.mrf.mxu0
    %v2402 = vadd.f32 0.0, %v2401
    %2403 = vdwg.mxu0
    %2404 = vst.msk [vmem:[#allocation3 + $0x8] sm:$0xff] %vm87, %v2400
    %2405 = vst.msk [vmem:[#allocation3 + $0x20] sm:$0xff] %vm87, %v2402
    %2406 = vmatpush.bf16.msra.mxu0 0
    %2407 = vmatpush.bf16.msra.mxu0 0
    %2408 = vmatpush.bf16.msra.mxu0 0
    %2409 = vmatpush.bf16.msra.mxu0 0
    %2410 = vmatpush.bf16.msra.mxu0 0
    %2411 = vmatpush.bf16.msra.mxu0 0
    %2412 = vmatpush.bf16.msra.mxu0 0
    %2413 = vmatpush.bf16.msra.mxu0 %v2301
    %2414 = vmatmul.bf16.gmra.mxu0 %v1016
    %v2415 = vpop.f32.mrf.mxu0
    %v2416 = vadd.f32 0.0, %v2415
    %v2417 = vpop.f32.mrf.mxu0
    %v2418 = vadd.f32 0.0, %v2417
    %2419 = vdwg.mxu0
    %2422 = vrot.lane.b32.xlu0 %v2416, 32
    %v2423 = vpop.permute.xlu0 %2422
    %2424 = vrot.lane.b32.xlu0 %v2418, 32
    %v2425 = vpop.permute.xlu0 %2424
    %2428 = vst.msk [vmem:[#allocation3 + $0x8] sm:$0xff] %vm937, %v2423
    %2429 = vst.msk [vmem:[#allocation3 + $0x20] sm:$0xff] %vm937, %v2425
    %2430 = vmatpush.bf16.msra.mxu0 0
    %2431 = vmatpush.bf16.msra.mxu0 0
    %2432 = vmatpush.bf16.msra.mxu0 0
    %2433 = vmatpush.bf16.msra.mxu0 0
    %2434 = vmatpush.bf16.msra.mxu0 0
    %2435 = vmatpush.bf16.msra.mxu0 0
    %2436 = vmatpush.bf16.msra.mxu0 0
    %2437 = vmatpush.bf16.msra.mxu0 %v2301
    %2438 = vmatmul.bf16.gmra.mxu0 %v1043
    %v2439 = vpop.f32.mrf.mxu0
    %v2440 = vadd.f32 0.0, %v2439
    %v2441 = vpop.f32.mrf.mxu0
    %v2442 = vadd.f32 0.0, %v2441
    %2443 = vdwg.mxu0
    %2446 = vrot.lane.b32.xlu0 %v2440, 64
    %v2447 = vpop.permute.xlu0 %2446
    %2448 = vrot.lane.b32.xlu0 %v2442, 64
    %v2449 = vpop.permute.xlu0 %2448
    %2452 = vst.msk [vmem:[#allocation3 + $0x8] sm:$0xff] %vm965, %v2447
    %2453 = vst.msk [vmem:[#allocation3 + $0x20] sm:$0xff] %vm965, %v2449
    %2454 = vmatpush.bf16.msra.mxu0 0
    %2455 = vmatpush.bf16.msra.mxu0 0
    %2456 = vmatpush.bf16.msra.mxu0 0
    %2457 = vmatpush.bf16.msra.mxu0 0
    %2458 = vmatpush.bf16.msra.mxu0 0
    %2459 = vmatpush.bf16.msra.mxu0 0
    %2460 = vmatpush.bf16.msra.mxu0 0
    %2461 = vmatpush.bf16.msra.mxu0 %v2301
    %2462 = vmatmul.bf16.gmra.mxu0 %v1070
    %v2463 = vpop.f32.mrf.mxu0
    %v2464 = vadd.f32 0.0, %v2463
    %v2465 = vpop.f32.mrf.mxu0
    %v2466 = vadd.f32 0.0, %v2465
    %2467 = vdwg.mxu0
    %2470 = vrot.lane.b32.xlu0 %v2464, 96
    %v2471 = vpop.permute.xlu0 %2470
    %2472 = vrot.lane.b32.xlu0 %v2466, 96
    %v2473 = vpop.permute.xlu0 %2472
    %2476 = vst.msk [vmem:[#allocation3 + $0x8] sm:$0xff] %vm993, %v2471
    %2477 = vst.msk [vmem:[#allocation3 + $0x20] sm:$0xff] %vm993, %v2473
    %2478 = vmatpush.bf16.msra.mxu0 0
    %2479 = vmatpush.bf16.msra.mxu0 0
    %2480 = vmatpush.bf16.msra.mxu0 0
    %2481 = vmatpush.bf16.msra.mxu0 0
    %2482 = vmatpush.bf16.msra.mxu0 0
    %2483 = vmatpush.bf16.msra.mxu0 0
    %2484 = vmatpush.bf16.msra.mxu0 0
    %2485 = vmatpush.bf16.msra.mxu0 %v2301
    %2486 = vmatmul.bf16.gmra.mxu0 %v1097
    %v2487 = vpop.f32.mrf.mxu0
    %v2488 = vadd.f32 0.0, %v2487
    %v2489 = vpop.f32.mrf.mxu0
    %v2490 = vadd.f32 0.0, %v2489
    %2491 = vdwg.mxu0
    %2492 = vst.msk [vmem:[#allocation3 + $0x10] sm:$0xff] %vm87, %v2488
    %2493 = vst.msk [vmem:[#allocation3 + $0x28] sm:$0xff] %vm87, %v2490
    %v2494 = vpack.c.bf16 %v2300, %v2299
    %2495 = vmatpush.bf16.msra.mxu0 0
    %2496 = vmatpush.bf16.msra.mxu0 0
    %2497 = vmatpush.bf16.msra.mxu0 0
    %2498 = vmatpush.bf16.msra.mxu0 0
    %2499 = vmatpush.bf16.msra.mxu0 0
    %2500 = vmatpush.bf16.msra.mxu0 0
    %2501 = vmatpush.bf16.msra.mxu0 0
    %2502 = vmatpush.bf16.msra.mxu0 %v2494
    %2503 = vmatmul.bf16.gmra.mxu0 %v894
    %v2504 = vpop.f32.mrf.mxu0
    %v2505 = vadd.f32 0.0, %v2504
    %v2506 = vpop.f32.mrf.mxu0
    %v2507 = vadd.f32 0.0, %v2506
    %2508 = vdwg.mxu0
    %2509 = vst.msk [vmem:[#allocation3 + $0x30] sm:$0xff] %vm87, %v2505
    %2510 = vst.msk [vmem:[#allocation3 + $0x48] sm:$0xff] %vm87, %v2507
    %2511 = vmatpush.bf16.msra.mxu0 0
    %2512 = vmatpush.bf16.msra.mxu0 0
    %2513 = vmatpush.bf16.msra.mxu0 0
    %2514 = vmatpush.bf16.msra.mxu0 0
    %2515 = vmatpush.bf16.msra.mxu0 0
    %2516 = vmatpush.bf16.msra.mxu0 0
    %2517 = vmatpush.bf16.msra.mxu0 0
    %2518 = vmatpush.bf16.msra.mxu0 %v2494
    %2519 = vmatmul.bf16.gmra.mxu0 %v913
    %v2520 = vpop.f32.mrf.mxu0
    %v2521 = vadd.f32 0.0, %v2520
    %v2522 = vpop.f32.mrf.mxu0
    %v2523 = vadd.f32 0.0, %v2522
    %2524 = vdwg.mxu0
    %2527 = vrot.lane.b32.xlu0 %v2521, 32
    %v2528 = vpop.permute.xlu0 %2527
    %2529 = vrot.lane.b32.xlu0 %v2523, 32
    %v2530 = vpop.permute.xlu0 %2529
    %2533 = vst.msk [vmem:[#allocation3 + $0x30] sm:$0xff] %vm937, %v2528
    %2534 = vst.msk [vmem:[#allocation3 + $0x48] sm:$0xff] %vm937, %v2530
    %2535 = vmatpush.bf16.msra.mxu0 0
    %2536 = vmatpush.bf16.msra.mxu0 0
    %2537 = vmatpush.bf16.msra.mxu0 0
    %2538 = vmatpush.bf16.msra.mxu0 0
    %2539 = vmatpush.bf16.msra.mxu0 0
    %2540 = vmatpush.bf16.msra.mxu0 0
    %2541 = vmatpush.bf16.msra.mxu0 0
    %2542 = vmatpush.bf16.msra.mxu0 %v2494
    %2543 = vmatmul.bf16.gmra.mxu0 %v941
    %v2544 = vpop.f32.mrf.mxu0
    %v2545 = vadd.f32 0.0, %v2544
    %v2546 = vpop.f32.mrf.mxu0
    %v2547 = vadd.f32 0.0, %v2546
    %2548 = vdwg.mxu0
    %2551 = vrot.lane.b32.xlu0 %v2545, 64
    %v2552 = vpop.permute.xlu0 %2551
    %2553 = vrot.lane.b32.xlu0 %v2547, 64
    %v2554 = vpop.permute.xlu0 %2553
    %2557 = vst.msk [vmem:[#allocation3 + $0x30] sm:$0xff] %vm965, %v2552
    %2558 = vst.msk [vmem:[#allocation3 + $0x48] sm:$0xff] %vm965, %v2554
    %2559 = vmatpush.bf16.msra.mxu0 0
    %2560 = vmatpush.bf16.msra.mxu0 0
    %2561 = vmatpush.bf16.msra.mxu0 0
    %2562 = vmatpush.bf16.msra.mxu0 0
    %2563 = vmatpush.bf16.msra.mxu0 0
    %2564 = vmatpush.bf16.msra.mxu0 0
    %2565 = vmatpush.bf16.msra.mxu0 0
    %2566 = vmatpush.bf16.msra.mxu0 %v2494
    %2567 = vmatmul.bf16.gmra.mxu0 %v969
    %v2568 = vpop.f32.mrf.mxu0
    %v2569 = vadd.f32 0.0, %v2568
    %v2570 = vpop.f32.mrf.mxu0
    %v2571 = vadd.f32 0.0, %v2570
    %2572 = vdwg.mxu0
    %2575 = vrot.lane.b32.xlu0 %v2569, 96
    %v2576 = vpop.permute.xlu0 %2575
    %2577 = vrot.lane.b32.xlu0 %v2571, 96
    %v2578 = vpop.permute.xlu0 %2577
    %2581 = vst.msk [vmem:[#allocation3 + $0x30] sm:$0xff] %vm993, %v2576
    %2582 = vst.msk [vmem:[#allocation3 + $0x48] sm:$0xff] %vm993, %v2578
    %2583 = vmatpush.bf16.msra.mxu0 0
    %2584 = vmatpush.bf16.msra.mxu0 0
    %2585 = vmatpush.bf16.msra.mxu0 0
    %2586 = vmatpush.bf16.msra.mxu0 0
    %2587 = vmatpush.bf16.msra.mxu0 0
    %2588 = vmatpush.bf16.msra.mxu0 0
    %2589 = vmatpush.bf16.msra.mxu0 0
    %2590 = vmatpush.bf16.msra.mxu0 %v2494
    %2591 = vmatmul.bf16.gmra.mxu0 %v997
    %v2592 = vpop.f32.mrf.mxu0
    %v2593 = vadd.f32 0.0, %v2592
    %v2594 = vpop.f32.mrf.mxu0
    %v2595 = vadd.f32 0.0, %v2594
    %2596 = vdwg.mxu0
    %2597 = vst.msk [vmem:[#allocation3 + $0x38] sm:$0xff] %vm87, %v2593
    %2598 = vst.msk [vmem:[#allocation3 + $0x50] sm:$0xff] %vm87, %v2595
    %2599 = vmatpush.bf16.msra.mxu0 0
    %2600 = vmatpush.bf16.msra.mxu0 0
    %2601 = vmatpush.bf16.msra.mxu0 0
    %2602 = vmatpush.bf16.msra.mxu0 0
    %2603 = vmatpush.bf16.msra.mxu0 0
    %2604 = vmatpush.bf16.msra.mxu0 0
    %2605 = vmatpush.bf16.msra.mxu0 0
    %2606 = vmatpush.bf16.msra.mxu0 %v2494
    %2607 = vmatmul.bf16.gmra.mxu0 %v1016
    %v2608 = vpop.f32.mrf.mxu0
    %v2609 = vadd.f32 0.0, %v2608
    %v2610 = vpop.f32.mrf.mxu0
    %v2611 = vadd.f32 0.0, %v2610
    %2612 = vdwg.mxu0
    %2615 = vrot.lane.b32.xlu0 %v2609, 32
    %v2616 = vpop.permute.xlu0 %2615
    %2617 = vrot.lane.b32.xlu0 %v2611, 32
    %v2618 = vpop.permute.xlu0 %2617
    %2621 = vst.msk [vmem:[#allocation3 + $0x38] sm:$0xff] %vm937, %v2616
    %2622 = vst.msk [vmem:[#allocation3 + $0x50] sm:$0xff] %vm937, %v2618
    %2623 = vmatpush.bf16.msra.mxu0 0
    %2624 = vmatpush.bf16.msra.mxu0 0
    %2625 = vmatpush.bf16.msra.mxu0 0
    %2626 = vmatpush.bf16.msra.mxu0 0
    %2627 = vmatpush.bf16.msra.mxu0 0
    %2628 = vmatpush.bf16.msra.mxu0 0
    %2629 = vmatpush.bf16.msra.mxu0 0
    %2630 = vmatpush.bf16.msra.mxu0 %v2494
    %2631 = vmatmul.bf16.gmra.mxu0 %v1043
    %v2632 = vpop.f32.mrf.mxu0
    %v2633 = vadd.f32 0.0, %v2632
    %v2634 = vpop.f32.mrf.mxu0
    %v2635 = vadd.f32 0.0, %v2634
    %2636 = vdwg.mxu0
    %2639 = vrot.lane.b32.xlu0 %v2633, 64
    %v2640 = vpop.permute.xlu0 %2639
    %2641 = vrot.lane.b32.xlu0 %v2635, 64
    %v2642 = vpop.permute.xlu0 %2641
    %2645 = vst.msk [vmem:[#allocation3 + $0x38] sm:$0xff] %vm965, %v2640
    %2646 = vst.msk [vmem:[#allocation3 + $0x50] sm:$0xff] %vm965, %v2642
    %2647 = vmatpush.bf16.msra.mxu0 0
    %2648 = vmatpush.bf16.msra.mxu0 0
    %2649 = vmatpush.bf16.msra.mxu0 0
    %2650 = vmatpush.bf16.msra.mxu0 0
    %2651 = vmatpush.bf16.msra.mxu0 0
    %2652 = vmatpush.bf16.msra.mxu0 0
    %2653 = vmatpush.bf16.msra.mxu0 0
    %2654 = vmatpush.bf16.msra.mxu0 %v2494
    %2655 = vmatmul.bf16.gmra.mxu0 %v1070
    %v2656 = vpop.f32.mrf.mxu0
    %v2657 = vadd.f32 0.0, %v2656
    %v2658 = vpop.f32.mrf.mxu0
    %v2659 = vadd.f32 0.0, %v2658
    %2660 = vdwg.mxu0
    %2663 = vrot.lane.b32.xlu0 %v2657, 96
    %v2664 = vpop.permute.xlu0 %2663
    %2665 = vrot.lane.b32.xlu0 %v2659, 96
    %v2666 = vpop.permute.xlu0 %2665
    %2669 = vst.msk [vmem:[#allocation3 + $0x38] sm:$0xff] %vm993, %v2664
    %2670 = vst.msk [vmem:[#allocation3 + $0x50] sm:$0xff] %vm993, %v2666
    %2671 = vmatpush.bf16.msra.mxu0 0
    %2672 = vmatpush.bf16.msra.mxu0 0
    %2673 = vmatpush.bf16.msra.mxu0 0
    %2674 = vmatpush.bf16.msra.mxu0 0
    %2675 = vmatpush.bf16.msra.mxu0 0
    %2676 = vmatpush.bf16.msra.mxu0 0
    %2677 = vmatpush.bf16.msra.mxu0 0
    %2678 = vmatpush.bf16.msra.mxu0 %v2494
    %2679 = vmatmul.bf16.gmra.mxu0 %v1097
    %v2680 = vpop.f32.mrf.mxu0
    %v2681 = vadd.f32 0.0, %v2680
    %v2682 = vpop.f32.mrf.mxu0
    %v2683 = vadd.f32 0.0, %v2682
    %2684 = vdwg.mxu0
    %2685 = vst.msk [vmem:[#allocation3 + $0x40] sm:$0xff] %vm87, %v2681
    %2686 = vst.msk [vmem:[#allocation3 + $0x58] sm:$0xff] %vm87, %v2683
    %v2687 = vld [vmem:[#allocation3] sm:$0xff]
    %v2688 = vld [vmem:[#allocation3 + $0x8] sm:$0xff]
    %v2689 = vld [vmem:[#allocation3 + $0x10] sm:$0xff]
    %v2690 = vld [vmem:[#allocation3 + $0x18] sm:$0xff]
    %v2691 = vld [vmem:[#allocation3 + $0x20] sm:$0xff]
    %v2692 = vld [vmem:[#allocation3 + $0x28] sm:$0xff]
    %v2693 = vld [vmem:[#allocation3 + $0x30] sm:$0xff]
    %v2694 = vld [vmem:[#allocation3 + $0x38] sm:$0xff]
    %v2695 = vld [vmem:[#allocation3 + $0x40] sm:$0xff]
    %v2696 = vld [vmem:[#allocation3 + $0x48] sm:$0xff]
    %v2697 = vld [vmem:[#allocation3 + $0x50] sm:$0xff]
    %v2698 = vld [vmem:[#allocation3 + $0x58] sm:$0xff]
    %s2699 = scalar_lea.vmem %s12, 144
    %v2700 = vld [vmem:[%s2699] sm:$0xf]
    %v2701 = vld [vmem:[%s2699 + $0x4] sm:$0xf]
    %v2702 = vld [vmem:[%s2699 + $0x8] sm:$0xf]
    %v2703 = vld [vmem:[%s2699 + $0xc] sm:$0xf]
    %v2704 = vld [vmem:[%s2699 + $0x10] sm:$0xf]
    %v2705 = vld [vmem:[%s2699 + $0x14] sm:$0xf]
    %v2706 = vld [vmem:[%s2699 + $0x18] sm:$0xf]
    %v2707 = vld [vmem:[%s2699 + $0x1c] sm:$0xf]
    %v2708 = vld [vmem:[%s2699 + $0x20] sm:$0xf]
    %v2709 = vld [vmem:[%s2699 + $0x24] sm:$0xf]
    %v2710 = vld [vmem:[%s2699 + $0x28] sm:$0xf]
    %v2711 = vld [vmem:[%s2699 + $0x2c] sm:$0xf]
    %v2712 = vld [vmem:[%s2699 + $0x30] sm:$0xf]
    %v2713 = vld [vmem:[%s2699 + $0x34] sm:$0xf]
    %v2714 = vld [vmem:[%s2699 + $0x38] sm:$0xf]
    %v2715 = vld [vmem:[%s2699 + $0x3c] sm:$0xf]
    %v2716 = vld [vmem:[%s2699 + $0x40] sm:$0xf]
    %v2717 = vld [vmem:[%s2699 + $0x44] sm:$0xf]
    %v2718 = vld [vmem:[%s2699 + $0x48] sm:$0xf]
    %v2719 = vld [vmem:[%s2699 + $0x4c] sm:$0xf]
    %v2720 = vld [vmem:[%s2699 + $0x50] sm:$0xf]
    %v2721 = vld [vmem:[%s2699 + $0x54] sm:$0xf]
    %v2722 = vld [vmem:[%s2699 + $0x58] sm:$0xf]
    %v2723 = vld [vmem:[%s2699 + $0x5c] sm:$0xf]
    %v2724 = vld [vmem:[%s2699 + $0x60] sm:$0xf]
    %v2725 = vld [vmem:[%s2699 + $0x64] sm:$0xf]
    %v2726 = vld [vmem:[%s2699 + $0x68] sm:$0xf]
    %v2727 = vld [vmem:[%s2699 + $0x6c] sm:$0xf]
    %v2728 = vld [vmem:[%s2699 + $0x70] sm:$0xf]
    %v2729 = vld [vmem:[%s2699 + $0x74] sm:$0xf]
    %v2730 = vld [vmem:[%s2699 + $0x78] sm:$0xf]
    %v2731 = vld [vmem:[%s2699 + $0x7c] sm:$0xf]
    %v2732 = vld [vmem:[%s2699 + $0x80] sm:$0xf]
    %v2733 = vld [vmem:[%s2699 + $0x84] sm:$0xf]
    %v2734 = vld [vmem:[%s2699 + $0x88] sm:$0xf]
    %v2735 = vld [vmem:[%s2699 + $0x8c] sm:$0xf]
    %v2736 = vpack.c.bf16 %v2690, %v2687
    %v2737 = vpack.c.bf16 %v2691, %v2688
    %v2738 = vpack.c.bf16 %v2692, %v2689
    %v2739 = vpack.c.bf16 %v2696, %v2693
    %v2740 = vpack.c.bf16 %v2697, %v2694
    %v2741 = vpack.c.bf16 %v2698, %v2695
    %s2742 = scalar_lea.vmem %s13, 1
    %v2743 = vld [vmem:[%s2742] sm:$0x1]
    %v2745 = vperm.slane %v2743, 0
    %v2783 = vunpack.c.l.b16 %v2700
    %v2784 = vunpack.c.l.b16 %v2701
    %v2785 = vunpack.c.l.b16 %v2702
    %v2786 = vunpack.c.l.b16 %v2703
    %v2787 = vunpack.c.l.b16 %v2704
    %v2788 = vunpack.c.l.b16 %v2705
    %v2789 = vunpack.c.l.b16 %v2706
    %v2790 = vunpack.c.l.b16 %v2707
    %v2791 = vunpack.c.l.b16 %v2708
    %v2792 = vunpack.c.l.b16 %v2709
    %v2793 = vunpack.c.l.b16 %v2710
    %v2794 = vunpack.c.l.b16 %v2711
    %v2795 = vunpack.c.l.b16 %v2712
    %v2796 = vunpack.c.l.b16 %v2713
    %v2797 = vunpack.c.l.b16 %v2714
    %v2798 = vunpack.c.l.b16 %v2715
    %v2799 = vunpack.c.l.b16 %v2716
    %v2800 = vunpack.c.l.b16 %v2717
    %v2801 = vunpack.c.l.b16 %v2718
    %v2802 = vunpack.c.l.b16 %v2719
    %v2803 = vunpack.c.l.b16 %v2720
    %v2804 = vunpack.c.l.b16 %v2721
    %v2805 = vunpack.c.l.b16 %v2722
    %v2806 = vunpack.c.l.b16 %v2723
    %v2807 = vunpack.c.l.b16 %v2724
    %v2808 = vunpack.c.l.b16 %v2725
    %v2809 = vunpack.c.l.b16 %v2726
    %v2810 = vunpack.c.l.b16 %v2727
    %v2811 = vunpack.c.l.b16 %v2728
    %v2812 = vunpack.c.l.b16 %v2729
    %v2813 = vunpack.c.l.b16 %v2730
    %v2814 = vunpack.c.l.b16 %v2731
    %v2815 = vunpack.c.l.b16 %v2732
    %v2816 = vunpack.c.l.b16 %v2733
    %v2817 = vunpack.c.l.b16 %v2734
    %v2818 = vunpack.c.l.b16 %v2735
    %v2819 = vpack.c.b16 %v2784, %v2783
    %v2820 = vpack.c.b16 %v2786, %v2785
    %v2821 = vpack.c.b16 %v2788, %v2787
    %v2822 = vpack.c.b16 %v2790, %v2789
    %v2823 = vpack.c.b16 %v2792, %v2791
    %v2824 = vpack.c.b16 %v2794, %v2793
    %v2825 = vpack.c.b16 %v2796, %v2795
    %v2826 = vpack.c.b16 %v2798, %v2797
    %v2827 = vpack.c.b16 %v2800, %v2799
    %v2828 = vpack.c.b16 %v2802, %v2801
    %v2829 = vpack.c.b16 %v2804, %v2803
    %v2830 = vpack.c.b16 %v2806, %v2805
    %v2831 = vpack.c.b16 %v2808, %v2807
    %v2832 = vpack.c.b16 %v2810, %v2809
    %v2833 = vpack.c.b16 %v2812, %v2811
    %v2834 = vpack.c.b16 %v2814, %v2813
    %v2835 = vpack.c.b16 %v2816, %v2815
    %v2836 = vpack.c.b16 %v2818, %v2817
    %v2856 = vsel %vm87, %v2738, 0
    %v2859 = vsel %vm87, %v2741, 0
    %2861 = vmatpush.bf16.msra.mxu0 %v2826
    %2862 = vmatpush.bf16.msra.mxu0 %v2825
    %2863 = vmatpush.bf16.msra.mxu0 %v2824
    %2864 = vmatpush.bf16.msra.mxu0 %v2823
    %2865 = vmatpush.bf16.msra.mxu0 %v2822
    %2866 = vmatpush.bf16.msra.mxu0 %v2821
    %2867 = vmatpush.bf16.msra.mxu0 %v2820
    %2868 = vmatpush.bf16.msra.mxu0 %v2819
    %2869 = vmatmul.bf16.gmra.mxu0 %v2736
    %v2870 = vpop.f32.mrf.mxu0
    %v2871 = vadd.f32 %v2745, %v2870
    %v2872 = vpop.f32.mrf.mxu0
    %v2873 = vadd.f32 %v2745, %v2872
    %2874 = vmatmul.bf16.gmra.mxu0 %v2739
    %v2875 = vpop.f32.mrf.mxu0
    %v2876 = vadd.f32 %v2745, %v2875
    %v2877 = vpop.f32.mrf.mxu0
    %v2878 = vadd.f32 %v2745, %v2877
    %2879 = vdwg.mxu0
    %2880 = vmatpush.bf16.msra.mxu0 %v2834
    %2881 = vmatpush.bf16.msra.mxu0 %v2833
    %2882 = vmatpush.bf16.msra.mxu0 %v2832
    %2883 = vmatpush.bf16.msra.mxu0 %v2831
    %2884 = vmatpush.bf16.msra.mxu0 %v2830
    %2885 = vmatpush.bf16.msra.mxu0 %v2829
    %2886 = vmatpush.bf16.msra.mxu0 %v2828
    %2887 = vmatpush.bf16.msra.mxu0 %v2827
    %2888 = vmatmul.bf16.gmra.mxu0 %v2737
    %v2889 = vpop.f32.mrf.mxu0
    %v2890 = vadd.f32 %v2871, %v2889
    %v2891 = vpop.f32.mrf.mxu0
    %v2892 = vadd.f32 %v2873, %v2891
    %2893 = vmatmul.bf16.gmra.mxu0 %v2740
    %v2894 = vpop.f32.mrf.mxu0
    %v2895 = vadd.f32 %v2876, %v2894
    %v2896 = vpop.f32.mrf.mxu0
    %v2897 = vadd.f32 %v2878, %v2896
    %2898 = vdwg.mxu0
    %2899 = vmatpush.bf16.msra.mxu0 0
    %2900 = vmatpush.bf16.msra.mxu0 0
    %2901 = vmatpush.bf16.msra.mxu0 0
    %2902 = vmatpush.bf16.msra.mxu0 0
    %2903 = vmatpush.bf16.msra.mxu0 0
    %2904 = vmatpush.bf16.msra.mxu0 0
    %2905 = vmatpush.bf16.msra.mxu0 %v2836
    %2906 = vmatpush.bf16.msra.mxu0 %v2835
    %2907 = vmatmul.bf16.gmra.mxu0 %v2856
    %v2908 = vpop.f32.mrf.mxu0
    %v2909 = vadd.f32 %v2890, %v2908
    %v2910 = vpop.f32.mrf.mxu0
    %v2911 = vadd.f32 %v2892, %v2910
    %2912 = vmatmul.bf16.gmra.mxu0 %v2859
    %v2913 = vpop.f32.mrf.mxu0
    %v2914 = vadd.f32 %v2895, %v2913
    %v2915 = vpop.f32.mrf.mxu0
    %v2916 = vadd.f32 %v2897, %v2915
    %2917 = vdwg.mxu0
    %v2918 = vmax.f32 %v2909, 0.0
    %v2919 = vmax.f32 %v2911, 0.0
    %v2920 = vmax.f32 %v2914, 0.0
    %v2921 = vmax.f32 %v2916, 0.0
    %v2922 = vand.u32 2147483647, %v2909
    %v2923 = vand.u32 2147483647, %v2911
    %v2924 = vand.u32 2147483647, %v2914
    %v2925 = vand.u32 2147483647, %v2916
    %v2926 = vsub.f32 0.0, %v2922
    %v2927 = vsub.f32 0.0, %v2923
    %v2928 = vsub.f32 0.0, %v2924
    %v2929 = vsub.f32 0.0, %v2925
    %v2930 = vmul.f32 %v2926, 1.442695
    %v2931 = vpow.pop %v2930
    %v2932 = vmul.f32 %v2927, 1.442695
    %v2933 = vpow.pop %v2932
    %v2934 = vmul.f32 %v2928, 1.442695
    %v2935 = vpow.pop %v2934
    %v2936 = vmul.f32 %v2929, 1.442695
    %v2937 = vpow.pop %v2936
    %v2938 = vadd.f32 %v2931, 1.0
    %v2939 = vadd.f32 %v2933, 1.0
    %v2940 = vadd.f32 %v2935, 1.0
    %v2941 = vadd.f32 %v2937, 1.0
    %v2942 = vlog2.pop %v2938
    %v2943 = vmul.f32 %v2942, 0.6931472
    %v2944 = vlog2.pop %v2939
    %v2945 = vmul.f32 %v2944, 0.6931472
    %v2946 = vlog2.pop %v2940
    %v2947 = vmul.f32 %v2946, 0.6931472
    %v2948 = vlog2.pop %v2941
    %v2949 = vmul.f32 %v2948, 0.6931472
    %v2950 = vadd.f32 %v2918, %v2943
    %v2951 = vadd.f32 %v2919, %v2945
    %v2952 = vadd.f32 %v2920, %v2947
    %v2953 = vadd.f32 %v2921, %v2949
    %v2954 = vtanh.pop %v2950
    %v2955 = vtanh.pop %v2951
    %v2956 = vtanh.pop %v2952
    %v2957 = vtanh.pop %v2953
    %v2958 = vmul.f32 %v2909, %v2954
    %v2959 = vmul.f32 %v2911, %v2955
    %v2960 = vmul.f32 %v2914, %v2956
    %v2961 = vmul.f32 %v2916, %v2957
    %s2962 = scalar_lea.vmem %s14, 32
    %v2963 = vld [vmem:[%s2962] sm:$0xf]
    %v2964 = vld [vmem:[%s2962 + $0x4] sm:$0xf]
    %v2965 = vld [vmem:[%s2962 + $0x8] sm:$0xf]
    %v2966 = vld [vmem:[%s2962 + $0xc] sm:$0xf]
    %v2967 = vld [vmem:[%s2962 + $0x10] sm:$0xf]
    %v2968 = vld [vmem:[%s2962 + $0x14] sm:$0xf]
    %v2969 = vld [vmem:[%s2962 + $0x18] sm:$0xf]
    %v2970 = vld [vmem:[%s2962 + $0x1c] sm:$0xf]
    %v2971 = vpack.c.bf16 %v2959, %v2958
    %v2972 = vpack.c.bf16 %v2961, %v2960
    %s2973 = scalar_lea.vmem %s15, 1
    %v2974 = vld [vmem:[%s2973] sm:$0x1]
    %v2976 = vperm.slane %v2974, 0
    %v2986 = vunpack.c.l.b16 %v2963
    %v2987 = vunpack.c.l.b16 %v2964
    %v2988 = vunpack.c.l.b16 %v2965
    %v2989 = vunpack.c.l.b16 %v2966
    %v2990 = vunpack.c.l.b16 %v2967
    %v2991 = vunpack.c.l.b16 %v2968
    %v2992 = vunpack.c.l.b16 %v2969
    %v2993 = vunpack.c.l.b16 %v2970
    %v2994 = vpack.c.b16 %v2987, %v2986
    %v2995 = vpack.c.b16 %v2989, %v2988
    %v2996 = vpack.c.b16 %v2991, %v2990
    %v2997 = vpack.c.b16 %v2993, %v2992
    %v3003 = vsel %vm1619, %v2971, 0
    %v3006 = vsel %vm1619, %v2972, 0
    %3008 = vmatpush.bf16.msra.mxu0 0
    %3009 = vmatpush.bf16.msra.mxu0 0
    %3010 = vmatpush.bf16.msra.mxu0 0
    %3011 = vmatpush.bf16.msra.mxu0 0
    %3012 = vmatpush.bf16.msra.mxu0 %v2997
    %3013 = vmatpush.bf16.msra.mxu0 %v2996
    %3014 = vmatpush.bf16.msra.mxu0 %v2995
    %3015 = vmatpush.bf16.msra.mxu0 %v2994
    %3016 = vmatmul.bf16.gmra.mxu0 %v3003
    %v3017 = vpop.f32.mrf.mxu0
    %v3018 = vadd.f32 %v2976, %v3017
    %v3019 = vpop.f32.mrf.mxu0
    %v3020 = vadd.f32 %v2976, %v3019
    %3021 = vmatmul.bf16.gmra.mxu0 %v3006
    %v3022 = vpop.f32.mrf.mxu0
    %v3023 = vadd.f32 %v2976, %v3022
    %v3024 = vpop.f32.mrf.mxu0
    %v3025 = vadd.f32 %v2976, %v3024
    %3026 = vdwg.mxu0
    %v3027 = vadd.f32 %v3018, %v2297
    %v3028 = vadd.f32 %v3020, %v2298
    %v3029 = vadd.f32 %v3023, %v2299
    %v3030 = vadd.f32 %v3025, %v2300
    %v3031 = vsel %vm87, %v3027, 0.0
    %3032 = vadd.xlane.f32.xlu0 %v3031
    %v3033 = vpop.xlane.xlu0 %3032
    %v3034 = vsel %vm87, %v3028, 0.0
    %3035 = vadd.xlane.f32.xlu0 %v3034
    %v3036 = vpop.xlane.xlu0 %3035
    %v3037 = vsel %vm87, %v3029, 0.0
    %3038 = vadd.xlane.f32.xlu0 %v3037
    %v3039 = vpop.xlane.xlu0 %3038
    %v3040 = vsel %vm87, %v3030, 0.0
    %3041 = vadd.xlane.f32.xlu0 %v3040
    %v3042 = vpop.xlane.xlu0 %3041
    %v3043 = vmul.f32 %v3033, %v791
    %v3044 = vmul.f32 %v3036, %v791
    %v3045 = vmul.f32 %v3039, %v791
    %v3046 = vmul.f32 %v3042, %v791
    %v3047 = vsub.f32 %v3027, %v3043
    %v3048 = vsub.f32 %v3028, %v3044
    %v3049 = vsub.f32 %v3029, %v3045
    %v3050 = vsub.f32 %v3030, %v3046
    %v3051 = vmul.f32 %v3047, %v3047
    %v3052 = vmul.f32 %v3048, %v3048
    %v3053 = vmul.f32 %v3049, %v3049
    %v3054 = vmul.f32 %v3050, %v3050
    %v3055 = vsel %vm87, %v3051, 0.0
    %3056 = vadd.xlane.f32.xlu0 %v3055
    %v3057 = vpop.xlane.xlu0 %3056
    %v3058 = vsel %vm87, %v3052, 0.0
    %3059 = vadd.xlane.f32.xlu0 %v3058
    %v3060 = vpop.xlane.xlu0 %3059
    %v3061 = vsel %vm87, %v3053, 0.0
    %3062 = vadd.xlane.f32.xlu0 %v3061
    %v3063 = vpop.xlane.xlu0 %3062
    %v3064 = vsel %vm87, %v3054, 0.0
    %3065 = vadd.xlane.f32.xlu0 %v3064
    %v3066 = vpop.xlane.xlu0 %3065
    %v3067 = vmul.f32 %v3057, %v791
    %v3068 = vmul.f32 %v3060, %v791
    %v3069 = vmul.f32 %v3063, %v791
    %v3070 = vmul.f32 %v3066, %v791
    %v3071 = vadd.f32 %v3067, 1e-05
    %v3072 = vadd.f32 %v3068, 1e-05
    %v3073 = vadd.f32 %v3069, 1e-05
    %v3074 = vadd.f32 %v3070, 1e-05
    %v3075 = vrsqrt.pop %v3071
    %v3076 = vmul.f32 %v3075, %v3071
    %v3077 = vmul.f32 %v3076, %v3075
    %v3078 = vmul.f32 0.5, %v3077
    %v3079 = vsub.f32 1.5, %v3078
    %v3080 = vmul.f32 %v3075, %v3079
    %vm3081 = vweird.f32 %v3071
    %vm3082 = vweird.f32 %v3075
    %vm3083 = vmor %vm3081, %vm3082
    %v3084 = vsel %vm3083, %v3075, %v3080
    %v3085 = vrsqrt.pop %v3072
    %v3086 = vmul.f32 %v3085, %v3072
    %v3087 = vmul.f32 %v3086, %v3085
    %v3088 = vmul.f32 0.5, %v3087
    %v3089 = vsub.f32 1.5, %v3088
    %v3090 = vmul.f32 %v3085, %v3089
    %vm3091 = vweird.f32 %v3072
    %vm3092 = vweird.f32 %v3085
    %vm3093 = vmor %vm3091, %vm3092
    %v3094 = vsel %vm3093, %v3085, %v3090
    %v3095 = vrsqrt.pop %v3073
    %v3096 = vmul.f32 %v3095, %v3073
    %v3097 = vmul.f32 %v3096, %v3095
    %v3098 = vmul.f32 0.5, %v3097
    %v3099 = vsub.f32 1.5, %v3098
    %v3100 = vmul.f32 %v3095, %v3099
    %vm3101 = vweird.f32 %v3073
    %vm3102 = vweird.f32 %v3095
    %vm3103 = vmor %vm3101, %vm3102
    %v3104 = vsel %vm3103, %v3095, %v3100
    %v3105 = vrsqrt.pop %v3074
    %v3106 = vmul.f32 %v3105, %v3074
    %v3107 = vmul.f32 %v3106, %v3105
    %v3108 = vmul.f32 0.5, %v3107
    %v3109 = vsub.f32 1.5, %v3108
    %v3110 = vmul.f32 %v3105, %v3109
    %vm3111 = vweird.f32 %v3074
    %vm3112 = vweird.f32 %v3105
    %vm3113 = vmor %vm3111, %vm3112
    %v3114 = vsel %vm3113, %v3105, %v3110
    %v3115 = vmul.f32 %v3047, %v3084
    %v3116 = vmul.f32 %v3048, %v3094
    %v3117 = vmul.f32 %v3049, %v3104
    %v3118 = vmul.f32 %v3050, %v3114
    %3123 = vrot.lane.b32.xlu0 %v3115, 64
    %v3124 = vpop.permute.xlu0 %3123
    %3125 = vrot.lane.b32.xlu0 %v3116, 64
    %v3126 = vpop.permute.xlu0 %3125
    %3127 = vrot.lane.b32.xlu0 %v3117, 64
    %v3128 = vpop.permute.xlu0 %3127
    %3129 = vrot.lane.b32.xlu0 %v3118, 64
    %v3130 = vpop.permute.xlu0 %3129
    %v3135 = vmul.f32 %v298, %v3124
    %v3136 = vmul.f32 %v301, %v3126
    %v3137 = vmul.f32 %v304, %v3128
    %v3138 = vmul.f32 %v307, %v3130
    %v3139 = vadd.f32 %v3135, %v2286
    %v3140 = vadd.f32 %v3136, %v2288
    %v3141 = vadd.f32 %v3137, %v2290
    %v3142 = vadd.f32 %v3138, %v2292
    %v3143 = vld [vmem:[%s16] sm:$0xf]
    %v3144 = vld [vmem:[%s16 + $0x4] sm:$0xf]
    %v3145 = vld [vmem:[%s16 + $0x8] sm:$0xf]
    %v3146 = vld [vmem:[%s16 + $0xc] sm:$0xf]
    %v3147 = vpack.c.bf16 %v3140, %v3139
    %v3148 = vpack.c.bf16 %v3142, %v3141
    %v3149 = vld [vmem:[%s17] sm:$0x1]
    %v3151 = vperm.slane %v3149, 0
    %3155 = vrot.lane.b32.xlu0 %v3147, 64
    %v3156 = vpop.permute.xlu0 %3155
    %3157 = vrot.lane.b32.xlu0 %v3148, 64
    %v3158 = vpop.permute.xlu0 %3157
    %v3163 = vunpack.c.l.b16 %v3143
    %v3164 = vunpack.c.l.b16 %v3144
    %v3165 = vunpack.c.l.b16 %v3145
    %v3166 = vunpack.c.l.b16 %v3146
    %v3167 = vpack.c.b16 %v3164, %v3163
    %v3168 = vpack.c.b16 %v3166, %v3165
    %v3172 = vsel %vm87, %v3156, 0
    %v3175 = vsel %vm87, %v3158, 0
    %3177 = vmatpush.bf16.msra.mxu0 0
    %3178 = vmatpush.bf16.msra.mxu0 0
    %3179 = vmatpush.bf16.msra.mxu0 0
    %3180 = vmatpush.bf16.msra.mxu0 0
    %3181 = vmatpush.bf16.msra.mxu0 0
    %3182 = vmatpush.bf16.msra.mxu0 0
    %3183 = vmatpush.bf16.msra.mxu0 %v3168
    %3184 = vmatpush.bf16.msra.mxu0 %v3167
    %3185 = vmatmul.bf16.gmra.mxu0 %v3172
    %v3186 = vpop.f32.mrf.mxu0
    %v3187 = vadd.f32 %v3151, %v3186
    %v3188 = vpop.f32.mrf.mxu0
    %v3189 = vadd.f32 %v3151, %v3188
    %3190 = vmatmul.bf16.gmra.mxu0 %v3175
    %v3191 = vpop.f32.mrf.mxu0
    %v3192 = vadd.f32 %v3151, %v3191
    %v3193 = vpop.f32.mrf.mxu0
    %v3194 = vadd.f32 %v3151, %v3193
    %3195 = vdwg.mxu0
    %vm3196 = vcmask 326656
    %3197 = vst.msk [vmem:[#allocation4] sm:$0xff] %vm3196, %v3187
    %3198 = vst.msk [vmem:[#allocation4 + $0x8] sm:$0xff] %vm3196, %v3189
    %3199 = vst.msk [vmem:[#allocation4 + $0x10] sm:$0xff] %vm3196, %v3192
    %3200 = vst.msk [vmem:[#allocation4 + $0x18] sm:$0xff] %vm3196, %v3194
    // Predicated region
    $region74: #{_lambda_.1} parent=1 // pred_check
      _
    $region75: #{_lambda_.1} parent=1 // pred_check_branch
      %3202 = sbr.rel (0) target = $region77
    $region76: #{_lambda_.1} parent=1 // pred_region
      %3204 = vsyncadd [#allocation5], 0
      %s3205 = sshll.u32 [#allocation4], 4
      %s3206 = int_to_ptr.vmem [resolvable:$true] %s3205
      %s3207 = sshll.u32 %s18, 4
      %s3208 = int_to_ptr.hbm [resolvable:$true] %s3207
      %3213 = dma.vmem_to_hbm [thread:$0]  %s3206, 512, %s3208, [#allocation5], 128, 128, 8
    $region77: #{_lambda_.1} parent=1 // pred_fallthru
      _
    // Predicated region
    $region78: #{_lambda_.1} parent=1 // pred_check
      _
    $region79: #{_lambda_.1} parent=1 // pred_check_branch
      %3215 = sbr.rel (0) target = $region81
    $region80: #{_lambda_.1} parent=1 // pred_region
      %3217 = dma.done [#allocation5], 512
    $region81: #{_lambda_.1} parent=1 // pred_fallthru
      _
    %3218 = vsyncpa [#allocation5], 1

</llo_original>
